<compile_context>
chip_gen: v7x
topology: tpu7x:2x2x1
jax: 0.10.0
libtpu: 0.0.40
codegen_flags: <defaults>
</compile_context>

<pallas_src>
import math
from functools import partial

import numpy as np
import jax
import jax.numpy as jnp
from jax import lax
from jax.experimental import pallas as pl
from jax.experimental.pallas import tpu as pltpu

# ----------------------------- config (small shapes consistent with the module) ----
FEATURES = 48          # node feature dim (>= 12 for NormalizeFeaturesV2)
NHID = 32              # hidden width
GRPH_DIM = 16          # graph embedding dim (lin2 out)
LABEL_DIM = 1          # lin3 out
N_GRAPHS = 2           # graphs in the batch
NODES_PER_GRAPH = 20
N_NODES = N_GRAPHS * NODES_PER_GRAPH
POOL_RATIO = 0.2       # SAGPooling ratio
N_STAGES = 3
NORM_COLS = 12         # NormalizeFeaturesV2 normalizes x[:, :12]
OUT_LANES = 128        # lane-dense output slab width

assert GRPH_DIM + LABEL_DIM <= OUT_LANES


# ----------------------------- tiny helpers ----------------------------------------
def _vmem():
    return pl.BlockSpec(memory_space=pltpu.MemorySpace.VMEM)


def _dot(a, b):
    return jnp.dot(a, b, preferred_element_type=jnp.float32)


def _relu(y):
    return jnp.maximum(y, 0.0)


def pool_ks():
    """Per-stage SAGPooling k = ceil(ratio * current node count); equal-size graphs."""
    ks, c = [], NODES_PER_GRAPH
    for _ in range(N_STAGES):
        c = int(math.ceil(POOL_RATIO * c))
        ks.append(c)
    return tuple(ks)


# ----------------------------- the fused GraphNet kernel ---------------------------
def _graphnet_kernel(x_ref, adj_ref, w_ref, o_ref, *, offs, ks, norm_cols,
                     n_graphs, nodes_per_graph, n_stages, nhid, grph_dim, label_dim):
    def getw(name):
        r0, nr, nc = offs[name]                      # static offsets into the weight slab
        return w_ref[r0:r0 + nr, 0:nc]

    x = x_ref[...]                                   # [N, F]
    n = x.shape[0]
    nb, npg = n_graphs, nodes_per_graph

    # NormalizeFeaturesV2: x[:, :12] /= per-column max (EUP reciprocal, eps-guarded)
    colmax = jnp.maximum(jnp.max(x, axis=0, keepdims=True), 1e-12)
    inv = pl.reciprocal(colmax, approx=True)         # [1, F]
    colid = lax.broadcasted_iota(jnp.int32, x.shape, 1)
    x = x * jnp.where(colid < norm_cols, inv, 1.0)

    adj = adj_ref[...]                               # [N, N] dense intra-graph adjacency

    # --- static graph metadata generated in-kernel (nothing DMA'd) ------------------
    r_nn = lax.broadcasted_iota(jnp.int32, (n, n), 0)
    c_nn = lax.broadcasted_iota(jnp.int32, (n, n), 1)
    g_bn = lax.broadcasted_iota(jnp.int32, (nb, n), 0)
    n_bn = lax.broadcasted_iota(jnp.int32, (nb, n), 1)
    seg = jnp.where(jnp.logical_and(n_bn >= g_bn * npg, n_bn < (g_bn + 1) * npg),
                    1.0, 0.0)                        # [B, N] graph one-hot
    same_g = jnp.zeros((n, n), jnp.float32)          # [N, N] same-graph indicator
    for g in range(nb):                              # static, tiny
        in_r = jnp.logical_and(r_nn >= g * npg, r_nn < (g + 1) * npg)
        in_c = jnp.logical_and(c_nn >= g * npg, c_nn < (g + 1) * npg)
        same_g = jnp.where(jnp.logical_and(in_r, in_c), 1.0, same_g)
    node_id = lax.broadcasted_iota(jnp.int32, (n, 1), 0)       # [N, 1]
    row_b = lax.broadcasted_iota(jnp.int32, (nb, nhid), 0)     # [B, nhid]

    mask = jnp.ones((n, 1), jnp.float32)             # surviving (un-pruned) nodes
    gmp_sum = jnp.zeros((nb, nhid), jnp.float32)
    gap_sum = jnp.zeros((nb, nhid), jnp.float32)

    for s in range(1, n_stages + 1):
        wl, wr, bl = getw(f"conv{s}_wl"), getw(f"conv{s}_wr"), getw(f"conv{s}_bl")
        wrel, wroot, brel = (getw(f"pool{s}_wrel"), getw(f"pool{s}_wroot"),
                             getw(f"pool{s}_brel"))

        mask_row = jnp.transpose(mask)               # [1, N]
        a = adj * mask_row                           # drop edges from pruned sources (reused)

        # SAGEConv (mean aggregation) + F.relu
        deg = jnp.sum(a, axis=1, keepdims=True)
        neigh = _dot(a, x) / jnp.maximum(deg, 1.0)
        h = _relu(_dot(neigh, wl) + bl + _dot(x, wr))

        # SAGPooling score GNN == GraphConv(nhid, 1), add aggregation (reuses masked adj)
        score = _dot(_dot(a, h), wrel) + brel + _dot(h, wroot)          # [N, 1]

        # static-k top-k per graph via pairwise rank (ties -> lower node index)
        s_row = jnp.transpose(score)                                    # [1, N]
        beats = jnp.logical_or(s_row > score,
                               jnp.logical_and(s_row == score, c_nn < r_nn))
        valid = jnp.logical_and(same_g > 0.5, mask_row > 0.5)
        cnt = jnp.sum(jnp.where(jnp.logical_and(beats, valid), 1.0, 0.0),
                      axis=1, keepdims=True)                            # [N, 1]
        mask = jnp.where(jnp.logical_and(mask > 0.5, cnt < float(ks[s - 1])), 1.0, 0.0)
        mask_row = jnp.transpose(mask)

        # dense pooling: kept nodes scaled by tanh(score), pruned nodes zeroed
        x = h * jnp.tanh(score) * mask

        # readout x_s = [global_max_pool || global_mean_pool] over surviving nodes
        segm = seg * mask_row                                           # [B, N]
        cntg = jnp.maximum(jnp.sum(segm, axis=1, keepdims=True), 1.0)
        gap = _dot(segm, x) / cntg                                      # [B, nhid]
        gmp = jnp.zeros((nb, nhid), jnp.float32)
        for g in range(nb):                                             # static, tiny (B=2)
            in_g = jnp.logical_and(node_id >= g * npg, node_id < (g + 1) * npg)
            sel = jnp.logical_and(in_g, mask > 0.5)                     # kept nodes of graph g
            mx = jnp.max(jnp.where(sel, x, -1e30), axis=0, keepdims=True)
            gmp = jnp.where(row_b == g, mx, gmp)

        gmp_sum = gmp_sum + gmp                      # x1 + x2 + x3, split into halves
        gap_sum = gap_sum + gap

    # lin1 over cat([gmp, gap], 1) via split weight; dropout = identity (eval)
    w1 = getw("lin1_w")
    xg = _relu(_dot(gmp_sum, w1[:nhid, :]) + _dot(gap_sum, w1[nhid:, :]) + getw("lin1_b"))
    features = _relu(_dot(xg, getw("lin2_w")) + getw("lin2_b"))
    out = _dot(features, getw("lin3_w")) + getw("lin3_b")   # act=None (module default)

    # lane-dense output slab: [ features | out | zeros ]
    o_ref[:, 0:grph_dim] = features
    o_ref[:, grph_dim:grph_dim + label_dim] = out
    tail = o_ref.shape[1] - grph_dim - label_dim
    o_ref[:, grph_dim + label_dim:] = jnp.zeros((nb, tail), jnp.float32)


# ----------------------------- host-side parameter packing -------------------------
def init_params(key):
    keys = iter(jax.random.split(key, 32))

    def lin(d_in, d_out, bias=True):
        bound = 1.0 / math.sqrt(d_in)
        w = jax.random.uniform(next(keys), (d_in, d_out), jnp.float32, -bound, bound)
        if bias:
            b = jax.random.uniform(next(keys), (1, d_out), jnp.float32, -bound, bound)
            return w, b
        return w

    params = {}
    d_in = FEATURES
    for s in range(1, N_STAGES + 1):
        wl, bl = lin(d_in, NHID)               # SAGEConv.lin_l (aggregated neighbors, bias)
        wr = lin(d_in, NHID, bias=False)       # SAGEConv.lin_r (root, no bias)
        params[f"conv{s}"] = {"wl": wl, "bl": bl, "wr": wr}
        wrel, brel = lin(NHID, 1)              # SAGPooling score GNN = GraphConv(nhid, 1)
        wroot = lin(NHID, 1, bias=False)
        params[f"pool{s}"] = {"wrel": wrel, "brel": brel, "wroot": wroot}
        d_in = NHID
    params["lin1"] = lin(2 * NHID, NHID)
    params["lin2"] = lin(NHID, GRPH_DIM)
    params["lin3"] = lin(GRPH_DIM, LABEL_DIM)
    return params


def pack_graphnet_params(params, lanes=OUT_LANES):
    """Pack every weight/bias into ONE 128-lane, 8-sublane-aligned f32 slab (done once)."""
    entries = []
    for s in range(1, N_STAGES + 1):
        c, p = params[f"conv{s}"], params[f"pool{s}"]
        entries += [(f"conv{s}_wl", c["wl"]), (f"conv{s}_wr", c["wr"]),
                    (f"conv{s}_bl", c["bl"]),
                    (f"pool{s}_wrel", p["wrel"]), (f"pool{s}_wroot", p["wroot"]),
                    (f"pool{s}_brel", p["brel"])]
    entries += [("lin1_w", params["lin1"][0]), ("lin1_b", params["lin1"][1]),
                ("lin2_w", params["lin2"][0]), ("lin2_b", params["lin2"][1]),
                ("lin3_w", params["lin3"][0]), ("lin3_b", params["lin3"][1])]

    offs, blocks, row = {}, [], 0
    for name, arr in entries:
        arr = np.asarray(arr, dtype=np.float32)
        nr, nc = arr.shape
        offs[name] = (row, nr, nc)
        blk = np.zeros((nr, lanes), np.float32)
        blk[:, :nc] = arr
        blocks.append(blk)
        row += nr
        pad = (-row) % 8                        # keep every block 8-sublane aligned
        if pad:
            blocks.append(np.zeros((pad, lanes), np.float32))
            row += pad
    return jnp.asarray(np.concatenate(blocks, axis=0)), offs


# ----------------------------- wrapper ---------------------------------------------
def _cost_estimate(wslab_size):
    flops, d_in = 0, FEATURES
    for _ in range(N_STAGES):
        flops += 2 * N_NODES * N_NODES * d_in          # adj @ x
        flops += 2 * 2 * N_NODES * d_in * NHID         # neigh@wl + x@wr
        flops += 2 * N_NODES * N_NODES * NHID          # adj @ h
        flops += 2 * 2 * N_NODES * NHID                # score matmuls
        flops += 2 * N_GRAPHS * N_NODES * NHID         # mean-pool matmul
        d_in = NHID
    flops += 2 * N_GRAPHS * (2 * NHID * NHID + NHID * GRPH_DIM + GRPH_DIM * LABEL_DIM)
    bytes_accessed = 4 * (N_NODES * FEATURES + N_NODES * N_NODES
                          + wslab_size + N_GRAPHS * OUT_LANES)
    return pl.CostEstimate(flops=int(flops),
                           transcendentals=int(N_STAGES * N_NODES + FEATURES),
                           bytes_accessed=int(bytes_accessed))


def graphnet_forward(x_nodes, adj, wslab, *, offs, ks):
    kern = partial(_graphnet_kernel, offs=offs, ks=ks, norm_cols=NORM_COLS,
                   n_graphs=N_GRAPHS, nodes_per_graph=NODES_PER_GRAPH,
                   n_stages=N_STAGES, nhid=NHID, grph_dim=GRPH_DIM, label_dim=LABEL_DIM)
    out_slab = pl.pallas_call(
        kern,
        out_shape=jax.ShapeDtypeStruct((N_GRAPHS, OUT_LANES), jnp.float32),
        in_specs=[_vmem(), _vmem(), _vmem()],
        out_specs=_vmem(),
        cost_estimate=_cost_estimate(wslab.size),
    )(x_nodes, adj, wslab)
    features = out_slab[:, :GRPH_DIM]
    out = out_slab[:, GRPH_DIM:GRPH_DIM + LABEL_DIM]
    return features, out


# ----------------------------- main -------------------------------------------------
if __name__ == "__main__":
    key = jax.random.PRNGKey(0)
    k_param, k_x, k_adj, k_edge = jax.random.split(key, 4)

    params = init_params(k_param)
    wslab, offs = pack_graphnet_params(params)        # one [600,128] f32 slab
    ks = pool_ks()                                     # (4, 1, 1) for 20-node graphs

    # deterministic example batch: 2 graphs x 20 nodes, symmetric intra-graph adjacency
    batch_ids = np.repeat(np.arange(N_GRAPHS), NODES_PER_GRAPH)
    same_np = (batch_ids[:, None] == batch_ids[None, :]).astype(np.float32)
    x_nodes = jax.random.uniform(k_x, (N_NODES, FEATURES), jnp.float32, 0.1, 1.0)
    rand = jax.random.uniform(k_adj, (N_NODES, N_NODES), jnp.float32)
    adj = (rand < 0.3).astype(jnp.float32) * jnp.asarray(same_np)
    adj = jnp.maximum(adj, adj.T) * (1.0 - jnp.eye(N_NODES, dtype=jnp.float32))

    # NormalizeEdgesV2: edge_attr normalized but never consumed downstream
    # (SAGEConv and the SAGPooling score GraphConv ignore edge weights).
    # TODO(synk): weighted-edge aggregation (use_edges=1) has no consumer in this forward.
    edge_attr = jax.random.uniform(k_edge, (64, 1), jnp.float32, 0.1, 1.0)
    edge_attr = edge_attr / jnp.max(edge_attr, axis=0, keepdims=True)

    fwd = jax.jit(partial(graphnet_forward, offs=offs, ks=ks))
    features, out = fwd(x_nodes, adj, wslab)
    jax.block_until_ready((features, out))
    assert features.shape == (N_GRAPHS, GRPH_DIM)
    assert out.shape == (N_GRAPHS, LABEL_DIM)
    print("KERNEL_OK")
</pallas_src>

<mosaic_0001>
module attributes {stable_mosaic.version = 11 : i64} {
  func.func @_graphnet_kernel(%arg0: memref<40x48xf32, #tpu.memory_space<vmem>>, %arg1: memref<40x40xf32, #tpu.memory_space<vmem>>, %arg2: memref<600x128xf32, #tpu.memory_space<vmem>>, %arg3: memref<2x128xf32, #tpu.memory_space<vmem>>) attributes {dimension_semantics = [], scalar_prefetch = 0 : i64, scratch_operands = 0 : i64, tpu.core_type = #tpu.core_type<tc>} {
    %c0 = arith.constant 0 : index
    %c0_0 = arith.constant 0 : index
    %0 = vector.load %arg0[%c0, %c0_0] : memref<40x48xf32, #tpu.memory_space<vmem>>, vector<40x48xf32>
    %cst = arith.constant dense<0xFF800000> : vector<48xf32>
    %1 = vector.multi_reduction <maximumf>, %0, %cst [0] : vector<40x48xf32> to vector<48xf32>
    %2 = vector.shape_cast %1 : vector<48xf32> to vector<1x48xf32>
    %cst_1 = arith.constant 9.99999996E-13 : f32
    %3 = vector.broadcast %cst_1 : f32 to vector<1x48xf32>
    %4 = arith.maximumf %2, %3 : vector<1x48xf32>
    %5 = tpu.reciprocal %4 {approx = true} : vector<1x48xf32> -> vector<1x48xf32>
    %6 = tpu.iota {dimensions = array<i32: 1>} : vector<40x48xi32>
    %c12_i32 = arith.constant 12 : i32
    %7 = vector.broadcast %c12_i32 : i32 to vector<40x48xi32>
    %8 = arith.cmpi slt, %6, %7 : vector<40x48xi32>
    %cst_2 = arith.constant 1.000000e+00 : f32
    %9 = vector.shape_cast %5 : vector<1x48xf32> to vector<1x48xf32>
    %10 = vector.broadcast %9 : vector<1x48xf32> to vector<40x48xf32>
    %11 = vector.broadcast %cst_2 : f32 to vector<40x48xf32>
    %12 = arith.select %8, %10, %11 : vector<40x48xi1>, vector<40x48xf32>
    %13 = arith.mulf %0, %12 : vector<40x48xf32>
    %c0_3 = arith.constant 0 : index
    %c0_4 = arith.constant 0 : index
    %14 = vector.load %arg1[%c0_3, %c0_4] : memref<40x40xf32, #tpu.memory_space<vmem>>, vector<40x40xf32>
    %15 = tpu.iota {dimensions = array<i32: 0>} : vector<40x40xi32>
    %16 = tpu.iota {dimensions = array<i32: 1>} : vector<40x40xi32>
    %17 = tpu.iota {dimensions = array<i32: 0>} : vector<2x40xi32>
    %18 = tpu.iota {dimensions = array<i32: 1>} : vector<2x40xi32>
    %c20_i32 = arith.constant 20 : i32
    %19 = vector.broadcast %c20_i32 : i32 to vector<2x40xi32>
    %20 = arith.muli %17, %19 : vector<2x40xi32>
    %21 = arith.cmpi sge, %18, %20 : vector<2x40xi32>
    %c1_i32 = arith.constant 1 : i32
    %22 = vector.broadcast %c1_i32 : i32 to vector<2x40xi32>
    %23 = arith.addi %17, %22 : vector<2x40xi32>
    %c20_i32_5 = arith.constant 20 : i32
    %24 = vector.broadcast %c20_i32_5 : i32 to vector<2x40xi32>
    %25 = arith.muli %23, %24 : vector<2x40xi32>
    %26 = arith.cmpi slt, %18, %25 : vector<2x40xi32>
    %27 = arith.andi %21, %26 : vector<2x40xi1>
    %cst_6 = arith.constant 1.000000e+00 : f32
    %cst_7 = arith.constant 0.000000e+00 : f32
    %28 = vector.broadcast %cst_6 : f32 to vector<2x40xf32>
    %29 = vector.broadcast %cst_7 : f32 to vector<2x40xf32>
    %30 = arith.select %27, %28, %29 : vector<2x40xi1>, vector<2x40xf32>
    %cst_8 = arith.constant 0.000000e+00 : f32
    %31 = vector.broadcast %cst_8 : f32 to vector<40x40xf32>
    %c0_i32 = arith.constant 0 : i32
    %32 = vector.broadcast %c0_i32 : i32 to vector<40x40xi32>
    %33 = arith.cmpi sge, %15, %32 : vector<40x40xi32>
    %c20_i32_9 = arith.constant 20 : i32
    %34 = vector.broadcast %c20_i32_9 : i32 to vector<40x40xi32>
    %35 = arith.cmpi slt, %15, %34 : vector<40x40xi32>
    %36 = arith.andi %33, %35 : vector<40x40xi1>
    %c0_i32_10 = arith.constant 0 : i32
    %37 = vector.broadcast %c0_i32_10 : i32 to vector<40x40xi32>
    %38 = arith.cmpi sge, %16, %37 : vector<40x40xi32>
    %c20_i32_11 = arith.constant 20 : i32
    %39 = vector.broadcast %c20_i32_11 : i32 to vector<40x40xi32>
    %40 = arith.cmpi slt, %16, %39 : vector<40x40xi32>
    %41 = arith.andi %38, %40 : vector<40x40xi1>
    %42 = arith.andi %36, %41 : vector<40x40xi1>
    %cst_12 = arith.constant 1.000000e+00 : f32
    %43 = vector.broadcast %cst_12 : f32 to vector<40x40xf32>
    %44 = arith.select %42, %43, %31 : vector<40x40xi1>, vector<40x40xf32>
    %c20_i32_13 = arith.constant 20 : i32
    %45 = vector.broadcast %c20_i32_13 : i32 to vector<40x40xi32>
    %46 = arith.cmpi sge, %15, %45 : vector<40x40xi32>
    %c40_i32 = arith.constant 40 : i32
    %47 = vector.broadcast %c40_i32 : i32 to vector<40x40xi32>
    %48 = arith.cmpi slt, %15, %47 : vector<40x40xi32>
    %49 = arith.andi %46, %48 : vector<40x40xi1>
    %c20_i32_14 = arith.constant 20 : i32
    %50 = vector.broadcast %c20_i32_14 : i32 to vector<40x40xi32>
    %51 = arith.cmpi sge, %16, %50 : vector<40x40xi32>
    %c40_i32_15 = arith.constant 40 : i32
    %52 = vector.broadcast %c40_i32_15 : i32 to vector<40x40xi32>
    %53 = arith.cmpi slt, %16, %52 : vector<40x40xi32>
    %54 = arith.andi %51, %53 : vector<40x40xi1>
    %55 = arith.andi %49, %54 : vector<40x40xi1>
    %cst_16 = arith.constant 1.000000e+00 : f32
    %56 = vector.broadcast %cst_16 : f32 to vector<40x40xf32>
    %57 = arith.select %55, %56, %44 : vector<40x40xi1>, vector<40x40xf32>
    %58 = tpu.iota {dimensions = array<i32: 0>} : vector<40x1xi32>
    %59 = tpu.iota {dimensions = array<i32: 0>} : vector<2x32xi32>
    %cst_17 = arith.constant 1.000000e+00 : f32
    %60 = vector.broadcast %cst_17 : f32 to vector<40x1xf32>
    %cst_18 = arith.constant 0.000000e+00 : f32
    %61 = vector.broadcast %cst_18 : f32 to vector<2x32xf32>
    %cst_19 = arith.constant 0.000000e+00 : f32
    %62 = vector.broadcast %cst_19 : f32 to vector<2x32xf32>
    %c0_20 = arith.constant 0 : index
    %c0_21 = arith.constant 0 : index
    %63 = vector.load %arg2[%c0_20, %c0_21] : memref<600x128xf32, #tpu.memory_space<vmem>>, vector<48x32xf32>
    %c48 = arith.constant 48 : index
    %c0_22 = arith.constant 0 : index
    %64 = vector.load %arg2[%c48, %c0_22] : memref<600x128xf32, #tpu.memory_space<vmem>>, vector<48x32xf32>
    %c96 = arith.constant 96 : index
    %c0_23 = arith.constant 0 : index
    %65 = vector.load %arg2[%c96, %c0_23] : memref<600x128xf32, #tpu.memory_space<vmem>>, vector<1x32xf32>
    %c104 = arith.constant 104 : index
    %c0_24 = arith.constant 0 : index
    %66 = vector.load %arg2[%c104, %c0_24] : memref<600x128xf32, #tpu.memory_space<vmem>>, vector<32x1xf32>
    %c136 = arith.constant 136 : index
    %c0_25 = arith.constant 0 : index
    %67 = vector.load %arg2[%c136, %c0_25] : memref<600x128xf32, #tpu.memory_space<vmem>>, vector<32x1xf32>
    %c168 = arith.constant 168 : index
    %c0_26 = arith.constant 0 : index
    %68 = vector.load %arg2[%c168, %c0_26] : memref<600x128xf32, #tpu.memory_space<vmem>>, vector<1x1xf32>
    %69 = tpu.transpose %60, [1, 0] : vector<40x1xf32> -> vector<1x40xf32>
    %70 = vector.broadcast %69 : vector<1x40xf32> to vector<40x40xf32>
    %71 = arith.mulf %14, %70 : vector<40x40xf32>
    %cst_27 = arith.constant dense<0.000000e+00> : vector<40xf32>
    %72 = vector.multi_reduction <add>, %71, %cst_27 [1] : vector<40x40xf32> to vector<40xf32>
    %73 = vector.shape_cast %72 : vector<40xf32> to vector<40x1xf32>
    %cst_28 = arith.constant dense<0.000000e+00> : vector<40x48xf32>
    %74 = tpu.matmul %71, %13, %cst_28 {dimension_numbers = #tpu.dot_dimension_numbers<[1], [0], [0], [1], [0, 0, 1, 1], [], []>} : vector<40x40xf32>, vector<40x48xf32>, vector<40x48xf32> -> vector<40x48xf32>
    %cst_29 = arith.constant 1.000000e+00 : f32
    %75 = vector.broadcast %cst_29 : f32 to vector<40x1xf32>
    %76 = arith.maximumf %73, %75 : vector<40x1xf32>
    %77 = vector.broadcast %76 : vector<40x1xf32> to vector<40x48xf32>
    %78 = arith.divf %74, %77 : vector<40x48xf32>
    %cst_30 = arith.constant dense<0.000000e+00> : vector<40x32xf32>
    %79 = tpu.matmul %78, %63, %cst_30 {dimension_numbers = #tpu.dot_dimension_numbers<[1], [0], [0], [1], [0, 0, 1, 1], [], []>} : vector<40x48xf32>, vector<48x32xf32>, vector<40x32xf32> -> vector<40x32xf32>
    %80 = vector.broadcast %65 : vector<1x32xf32> to vector<40x32xf32>
    %81 = arith.addf %79, %80 : vector<40x32xf32>
    %cst_31 = arith.constant dense<0.000000e+00> : vector<40x32xf32>
    %82 = tpu.matmul %13, %64, %cst_31 {dimension_numbers = #tpu.dot_dimension_numbers<[1], [0], [0], [1], [0, 0, 1, 1], [], []>} : vector<40x48xf32>, vector<48x32xf32>, vector<40x32xf32> -> vector<40x32xf32>
    %83 = arith.addf %81, %82 : vector<40x32xf32>
    %cst_32 = arith.constant 0.000000e+00 : f32
    %84 = vector.broadcast %cst_32 : f32 to vector<40x32xf32>
    %85 = arith.maximumf %83, %84 : vector<40x32xf32>
    %cst_33 = arith.constant dense<0.000000e+00> : vector<40x32xf32>
    %86 = tpu.matmul %71, %85, %cst_33 {dimension_numbers = #tpu.dot_dimension_numbers<[1], [0], [0], [1], [0, 0, 1, 1], [], []>} : vector<40x40xf32>, vector<40x32xf32>, vector<40x32xf32> -> vector<40x32xf32>
    %cst_34 = arith.constant dense<0.000000e+00> : vector<40x1xf32>
    %87 = tpu.matmul %86, %66, %cst_34 {dimension_numbers = #tpu.dot_dimension_numbers<[1], [0], [0], [1], [0, 0, 1, 1], [], []>} : vector<40x32xf32>, vector<32x1xf32>, vector<40x1xf32> -> vector<40x1xf32>
    %88 = vector.broadcast %68 : vector<1x1xf32> to vector<40x1xf32>
    %89 = arith.addf %87, %88 : vector<40x1xf32>
    %cst_35 = arith.constant dense<0.000000e+00> : vector<40x1xf32>
    %90 = tpu.matmul %85, %67, %cst_35 {dimension_numbers = #tpu.dot_dimension_numbers<[1], [0], [0], [1], [0, 0, 1, 1], [], []>} : vector<40x32xf32>, vector<32x1xf32>, vector<40x1xf32> -> vector<40x1xf32>
    %91 = arith.addf %89, %90 : vector<40x1xf32>
    %92 = tpu.transpose %91, [1, 0] : vector<40x1xf32> -> vector<1x40xf32>
    %93 = vector.broadcast %92 : vector<1x40xf32> to vector<40x40xf32>
    %94 = vector.broadcast %91 : vector<40x1xf32> to vector<40x40xf32>
    %95 = arith.cmpf ogt, %93, %94 : vector<40x40xf32>
    %96 = vector.broadcast %92 : vector<1x40xf32> to vector<40x40xf32>
    %97 = vector.broadcast %91 : vector<40x1xf32> to vector<40x40xf32>
    %98 = arith.cmpf oeq, %96, %97 : vector<40x40xf32>
    %99 = arith.cmpi slt, %16, %15 : vector<40x40xi32>
    %100 = arith.andi %98, %99 : vector<40x40xi1>
    %101 = arith.ori %95, %100 : vector<40x40xi1>
    %cst_36 = arith.constant 5.000000e-01 : f32
    %102 = vector.broadcast %cst_36 : f32 to vector<40x40xf32>
    %103 = arith.cmpf ogt, %57, %102 : vector<40x40xf32>
    %cst_37 = arith.constant 5.000000e-01 : f32
    %104 = vector.broadcast %cst_37 : f32 to vector<1x40xf32>
    %105 = arith.cmpf ogt, %69, %104 : vector<1x40xf32>
    %106 = vector.broadcast %105 : vector<1x40xi1> to vector<40x40xi1>
    %107 = arith.andi %103, %106 : vector<40x40xi1>
    %108 = arith.andi %101, %107 : vector<40x40xi1>
    %cst_38 = arith.constant 1.000000e+00 : f32
    %cst_39 = arith.constant 0.000000e+00 : f32
    %109 = vector.broadcast %cst_38 : f32 to vector<40x40xf32>
    %110 = vector.broadcast %cst_39 : f32 to vector<40x40xf32>
    %111 = arith.select %108, %109, %110 : vector<40x40xi1>, vector<40x40xf32>
    %cst_40 = arith.constant dense<0.000000e+00> : vector<40xf32>
    %112 = vector.multi_reduction <add>, %111, %cst_40 [1] : vector<40x40xf32> to vector<40xf32>
    %113 = vector.shape_cast %112 : vector<40xf32> to vector<40x1xf32>
    %cst_41 = arith.constant 5.000000e-01 : f32
    %114 = vector.broadcast %cst_41 : f32 to vector<40x1xf32>
    %115 = arith.cmpf ogt, %60, %114 : vector<40x1xf32>
    %cst_42 = arith.constant 4.000000e+00 : f32
    %116 = vector.broadcast %cst_42 : f32 to vector<40x1xf32>
    %117 = arith.cmpf olt, %113, %116 : vector<40x1xf32>
    %118 = arith.andi %115, %117 : vector<40x1xi1>
    %cst_43 = arith.constant 1.000000e+00 : f32
    %cst_44 = arith.constant 0.000000e+00 : f32
    %119 = vector.broadcast %cst_43 : f32 to vector<40x1xf32>
    %120 = vector.broadcast %cst_44 : f32 to vector<40x1xf32>
    %121 = arith.select %118, %119, %120 : vector<40x1xi1>, vector<40x1xf32>
    %122 = tpu.transpose %121, [1, 0] : vector<40x1xf32> -> vector<1x40xf32>
    %123 = math.tanh %91 : vector<40x1xf32>
    %124 = vector.broadcast %123 : vector<40x1xf32> to vector<40x32xf32>
    %125 = arith.mulf %85, %124 : vector<40x32xf32>
    %126 = vector.broadcast %121 : vector<40x1xf32> to vector<40x32xf32>
    %127 = arith.mulf %125, %126 : vector<40x32xf32>
    %128 = vector.broadcast %122 : vector<1x40xf32> to vector<2x40xf32>
    %129 = arith.mulf %30, %128 : vector<2x40xf32>
    %cst_45 = arith.constant dense<0.000000e+00> : vector<2xf32>
    %130 = vector.multi_reduction <add>, %129, %cst_45 [1] : vector<2x40xf32> to vector<2xf32>
    %131 = vector.shape_cast %130 : vector<2xf32> to vector<2x1xf32>
    %cst_46 = arith.constant 1.000000e+00 : f32
    %132 = vector.broadcast %cst_46 : f32 to vector<2x1xf32>
    %133 = arith.maximumf %131, %132 : vector<2x1xf32>
    %cst_47 = arith.constant dense<0.000000e+00> : vector<2x32xf32>
    %134 = tpu.matmul %129, %127, %cst_47 {dimension_numbers = #tpu.dot_dimension_numbers<[1], [0], [0], [1], [0, 0, 1, 1], [], []>} : vector<2x40xf32>, vector<40x32xf32>, vector<2x32xf32> -> vector<2x32xf32>
    %135 = vector.broadcast %133 : vector<2x1xf32> to vector<2x32xf32>
    %136 = arith.divf %134, %135 : vector<2x32xf32>
    %cst_48 = arith.constant 0.000000e+00 : f32
    %137 = vector.broadcast %cst_48 : f32 to vector<2x32xf32>
    %c0_i32_49 = arith.constant 0 : i32
    %138 = vector.broadcast %c0_i32_49 : i32 to vector<40x1xi32>
    %139 = arith.cmpi sge, %58, %138 : vector<40x1xi32>
    %c20_i32_50 = arith.constant 20 : i32
    %140 = vector.broadcast %c20_i32_50 : i32 to vector<40x1xi32>
    %141 = arith.cmpi slt, %58, %140 : vector<40x1xi32>
    %142 = arith.andi %139, %141 : vector<40x1xi1>
    %cst_51 = arith.constant 5.000000e-01 : f32
    %143 = vector.broadcast %cst_51 : f32 to vector<40x1xf32>
    %144 = arith.cmpf ogt, %121, %143 : vector<40x1xf32>
    %145 = arith.andi %142, %144 : vector<40x1xi1>
    %cst_52 = arith.constant -1.000000e+30 : f32
    %146 = vector.shape_cast %145 : vector<40x1xi1> to vector<40x1xi1>
    %147 = vector.broadcast %146 : vector<40x1xi1> to vector<40x32xi1>
    %148 = vector.broadcast %cst_52 : f32 to vector<40x32xf32>
    %149 = arith.select %147, %127, %148 : vector<40x32xi1>, vector<40x32xf32>
    %cst_53 = arith.constant dense<0xFF800000> : vector<32xf32>
    %150 = vector.multi_reduction <maximumf>, %149, %cst_53 [0] : vector<40x32xf32> to vector<32xf32>
    %151 = vector.shape_cast %150 : vector<32xf32> to vector<1x32xf32>
    %c0_i32_54 = arith.constant 0 : i32
    %152 = vector.broadcast %c0_i32_54 : i32 to vector<2x32xi32>
    %153 = arith.cmpi eq, %59, %152 : vector<2x32xi32>
    %154 = vector.shape_cast %151 : vector<1x32xf32> to vector<1x32xf32>
    %155 = vector.broadcast %154 : vector<1x32xf32> to vector<2x32xf32>
    %156 = arith.select %153, %155, %137 : vector<2x32xi1>, vector<2x32xf32>
    %c20_i32_55 = arith.constant 20 : i32
    %157 = vector.broadcast %c20_i32_55 : i32 to vector<40x1xi32>
    %158 = arith.cmpi sge, %58, %157 : vector<40x1xi32>
    %c40_i32_56 = arith.constant 40 : i32
    %159 = vector.broadcast %c40_i32_56 : i32 to vector<40x1xi32>
    %160 = arith.cmpi slt, %58, %159 : vector<40x1xi32>
    %161 = arith.andi %158, %160 : vector<40x1xi1>
    %cst_57 = arith.constant 5.000000e-01 : f32
    %162 = vector.broadcast %cst_57 : f32 to vector<40x1xf32>
    %163 = arith.cmpf ogt, %121, %162 : vector<40x1xf32>
    %164 = arith.andi %161, %163 : vector<40x1xi1>
    %cst_58 = arith.constant -1.000000e+30 : f32
    %165 = vector.shape_cast %164 : vector<40x1xi1> to vector<40x1xi1>
    %166 = vector.broadcast %165 : vector<40x1xi1> to vector<40x32xi1>
    %167 = vector.broadcast %cst_58 : f32 to vector<40x32xf32>
    %168 = arith.select %166, %127, %167 : vector<40x32xi1>, vector<40x32xf32>
    %cst_59 = arith.constant dense<0xFF800000> : vector<32xf32>
    %169 = vector.multi_reduction <maximumf>, %168, %cst_59 [0] : vector<40x32xf32> to vector<32xf32>
    %170 = vector.shape_cast %169 : vector<32xf32> to vector<1x32xf32>
    %c1_i32_60 = arith.constant 1 : i32
    %171 = vector.broadcast %c1_i32_60 : i32 to vector<2x32xi32>
    %172 = arith.cmpi eq, %59, %171 : vector<2x32xi32>
    %173 = vector.shape_cast %170 : vector<1x32xf32> to vector<1x32xf32>
    %174 = vector.broadcast %173 : vector<1x32xf32> to vector<2x32xf32>
    %175 = arith.select %172, %174, %156 : vector<2x32xi1>, vector<2x32xf32>
    %176 = arith.addf %61, %175 : vector<2x32xf32>
    %177 = arith.addf %62, %136 : vector<2x32xf32>
    %c176 = arith.constant 176 : index
    %c0_61 = arith.constant 0 : index
    %178 = vector.load %arg2[%c176, %c0_61] : memref<600x128xf32, #tpu.memory_space<vmem>>, vector<32x32xf32>
    %c208 = arith.constant 208 : index
    %c0_62 = arith.constant 0 : index
    %179 = vector.load %arg2[%c208, %c0_62] : memref<600x128xf32, #tpu.memory_space<vmem>>, vector<32x32xf32>
    %c240 = arith.constant 240 : index
    %c0_63 = arith.constant 0 : index
    %180 = vector.load %arg2[%c240, %c0_63] : memref<600x128xf32, #tpu.memory_space<vmem>>, vector<1x32xf32>
    %c248 = arith.constant 248 : index
    %c0_64 = arith.constant 0 : index
    %181 = vector.load %arg2[%c248, %c0_64] : memref<600x128xf32, #tpu.memory_space<vmem>>, vector<32x1xf32>
    %c280 = arith.constant 280 : index
    %c0_65 = arith.constant 0 : index
    %182 = vector.load %arg2[%c280, %c0_65] : memref<600x128xf32, #tpu.memory_space<vmem>>, vector<32x1xf32>
    %c312 = arith.constant 312 : index
    %c0_66 = arith.constant 0 : index
    %183 = vector.load %arg2[%c312, %c0_66] : memref<600x128xf32, #tpu.memory_space<vmem>>, vector<1x1xf32>
    %184 = tpu.transpose %121, [1, 0] : vector<40x1xf32> -> vector<1x40xf32>
    %185 = vector.broadcast %184 : vector<1x40xf32> to vector<40x40xf32>
    %186 = arith.mulf %14, %185 : vector<40x40xf32>
    %cst_67 = arith.constant dense<0.000000e+00> : vector<40xf32>
    %187 = vector.multi_reduction <add>, %186, %cst_67 [1] : vector<40x40xf32> to vector<40xf32>
    %188 = vector.shape_cast %187 : vector<40xf32> to vector<40x1xf32>
    %cst_68 = arith.constant dense<0.000000e+00> : vector<40x32xf32>
    %189 = tpu.matmul %186, %127, %cst_68 {dimension_numbers = #tpu.dot_dimension_numbers<[1], [0], [0], [1], [0, 0, 1, 1], [], []>} : vector<40x40xf32>, vector<40x32xf32>, vector<40x32xf32> -> vector<40x32xf32>
    %cst_69 = arith.constant 1.000000e+00 : f32
    %190 = vector.broadcast %cst_69 : f32 to vector<40x1xf32>
    %191 = arith.maximumf %188, %190 : vector<40x1xf32>
    %192 = vector.broadcast %191 : vector<40x1xf32> to vector<40x32xf32>
    %193 = arith.divf %189, %192 : vector<40x32xf32>
    %cst_70 = arith.constant dense<0.000000e+00> : vector<40x32xf32>
    %194 = tpu.matmul %193, %178, %cst_70 {dimension_numbers = #tpu.dot_dimension_numbers<[1], [0], [0], [1], [0, 0, 1, 1], [], []>} : vector<40x32xf32>, vector<32x32xf32>, vector<40x32xf32> -> vector<40x32xf32>
    %195 = vector.broadcast %180 : vector<1x32xf32> to vector<40x32xf32>
    %196 = arith.addf %194, %195 : vector<40x32xf32>
    %cst_71 = arith.constant dense<0.000000e+00> : vector<40x32xf32>
    %197 = tpu.matmul %127, %179, %cst_71 {dimension_numbers = #tpu.dot_dimension_numbers<[1], [0], [0], [1], [0, 0, 1, 1], [], []>} : vector<40x32xf32>, vector<32x32xf32>, vector<40x32xf32> -> vector<40x32xf32>
    %198 = arith.addf %196, %197 : vector<40x32xf32>
    %cst_72 = arith.constant 0.000000e+00 : f32
    %199 = vector.broadcast %cst_72 : f32 to vector<40x32xf32>
    %200 = arith.maximumf %198, %199 : vector<40x32xf32>
    %cst_73 = arith.constant dense<0.000000e+00> : vector<40x32xf32>
    %201 = tpu.matmul %186, %200, %cst_73 {dimension_numbers = #tpu.dot_dimension_numbers<[1], [0], [0], [1], [0, 0, 1, 1], [], []>} : vector<40x40xf32>, vector<40x32xf32>, vector<40x32xf32> -> vector<40x32xf32>
    %cst_74 = arith.constant dense<0.000000e+00> : vector<40x1xf32>
    %202 = tpu.matmul %201, %181, %cst_74 {dimension_numbers = #tpu.dot_dimension_numbers<[1], [0], [0], [1], [0, 0, 1, 1], [], []>} : vector<40x32xf32>, vector<32x1xf32>, vector<40x1xf32> -> vector<40x1xf32>
    %203 = vector.broadcast %183 : vector<1x1xf32> to vector<40x1xf32>
    %204 = arith.addf %202, %203 : vector<40x1xf32>
    %cst_75 = arith.constant dense<0.000000e+00> : vector<40x1xf32>
    %205 = tpu.matmul %200, %182, %cst_75 {dimension_numbers = #tpu.dot_dimension_numbers<[1], [0], [0], [1], [0, 0, 1, 1], [], []>} : vector<40x32xf32>, vector<32x1xf32>, vector<40x1xf32> -> vector<40x1xf32>
    %206 = arith.addf %204, %205 : vector<40x1xf32>
    %207 = tpu.transpose %206, [1, 0] : vector<40x1xf32> -> vector<1x40xf32>
    %208 = vector.broadcast %207 : vector<1x40xf32> to vector<40x40xf32>
    %209 = vector.broadcast %206 : vector<40x1xf32> to vector<40x40xf32>
    %210 = arith.cmpf ogt, %208, %209 : vector<40x40xf32>
    %211 = vector.broadcast %207 : vector<1x40xf32> to vector<40x40xf32>
    %212 = vector.broadcast %206 : vector<40x1xf32> to vector<40x40xf32>
    %213 = arith.cmpf oeq, %211, %212 : vector<40x40xf32>
    %214 = arith.cmpi slt, %16, %15 : vector<40x40xi32>
    %215 = arith.andi %213, %214 : vector<40x40xi1>
    %216 = arith.ori %210, %215 : vector<40x40xi1>
    %cst_76 = arith.constant 5.000000e-01 : f32
    %217 = vector.broadcast %cst_76 : f32 to vector<40x40xf32>
    %218 = arith.cmpf ogt, %57, %217 : vector<40x40xf32>
    %cst_77 = arith.constant 5.000000e-01 : f32
    %219 = vector.broadcast %cst_77 : f32 to vector<1x40xf32>
    %220 = arith.cmpf ogt, %184, %219 : vector<1x40xf32>
    %221 = vector.broadcast %220 : vector<1x40xi1> to vector<40x40xi1>
    %222 = arith.andi %218, %221 : vector<40x40xi1>
    %223 = arith.andi %216, %222 : vector<40x40xi1>
    %cst_78 = arith.constant 1.000000e+00 : f32
    %cst_79 = arith.constant 0.000000e+00 : f32
    %224 = vector.broadcast %cst_78 : f32 to vector<40x40xf32>
    %225 = vector.broadcast %cst_79 : f32 to vector<40x40xf32>
    %226 = arith.select %223, %224, %225 : vector<40x40xi1>, vector<40x40xf32>
    %cst_80 = arith.constant dense<0.000000e+00> : vector<40xf32>
    %227 = vector.multi_reduction <add>, %226, %cst_80 [1] : vector<40x40xf32> to vector<40xf32>
    %228 = vector.shape_cast %227 : vector<40xf32> to vector<40x1xf32>
    %cst_81 = arith.constant 5.000000e-01 : f32
    %229 = vector.broadcast %cst_81 : f32 to vector<40x1xf32>
    %230 = arith.cmpf ogt, %121, %229 : vector<40x1xf32>
    %cst_82 = arith.constant 1.000000e+00 : f32
    %231 = vector.broadcast %cst_82 : f32 to vector<40x1xf32>
    %232 = arith.cmpf olt, %228, %231 : vector<40x1xf32>
    %233 = arith.andi %230, %232 : vector<40x1xi1>
    %cst_83 = arith.constant 1.000000e+00 : f32
    %cst_84 = arith.constant 0.000000e+00 : f32
    %234 = vector.broadcast %cst_83 : f32 to vector<40x1xf32>
    %235 = vector.broadcast %cst_84 : f32 to vector<40x1xf32>
    %236 = arith.select %233, %234, %235 : vector<40x1xi1>, vector<40x1xf32>
    %237 = tpu.transpose %236, [1, 0] : vector<40x1xf32> -> vector<1x40xf32>
    %238 = math.tanh %206 : vector<40x1xf32>
    %239 = vector.broadcast %238 : vector<40x1xf32> to vector<40x32xf32>
    %240 = arith.mulf %200, %239 : vector<40x32xf32>
    %241 = vector.broadcast %236 : vector<40x1xf32> to vector<40x32xf32>
    %242 = arith.mulf %240, %241 : vector<40x32xf32>
    %243 = vector.broadcast %237 : vector<1x40xf32> to vector<2x40xf32>
    %244 = arith.mulf %30, %243 : vector<2x40xf32>
    %cst_85 = arith.constant dense<0.000000e+00> : vector<2xf32>
    %245 = vector.multi_reduction <add>, %244, %cst_85 [1] : vector<2x40xf32> to vector<2xf32>
    %246 = vector.shape_cast %245 : vector<2xf32> to vector<2x1xf32>
    %cst_86 = arith.constant 1.000000e+00 : f32
    %247 = vector.broadcast %cst_86 : f32 to vector<2x1xf32>
    %248 = arith.maximumf %246, %247 : vector<2x1xf32>
    %cst_87 = arith.constant dense<0.000000e+00> : vector<2x32xf32>
    %249 = tpu.matmul %244, %242, %cst_87 {dimension_numbers = #tpu.dot_dimension_numbers<[1], [0], [0], [1], [0, 0, 1, 1], [], []>} : vector<2x40xf32>, vector<40x32xf32>, vector<2x32xf32> -> vector<2x32xf32>
    %250 = vector.broadcast %248 : vector<2x1xf32> to vector<2x32xf32>
    %251 = arith.divf %249, %250 : vector<2x32xf32>
    %cst_88 = arith.constant 0.000000e+00 : f32
    %252 = vector.broadcast %cst_88 : f32 to vector<2x32xf32>
    %c0_i32_89 = arith.constant 0 : i32
    %253 = vector.broadcast %c0_i32_89 : i32 to vector<40x1xi32>
    %254 = arith.cmpi sge, %58, %253 : vector<40x1xi32>
    %c20_i32_90 = arith.constant 20 : i32
    %255 = vector.broadcast %c20_i32_90 : i32 to vector<40x1xi32>
    %256 = arith.cmpi slt, %58, %255 : vector<40x1xi32>
    %257 = arith.andi %254, %256 : vector<40x1xi1>
    %cst_91 = arith.constant 5.000000e-01 : f32
    %258 = vector.broadcast %cst_91 : f32 to vector<40x1xf32>
    %259 = arith.cmpf ogt, %236, %258 : vector<40x1xf32>
    %260 = arith.andi %257, %259 : vector<40x1xi1>
    %cst_92 = arith.constant -1.000000e+30 : f32
    %261 = vector.shape_cast %260 : vector<40x1xi1> to vector<40x1xi1>
    %262 = vector.broadcast %261 : vector<40x1xi1> to vector<40x32xi1>
    %263 = vector.broadcast %cst_92 : f32 to vector<40x32xf32>
    %264 = arith.select %262, %242, %263 : vector<40x32xi1>, vector<40x32xf32>
    %cst_93 = arith.constant dense<0xFF800000> : vector<32xf32>
    %265 = vector.multi_reduction <maximumf>, %264, %cst_93 [0] : vector<40x32xf32> to vector<32xf32>
    %266 = vector.shape_cast %265 : vector<32xf32> to vector<1x32xf32>
    %c0_i32_94 = arith.constant 0 : i32
    %267 = vector.broadcast %c0_i32_94 : i32 to vector<2x32xi32>
    %268 = arith.cmpi eq, %59, %267 : vector<2x32xi32>
    %269 = vector.shape_cast %266 : vector<1x32xf32> to vector<1x32xf32>
    %270 = vector.broadcast %269 : vector<1x32xf32> to vector<2x32xf32>
    %271 = arith.select %268, %270, %252 : vector<2x32xi1>, vector<2x32xf32>
    %c20_i32_95 = arith.constant 20 : i32
    %272 = vector.broadcast %c20_i32_95 : i32 to vector<40x1xi32>
    %273 = arith.cmpi sge, %58, %272 : vector<40x1xi32>
    %c40_i32_96 = arith.constant 40 : i32
    %274 = vector.broadcast %c40_i32_96 : i32 to vector<40x1xi32>
    %275 = arith.cmpi slt, %58, %274 : vector<40x1xi32>
    %276 = arith.andi %273, %275 : vector<40x1xi1>
    %cst_97 = arith.constant 5.000000e-01 : f32
    %277 = vector.broadcast %cst_97 : f32 to vector<40x1xf32>
    %278 = arith.cmpf ogt, %236, %277 : vector<40x1xf32>
    %279 = arith.andi %276, %278 : vector<40x1xi1>
    %cst_98 = arith.constant -1.000000e+30 : f32
    %280 = vector.shape_cast %279 : vector<40x1xi1> to vector<40x1xi1>
    %281 = vector.broadcast %280 : vector<40x1xi1> to vector<40x32xi1>
    %282 = vector.broadcast %cst_98 : f32 to vector<40x32xf32>
    %283 = arith.select %281, %242, %282 : vector<40x32xi1>, vector<40x32xf32>
    %cst_99 = arith.constant dense<0xFF800000> : vector<32xf32>
    %284 = vector.multi_reduction <maximumf>, %283, %cst_99 [0] : vector<40x32xf32> to vector<32xf32>
    %285 = vector.shape_cast %284 : vector<32xf32> to vector<1x32xf32>
    %c1_i32_100 = arith.constant 1 : i32
    %286 = vector.broadcast %c1_i32_100 : i32 to vector<2x32xi32>
    %287 = arith.cmpi eq, %59, %286 : vector<2x32xi32>
    %288 = vector.shape_cast %285 : vector<1x32xf32> to vector<1x32xf32>
    %289 = vector.broadcast %288 : vector<1x32xf32> to vector<2x32xf32>
    %290 = arith.select %287, %289, %271 : vector<2x32xi1>, vector<2x32xf32>
    %291 = arith.addf %176, %290 : vector<2x32xf32>
    %292 = arith.addf %177, %251 : vector<2x32xf32>
    %c320 = arith.constant 320 : index
    %c0_101 = arith.constant 0 : index
    %293 = vector.load %arg2[%c320, %c0_101] : memref<600x128xf32, #tpu.memory_space<vmem>>, vector<32x32xf32>
    %c352 = arith.constant 352 : index
    %c0_102 = arith.constant 0 : index
    %294 = vector.load %arg2[%c352, %c0_102] : memref<600x128xf32, #tpu.memory_space<vmem>>, vector<32x32xf32>
    %c384 = arith.constant 384 : index
    %c0_103 = arith.constant 0 : index
    %295 = vector.load %arg2[%c384, %c0_103] : memref<600x128xf32, #tpu.memory_space<vmem>>, vector<1x32xf32>
    %c392 = arith.constant 392 : index
    %c0_104 = arith.constant 0 : index
    %296 = vector.load %arg2[%c392, %c0_104] : memref<600x128xf32, #tpu.memory_space<vmem>>, vector<32x1xf32>
    %c424 = arith.constant 424 : index
    %c0_105 = arith.constant 0 : index
    %297 = vector.load %arg2[%c424, %c0_105] : memref<600x128xf32, #tpu.memory_space<vmem>>, vector<32x1xf32>
    %c456 = arith.constant 456 : index
    %c0_106 = arith.constant 0 : index
    %298 = vector.load %arg2[%c456, %c0_106] : memref<600x128xf32, #tpu.memory_space<vmem>>, vector<1x1xf32>
    %299 = tpu.transpose %236, [1, 0] : vector<40x1xf32> -> vector<1x40xf32>
    %300 = vector.broadcast %299 : vector<1x40xf32> to vector<40x40xf32>
    %301 = arith.mulf %14, %300 : vector<40x40xf32>
    %cst_107 = arith.constant dense<0.000000e+00> : vector<40xf32>
    %302 = vector.multi_reduction <add>, %301, %cst_107 [1] : vector<40x40xf32> to vector<40xf32>
    %303 = vector.shape_cast %302 : vector<40xf32> to vector<40x1xf32>
    %cst_108 = arith.constant dense<0.000000e+00> : vector<40x32xf32>
    %304 = tpu.matmul %301, %242, %cst_108 {dimension_numbers = #tpu.dot_dimension_numbers<[1], [0], [0], [1], [0, 0, 1, 1], [], []>} : vector<40x40xf32>, vector<40x32xf32>, vector<40x32xf32> -> vector<40x32xf32>
    %cst_109 = arith.constant 1.000000e+00 : f32
    %305 = vector.broadcast %cst_109 : f32 to vector<40x1xf32>
    %306 = arith.maximumf %303, %305 : vector<40x1xf32>
    %307 = vector.broadcast %306 : vector<40x1xf32> to vector<40x32xf32>
    %308 = arith.divf %304, %307 : vector<40x32xf32>
    %cst_110 = arith.constant dense<0.000000e+00> : vector<40x32xf32>
    %309 = tpu.matmul %308, %293, %cst_110 {dimension_numbers = #tpu.dot_dimension_numbers<[1], [0], [0], [1], [0, 0, 1, 1], [], []>} : vector<40x32xf32>, vector<32x32xf32>, vector<40x32xf32> -> vector<40x32xf32>
    %310 = vector.broadcast %295 : vector<1x32xf32> to vector<40x32xf32>
    %311 = arith.addf %309, %310 : vector<40x32xf32>
    %cst_111 = arith.constant dense<0.000000e+00> : vector<40x32xf32>
    %312 = tpu.matmul %242, %294, %cst_111 {dimension_numbers = #tpu.dot_dimension_numbers<[1], [0], [0], [1], [0, 0, 1, 1], [], []>} : vector<40x32xf32>, vector<32x32xf32>, vector<40x32xf32> -> vector<40x32xf32>
    %313 = arith.addf %311, %312 : vector<40x32xf32>
    %cst_112 = arith.constant 0.000000e+00 : f32
    %314 = vector.broadcast %cst_112 : f32 to vector<40x32xf32>
    %315 = arith.maximumf %313, %314 : vector<40x32xf32>
    %cst_113 = arith.constant dense<0.000000e+00> : vector<40x32xf32>
    %316 = tpu.matmul %301, %315, %cst_113 {dimension_numbers = #tpu.dot_dimension_numbers<[1], [0], [0], [1], [0, 0, 1, 1], [], []>} : vector<40x40xf32>, vector<40x32xf32>, vector<40x32xf32> -> vector<40x32xf32>
    %cst_114 = arith.constant dense<0.000000e+00> : vector<40x1xf32>
    %317 = tpu.matmul %316, %296, %cst_114 {dimension_numbers = #tpu.dot_dimension_numbers<[1], [0], [0], [1], [0, 0, 1, 1], [], []>} : vector<40x32xf32>, vector<32x1xf32>, vector<40x1xf32> -> vector<40x1xf32>
    %318 = vector.broadcast %298 : vector<1x1xf32> to vector<40x1xf32>
    %319 = arith.addf %317, %318 : vector<40x1xf32>
    %cst_115 = arith.constant dense<0.000000e+00> : vector<40x1xf32>
    %320 = tpu.matmul %315, %297, %cst_115 {dimension_numbers = #tpu.dot_dimension_numbers<[1], [0], [0], [1], [0, 0, 1, 1], [], []>} : vector<40x32xf32>, vector<32x1xf32>, vector<40x1xf32> -> vector<40x1xf32>
    %321 = arith.addf %319, %320 : vector<40x1xf32>
    %322 = tpu.transpose %321, [1, 0] : vector<40x1xf32> -> vector<1x40xf32>
    %323 = vector.broadcast %322 : vector<1x40xf32> to vector<40x40xf32>
    %324 = vector.broadcast %321 : vector<40x1xf32> to vector<40x40xf32>
    %325 = arith.cmpf ogt, %323, %324 : vector<40x40xf32>
    %326 = vector.broadcast %322 : vector<1x40xf32> to vector<40x40xf32>
    %327 = vector.broadcast %321 : vector<40x1xf32> to vector<40x40xf32>
    %328 = arith.cmpf oeq, %326, %327 : vector<40x40xf32>
    %329 = arith.cmpi slt, %16, %15 : vector<40x40xi32>
    %330 = arith.andi %328, %329 : vector<40x40xi1>
    %331 = arith.ori %325, %330 : vector<40x40xi1>
    %cst_116 = arith.constant 5.000000e-01 : f32
    %332 = vector.broadcast %cst_116 : f32 to vector<40x40xf32>
    %333 = arith.cmpf ogt, %57, %332 : vector<40x40xf32>
    %cst_117 = arith.constant 5.000000e-01 : f32
    %334 = vector.broadcast %cst_117 : f32 to vector<1x40xf32>
    %335 = arith.cmpf ogt, %299, %334 : vector<1x40xf32>
    %336 = vector.broadcast %335 : vector<1x40xi1> to vector<40x40xi1>
    %337 = arith.andi %333, %336 : vector<40x40xi1>
    %338 = arith.andi %331, %337 : vector<40x40xi1>
    %cst_118 = arith.constant 1.000000e+00 : f32
    %cst_119 = arith.constant 0.000000e+00 : f32
    %339 = vector.broadcast %cst_118 : f32 to vector<40x40xf32>
    %340 = vector.broadcast %cst_119 : f32 to vector<40x40xf32>
    %341 = arith.select %338, %339, %340 : vector<40x40xi1>, vector<40x40xf32>
    %cst_120 = arith.constant dense<0.000000e+00> : vector<40xf32>
    %342 = vector.multi_reduction <add>, %341, %cst_120 [1] : vector<40x40xf32> to vector<40xf32>
    %343 = vector.shape_cast %342 : vector<40xf32> to vector<40x1xf32>
    %cst_121 = arith.constant 5.000000e-01 : f32
    %344 = vector.broadcast %cst_121 : f32 to vector<40x1xf32>
    %345 = arith.cmpf ogt, %236, %344 : vector<40x1xf32>
    %cst_122 = arith.constant 1.000000e+00 : f32
    %346 = vector.broadcast %cst_122 : f32 to vector<40x1xf32>
    %347 = arith.cmpf olt, %343, %346 : vector<40x1xf32>
    %348 = arith.andi %345, %347 : vector<40x1xi1>
    %cst_123 = arith.constant 1.000000e+00 : f32
    %cst_124 = arith.constant 0.000000e+00 : f32
    %349 = vector.broadcast %cst_123 : f32 to vector<40x1xf32>
    %350 = vector.broadcast %cst_124 : f32 to vector<40x1xf32>
    %351 = arith.select %348, %349, %350 : vector<40x1xi1>, vector<40x1xf32>
    %352 = tpu.transpose %351, [1, 0] : vector<40x1xf32> -> vector<1x40xf32>
    %353 = math.tanh %321 : vector<40x1xf32>
    %354 = vector.broadcast %353 : vector<40x1xf32> to vector<40x32xf32>
    %355 = arith.mulf %315, %354 : vector<40x32xf32>
    %356 = vector.broadcast %351 : vector<40x1xf32> to vector<40x32xf32>
    %357 = arith.mulf %355, %356 : vector<40x32xf32>
    %358 = vector.broadcast %352 : vector<1x40xf32> to vector<2x40xf32>
    %359 = arith.mulf %30, %358 : vector<2x40xf32>
    %cst_125 = arith.constant dense<0.000000e+00> : vector<2xf32>
    %360 = vector.multi_reduction <add>, %359, %cst_125 [1] : vector<2x40xf32> to vector<2xf32>
    %361 = vector.shape_cast %360 : vector<2xf32> to vector<2x1xf32>
    %cst_126 = arith.constant 1.000000e+00 : f32
    %362 = vector.broadcast %cst_126 : f32 to vector<2x1xf32>
    %363 = arith.maximumf %361, %362 : vector<2x1xf32>
    %cst_127 = arith.constant dense<0.000000e+00> : vector<2x32xf32>
    %364 = tpu.matmul %359, %357, %cst_127 {dimension_numbers = #tpu.dot_dimension_numbers<[1], [0], [0], [1], [0, 0, 1, 1], [], []>} : vector<2x40xf32>, vector<40x32xf32>, vector<2x32xf32> -> vector<2x32xf32>
    %365 = vector.broadcast %363 : vector<2x1xf32> to vector<2x32xf32>
    %366 = arith.divf %364, %365 : vector<2x32xf32>
    %cst_128 = arith.constant 0.000000e+00 : f32
    %367 = vector.broadcast %cst_128 : f32 to vector<2x32xf32>
    %c0_i32_129 = arith.constant 0 : i32
    %368 = vector.broadcast %c0_i32_129 : i32 to vector<40x1xi32>
    %369 = arith.cmpi sge, %58, %368 : vector<40x1xi32>
    %c20_i32_130 = arith.constant 20 : i32
    %370 = vector.broadcast %c20_i32_130 : i32 to vector<40x1xi32>
    %371 = arith.cmpi slt, %58, %370 : vector<40x1xi32>
    %372 = arith.andi %369, %371 : vector<40x1xi1>
    %cst_131 = arith.constant 5.000000e-01 : f32
    %373 = vector.broadcast %cst_131 : f32 to vector<40x1xf32>
    %374 = arith.cmpf ogt, %351, %373 : vector<40x1xf32>
    %375 = arith.andi %372, %374 : vector<40x1xi1>
    %cst_132 = arith.constant -1.000000e+30 : f32
    %376 = vector.shape_cast %375 : vector<40x1xi1> to vector<40x1xi1>
    %377 = vector.broadcast %376 : vector<40x1xi1> to vector<40x32xi1>
    %378 = vector.broadcast %cst_132 : f32 to vector<40x32xf32>
    %379 = arith.select %377, %357, %378 : vector<40x32xi1>, vector<40x32xf32>
    %cst_133 = arith.constant dense<0xFF800000> : vector<32xf32>
    %380 = vector.multi_reduction <maximumf>, %379, %cst_133 [0] : vector<40x32xf32> to vector<32xf32>
    %381 = vector.shape_cast %380 : vector<32xf32> to vector<1x32xf32>
    %c0_i32_134 = arith.constant 0 : i32
    %382 = vector.broadcast %c0_i32_134 : i32 to vector<2x32xi32>
    %383 = arith.cmpi eq, %59, %382 : vector<2x32xi32>
    %384 = vector.shape_cast %381 : vector<1x32xf32> to vector<1x32xf32>
    %385 = vector.broadcast %384 : vector<1x32xf32> to vector<2x32xf32>
    %386 = arith.select %383, %385, %367 : vector<2x32xi1>, vector<2x32xf32>
    %c20_i32_135 = arith.constant 20 : i32
    %387 = vector.broadcast %c20_i32_135 : i32 to vector<40x1xi32>
    %388 = arith.cmpi sge, %58, %387 : vector<40x1xi32>
    %c40_i32_136 = arith.constant 40 : i32
    %389 = vector.broadcast %c40_i32_136 : i32 to vector<40x1xi32>
    %390 = arith.cmpi slt, %58, %389 : vector<40x1xi32>
    %391 = arith.andi %388, %390 : vector<40x1xi1>
    %cst_137 = arith.constant 5.000000e-01 : f32
    %392 = vector.broadcast %cst_137 : f32 to vector<40x1xf32>
    %393 = arith.cmpf ogt, %351, %392 : vector<40x1xf32>
    %394 = arith.andi %391, %393 : vector<40x1xi1>
    %cst_138 = arith.constant -1.000000e+30 : f32
    %395 = vector.shape_cast %394 : vector<40x1xi1> to vector<40x1xi1>
    %396 = vector.broadcast %395 : vector<40x1xi1> to vector<40x32xi1>
    %397 = vector.broadcast %cst_138 : f32 to vector<40x32xf32>
    %398 = arith.select %396, %357, %397 : vector<40x32xi1>, vector<40x32xf32>
    %cst_139 = arith.constant dense<0xFF800000> : vector<32xf32>
    %399 = vector.multi_reduction <maximumf>, %398, %cst_139 [0] : vector<40x32xf32> to vector<32xf32>
    %400 = vector.shape_cast %399 : vector<32xf32> to vector<1x32xf32>
    %c1_i32_140 = arith.constant 1 : i32
    %401 = vector.broadcast %c1_i32_140 : i32 to vector<2x32xi32>
    %402 = arith.cmpi eq, %59, %401 : vector<2x32xi32>
    %403 = vector.shape_cast %400 : vector<1x32xf32> to vector<1x32xf32>
    %404 = vector.broadcast %403 : vector<1x32xf32> to vector<2x32xf32>
    %405 = arith.select %402, %404, %386 : vector<2x32xi1>, vector<2x32xf32>
    %406 = arith.addf %291, %405 : vector<2x32xf32>
    %407 = arith.addf %292, %366 : vector<2x32xf32>
    %c464 = arith.constant 464 : index
    %c0_141 = arith.constant 0 : index
    %408 = vector.load %arg2[%c464, %c0_141] : memref<600x128xf32, #tpu.memory_space<vmem>>, vector<64x32xf32>
    %409 = vector.extract_strided_slice %408 {offsets = [0, 0], sizes = [32, 32], strides = [1, 1]} : vector<64x32xf32> to vector<32x32xf32>
    %cst_142 = arith.constant dense<0.000000e+00> : vector<2x32xf32>
    %410 = tpu.matmul %406, %409, %cst_142 {dimension_numbers = #tpu.dot_dimension_numbers<[1], [0], [0], [1], [0, 0, 1, 1], [], []>} : vector<2x32xf32>, vector<32x32xf32>, vector<2x32xf32> -> vector<2x32xf32>
    %411 = vector.extract_strided_slice %408 {offsets = [32, 0], sizes = [32, 32], strides = [1, 1]} : vector<64x32xf32> to vector<32x32xf32>
    %cst_143 = arith.constant dense<0.000000e+00> : vector<2x32xf32>
    %412 = tpu.matmul %407, %411, %cst_143 {dimension_numbers = #tpu.dot_dimension_numbers<[1], [0], [0], [1], [0, 0, 1, 1], [], []>} : vector<2x32xf32>, vector<32x32xf32>, vector<2x32xf32> -> vector<2x32xf32>
    %413 = arith.addf %410, %412 : vector<2x32xf32>
    %c528 = arith.constant 528 : index
    %c0_144 = arith.constant 0 : index
    %414 = vector.load %arg2[%c528, %c0_144] : memref<600x128xf32, #tpu.memory_space<vmem>>, vector<1x32xf32>
    %415 = vector.broadcast %414 : vector<1x32xf32> to vector<2x32xf32>
    %416 = arith.addf %413, %415 : vector<2x32xf32>
    %cst_145 = arith.constant 0.000000e+00 : f32
    %417 = vector.broadcast %cst_145 : f32 to vector<2x32xf32>
    %418 = arith.maximumf %416, %417 : vector<2x32xf32>
    %c536 = arith.constant 536 : index
    %c0_146 = arith.constant 0 : index
    %419 = vector.load %arg2[%c536, %c0_146] : memref<600x128xf32, #tpu.memory_space<vmem>>, vector<32x16xf32>
    %cst_147 = arith.constant dense<0.000000e+00> : vector<2x16xf32>
    %420 = tpu.matmul %418, %419, %cst_147 {dimension_numbers = #tpu.dot_dimension_numbers<[1], [0], [0], [1], [0, 0, 1, 1], [], []>} : vector<2x32xf32>, vector<32x16xf32>, vector<2x16xf32> -> vector<2x16xf32>
    %c568 = arith.constant 568 : index
    %c0_148 = arith.constant 0 : index
    %421 = vector.load %arg2[%c568, %c0_148] : memref<600x128xf32, #tpu.memory_space<vmem>>, vector<1x16xf32>
    %422 = vector.broadcast %421 : vector<1x16xf32> to vector<2x16xf32>
    %423 = arith.addf %420, %422 : vector<2x16xf32>
    %cst_149 = arith.constant 0.000000e+00 : f32
    %424 = vector.broadcast %cst_149 : f32 to vector<2x16xf32>
    %425 = arith.maximumf %423, %424 : vector<2x16xf32>
    %c576 = arith.constant 576 : index
    %c0_150 = arith.constant 0 : index
    %426 = vector.load %arg2[%c576, %c0_150] : memref<600x128xf32, #tpu.memory_space<vmem>>, vector<16x1xf32>
    %cst_151 = arith.constant dense<0.000000e+00> : vector<2x1xf32>
    %427 = tpu.matmul %425, %426, %cst_151 {dimension_numbers = #tpu.dot_dimension_numbers<[1], [0], [0], [1], [0, 0, 1, 1], [], []>} : vector<2x16xf32>, vector<16x1xf32>, vector<2x1xf32> -> vector<2x1xf32>
    %c592 = arith.constant 592 : index
    %c0_152 = arith.constant 0 : index
    %428 = vector.load %arg2[%c592, %c0_152] : memref<600x128xf32, #tpu.memory_space<vmem>>, vector<1x1xf32>
    %429 = vector.broadcast %428 : vector<1x1xf32> to vector<2x1xf32>
    %430 = arith.addf %427, %429 : vector<2x1xf32>
    %c0_153 = arith.constant 0 : index
    %c0_154 = arith.constant 0 : index
    %431 = vector.load %arg3[%c0_153, %c0_154] : memref<2x128xf32, #tpu.memory_space<vmem>>, vector<2x16xf32>
    tpu.vector_store %arg3[%c0_153, %c0_154], %425 {strides = array<i32>} : memref<2x128xf32, #tpu.memory_space<vmem>>, vector<2x16xf32>,
    %c0_155 = arith.constant 0 : index
    %c16 = arith.constant 16 : index
    %432 = vector.load %arg3[%c0_155, %c16] : memref<2x128xf32, #tpu.memory_space<vmem>>, vector<2x1xf32>
    tpu.vector_store %arg3[%c0_155, %c16], %430 {strides = array<i32>} : memref<2x128xf32, #tpu.memory_space<vmem>>, vector<2x1xf32>,
    %cst_156 = arith.constant 0.000000e+00 : f32
    %433 = vector.broadcast %cst_156 : f32 to vector<2x111xf32>
    %c0_157 = arith.constant 0 : index
    %c17 = arith.constant 17 : index
    %434 = vector.load %arg3[%c0_157, %c17] : memref<2x128xf32, #tpu.memory_space<vmem>>, vector<2x111xf32>
    tpu.vector_store %arg3[%c0_157, %c17], %433 {strides = array<i32>} : memref<2x128xf32, #tpu.memory_space<vmem>>, vector<2x111xf32>,
    return
  }
}

</mosaic_0001>

<llo_original>
// kernel: graphnet_forward.1
$region0: #{graphnet_forward.1}
  #allocation0 [shape = 'u32[]', space=smem, size = 0x4, offset = 0x4, fixed_abs, tag = 'smem constant byte address 0x4 - core index']
  #allocation1 [shape = 'u32[144,128]{1,0:T(1,128)}', space=vmem, size = 0x12000, scoped, tag = 'internal scratch']
  %s0 = inlined_call_operand.hbm [shape: f32[40,48], index: 0, kind: input, shape index: {}]
  %s1 = inlined_call_operand.hbm [shape: f32[40,40], index: 1, kind: input, shape index: {}]
  %s2 = inlined_call_operand.hbm [shape: f32[600,128], index: 2, kind: input, shape index: {}]
  %s3 = inlined_call_operand.vmem [shape: f32[2,128], index: 3, kind: output, shape index: {}]
  %s4 = sld [smem:[#allocation0]]
  $region34: #{graphnet_forward.1} parent=0
    _
  %s6 = ssub.s32 1, %s4
  %s7 = scalar_select 0, %s6, %s4
  $region1: #{graphnet_forward.1} parent=0
    #allocation2 [shape = 'u8[20480]{0}', space=vmem, size = 0x5000, scoped, tag = 'input window, operand 0, single buffered']
    #allocation3 [shape = 's32[1]{0}', space=sflag, size = 0x4, scoped, tag = 'scoped memory for graphnet_forward.1']
    #allocation4 [shape = 'u8[20480]{0}', space=vmem, size = 0x5000, scoped, tag = 'input window, operand 1, single buffered']
    #allocation5 [shape = 's32[1]{0}', space=sflag, size = 0x4, scoped, tag = 'scoped memory for graphnet_forward.1']
    #allocation6 [shape = 'u8[307200]{0}', space=vmem, size = 0x4b000, scoped, tag = 'input window, operand 2, single buffered']
    %8 = vsyncpa [#allocation3], 0
    %9 = vsyncpa [#allocation5], 0
    // Predicated region
    $region2: #{graphnet_forward.1} parent=1 // pred_check
      _
    $region3: #{graphnet_forward.1} parent=1 // pred_check_branch
      %11 = sbr.rel (0) target = $region5
    $region4: #{graphnet_forward.1} parent=1 // pred_region
      %s13 = ssub.s32 640, 640
      %14 = vsyncadd [#allocation3], %s13
      %s15 = sshll.u32 [#allocation2], 4
      %s16 = int_to_ptr.vmem [resolvable:$true] %s15
      %21 = dma.hbm_to_vmem [thread:$0]  %s0, 640, %s16, [#allocation3], 128, 128, 8
    $region5: #{graphnet_forward.1} parent=1 // pred_fallthru
      _
    // Predicated region
    $region6: #{graphnet_forward.1} parent=1 // pred_check
      _
    $region7: #{graphnet_forward.1} parent=1 // pred_check_branch
      %23 = sbr.rel (0) target = $region9
    $region8: #{graphnet_forward.1} parent=1 // pred_region
      %s25 = ssub.s32 640, 640
      %26 = vsyncadd [#allocation5], %s25
      %s27 = sshll.u32 [#allocation4], 4
      %s28 = int_to_ptr.vmem [resolvable:$true] %s27
      %33 = dma.hbm_to_vmem [thread:$0]  %s1, 640, %s28, [#allocation5], 128, 128, 8
    $region9: #{graphnet_forward.1} parent=1 // pred_fallthru
      _
    // Predicated region
    $region10: #{graphnet_forward.1} parent=1 // pred_check
      _
    $region11: #{graphnet_forward.1} parent=1 // pred_check_branch
      %35 = sbr.rel (0) target = $region13
    $region12: #{graphnet_forward.1} parent=1 // pred_region
      %s37 = ssub.s32 9600, 9600
      %38 = vsyncadd [#allocation5], %s37
      %s39 = sshll.u32 [#allocation6], 4
      %s40 = int_to_ptr.vmem [resolvable:$true] %s39
      %45 = dma.hbm_to_vmem [thread:$0]  %s2, 9600, %s40, [#allocation5], 128, 128, 8
    $region13: #{graphnet_forward.1} parent=1 // pred_fallthru
      _
    // Predicated region
    $region14: #{graphnet_forward.1} parent=1 // pred_check
      _
    $region15: #{graphnet_forward.1} parent=1 // pred_check_branch
      %47 = sbr.rel (0) target = $region17
    $region16: #{graphnet_forward.1} parent=1 // pred_region
      %48 = dma.done [#allocation3], 640
    $region17: #{graphnet_forward.1} parent=1 // pred_fallthru
      _
    // Predicated region
    $region18: #{graphnet_forward.1} parent=1 // pred_check
      _
    $region19: #{graphnet_forward.1} parent=1 // pred_check_branch
      %50 = sbr.rel (0) target = $region21
    $region20: #{graphnet_forward.1} parent=1 // pred_region
      %51 = dma.done [#allocation5], 640
    $region21: #{graphnet_forward.1} parent=1 // pred_fallthru
      _
    // Predicated region
    $region22: #{graphnet_forward.1} parent=1 // pred_check
      _
    $region23: #{graphnet_forward.1} parent=1 // pred_check_branch
      %53 = sbr.rel (0) target = $region25
    $region24: #{graphnet_forward.1} parent=1 // pred_region
      %54 = dma.done [#allocation5], 9600
    $region25: #{graphnet_forward.1} parent=1 // pred_fallthru
      _
    %v55 = vld [vmem:[#allocation2] sm:$0xff]
    %v56 = vld [vmem:[#allocation2 + $0x8] sm:$0xff]
    %v57 = vld [vmem:[#allocation2 + $0x10] sm:$0xff]
    %v58 = vld [vmem:[#allocation2 + $0x18] sm:$0xff]
    %v59 = vld [vmem:[#allocation2 + $0x20] sm:$0xff]
    %vm60 = vcmask 392192
    %v61 = vsel %vm60, %v55, -inf
    %v62 = vsel %vm60, %v56, -inf
    %v63 = vsel %vm60, %v57, -inf
    %v64 = vsel %vm60, %v58, -inf
    %v65 = vsel %vm60, %v59, -inf
    %v66 = vmax.f32 %v61, %v65
    %v67 = vmax.f32 %v66, %v62
    %v68 = vmax.f32 %v63, %v64
    %v69 = vmax.f32 %v67, %v68
    %v70 = vrot.slane %v69, 4
    %v71 = vmax.f32 %v69, %v70
    %v72 = vrot.slane %v71, 2
    %v73 = vmax.f32 %v71, %v72
    %v74 = vrot.slane %v73, 1
    %v75 = vmax.f32 %v73, %v74
    %v76 = vmax.f32 %v75, 1e-12
    %v77 = vrcp.pop %v76
    %v78 = vlaneseq
    %v79 = vand.u32 %v78, 127
    %vm80 = vcmp.lt.s32.totalorder %v79, 12
    %v81 = vsel %vm80, %v77, 1.0
    %v82 = vmul.f32 %v55, %v81
    %v83 = vmul.f32 %v56, %v81
    %v84 = vmul.f32 %v57, %v81
    %v85 = vmul.f32 %v58, %v81
    %v86 = vmul.f32 %v59, %v81
    %v87 = vld [vmem:[#allocation4] sm:$0xff]
    %v88 = vld [vmem:[#allocation4 + $0x8] sm:$0xff]
    %v89 = vld [vmem:[#allocation4 + $0x10] sm:$0xff]
    %v90 = vld [vmem:[#allocation4 + $0x18] sm:$0xff]
    %v91 = vld [vmem:[#allocation4 + $0x20] sm:$0xff]
    %v92 = vlaneseq
    %v93 = vshrl.u32 %v92, 7
    %v94 = vadd.s32 %v93, 8
    %v95 = vadd.s32 %v93, 16
    %v96 = vadd.s32 %v93, 24
    %v97 = vadd.s32 %v93, 32
    %v98 = vmul.u32 %v93, 20
    %vm99 = vcmp.ge.s32.totalorder %v79, %v98
    %v100 = vadd.s32 %v93, 1
    %v101 = vmul.u32 %v100, 20
    %vm102 = vcmp.lt.s32.totalorder %v79, %v101
    %vm103 = vmand %vm99, %vm102
    %v104 = vsel %vm103, 1.0, 0.0
    %vm105 = vcmp.ge.s32.totalorder %v93, 0
    %vm106 = vcmp.ge.s32.totalorder %v94, 0
    %vm107 = vcmp.ge.s32.totalorder %v95, 0
    %vm108 = vcmp.ge.s32.totalorder %v96, 0
    %vm109 = vcmp.ge.s32.totalorder %v97, 0
    %vm110 = vcmp.lt.s32.totalorder %v93, 20
    %vm111 = vcmp.lt.s32.totalorder %v94, 20
    %vm112 = vcmp.lt.s32.totalorder %v95, 20
    %vm113 = vcmp.lt.s32.totalorder %v96, 20
    %vm114 = vcmp.lt.s32.totalorder %v97, 20
    %vm115 = vmand %vm105, %vm110
    %vm116 = vmand %vm106, %vm111
    %vm117 = vmand %vm107, %vm112
    %vm118 = vmand %vm108, %vm113
    %vm119 = vmand %vm109, %vm114
    %vm120 = vcmp.ge.s32.totalorder %v79, 0
    %vm121 = vcmp.lt.s32.totalorder %v79, 20
    %vm122 = vmand %vm120, %vm121
    %vm123 = vmand %vm115, %vm122
    %vm124 = vmand %vm116, %vm122
    %vm125 = vmand %vm117, %vm122
    %vm126 = vmand %vm118, %vm122
    %vm127 = vmand %vm119, %vm122
    %v128 = vsel %vm123, 1.0, 0.0
    %v129 = vsel %vm124, 1.0, 0.0
    %v130 = vsel %vm125, 1.0, 0.0
    %v131 = vsel %vm126, 1.0, 0.0
    %v132 = vsel %vm127, 1.0, 0.0
    %vm133 = vcmp.ge.s32.totalorder %v93, 20
    %vm134 = vcmp.ge.s32.totalorder %v94, 20
    %vm135 = vcmp.ge.s32.totalorder %v95, 20
    %vm136 = vcmp.ge.s32.totalorder %v96, 20
    %vm137 = vcmp.ge.s32.totalorder %v97, 20
    %vm138 = vcmp.lt.s32.totalorder %v93, 40
    %vm139 = vcmp.lt.s32.totalorder %v94, 40
    %vm140 = vcmp.lt.s32.totalorder %v95, 40
    %vm141 = vcmp.lt.s32.totalorder %v96, 40
    %vm142 = vcmp.lt.s32.totalorder %v97, 40
    %vm143 = vmand %vm133, %vm138
    %vm144 = vmand %vm134, %vm139
    %vm145 = vmand %vm135, %vm140
    %vm146 = vmand %vm136, %vm141
    %vm147 = vmand %vm137, %vm142
    %vm148 = vcmp.ge.s32.totalorder %v79, 20
    %vm149 = vcmp.lt.s32.totalorder %v79, 40
    %vm150 = vmand %vm148, %vm149
    %vm151 = vmand %vm143, %vm150
    %vm152 = vmand %vm144, %vm150
    %vm153 = vmand %vm145, %vm150
    %vm154 = vmand %vm146, %vm150
    %vm155 = vmand %vm147, %vm150
    %v156 = vsel %vm151, 1.0, %v128
    %v157 = vsel %vm152, 1.0, %v129
    %v158 = vsel %vm153, 1.0, %v130
    %v159 = vsel %vm154, 1.0, %v131
    %v160 = vsel %vm155, 1.0, %v132
    %v161 = vld [vmem:[#allocation6] sm:$0xff]
    %v162 = vld [vmem:[#allocation6 + $0x8] sm:$0xff]
    %v163 = vld [vmem:[#allocation6 + $0x10] sm:$0xff]
    %v164 = vld [vmem:[#allocation6 + $0x18] sm:$0xff]
    %v165 = vld [vmem:[#allocation6 + $0x20] sm:$0xff]
    %v166 = vld [vmem:[#allocation6 + $0x28] sm:$0xff]
    %v167 = vld [vmem:[#allocation6 + $0x30] sm:$0xff]
    %v168 = vld [vmem:[#allocation6 + $0x38] sm:$0xff]
    %v169 = vld [vmem:[#allocation6 + $0x40] sm:$0xff]
    %v170 = vld [vmem:[#allocation6 + $0x48] sm:$0xff]
    %v171 = vld [vmem:[#allocation6 + $0x50] sm:$0xff]
    %v172 = vld [vmem:[#allocation6 + $0x58] sm:$0xff]
    %v173 = vld [vmem:[#allocation6 + $0x60] sm:$0x1]
    %v174 = vld [vmem:[#allocation6 + $0x68] sm:$0xff]
    %v175 = vld [vmem:[#allocation6 + $0x70] sm:$0xff]
    %v176 = vld [vmem:[#allocation6 + $0x78] sm:$0xff]
    %v177 = vld [vmem:[#allocation6 + $0x80] sm:$0xff]
    %v178 = vld [vmem:[#allocation6 + $0x88] sm:$0xff]
    %v179 = vld [vmem:[#allocation6 + $0x90] sm:$0xff]
    %v180 = vld [vmem:[#allocation6 + $0x98] sm:$0xff]
    %v181 = vld [vmem:[#allocation6 + $0xa0] sm:$0xff]
    %v182 = vld [vmem:[#allocation6 + $0xa8] sm:$0x1]
    %183 = vxpose.xlu0.b32.start [1/16] 1.0, 128
    %184 = vxpose.xlu0.b32.cont [2/16] 1.0, 128
    %185 = vxpose.xlu0.b32.cont [3/16] 1.0, 128
    %186 = vxpose.xlu0.b32.cont [4/16] 1.0, 128
    %187 = vxpose.xlu0.b32.cont [5/16] 1.0, 128
    %188 = vxpose.xlu0.b32.cont [6/16] 0.0, 128
    %189 = vxpose.xlu0.b32.cont [7/16] 0.0, 128
    %190 = vxpose.xlu0.b32.cont [8/16] 0.0, 128
    %191 = vxpose.xlu0.b32.cont [9/16] 0.0, 128
    %192 = vxpose.xlu0.b32.cont [10/16] 0.0, 128
    %193 = vxpose.xlu0.b32.cont [11/16] 0.0, 128
    %194 = vxpose.xlu0.b32.cont [12/16] 0.0, 128
    %195 = vxpose.xlu0.b32.cont [13/16] 0.0, 128
    %196 = vxpose.xlu0.b32.cont [14/16] 0.0, 128
    %197 = vxpose.xlu0.b32.cont [15/16] 0.0, 128
    %198 = vxpose.xlu0.b32.end [16/16] 0.0, 128
    %v199 = vpop.trf.xlu0
    %v200 = vpop.trf.xlu0
    %v201 = vpop.trf.xlu0
    %v202 = vpop.trf.xlu0
    %v203 = vpop.trf.xlu0
    %v204 = vpop.trf.xlu0
    %v205 = vpop.trf.xlu0
    %v206 = vpop.trf.xlu0
    %v207 = vpop.trf.xlu0
    %v208 = vpop.trf.xlu0
    %v209 = vpop.trf.xlu0
    %v210 = vpop.trf.xlu0
    %v211 = vpop.trf.xlu0
    %v212 = vpop.trf.xlu0
    %v213 = vpop.trf.xlu0
    %v214 = vpop.trf.xlu0
    %v215 = vlaneseq
    %v216 = vshrl.u32 %v215, 7
    %v217 = vsub.s32 0, %v216
    %v218 = vrot.slane %v199, %v217
    %v219 = vmul.f32 %v87, %v218
    %v220 = vmul.f32 %v88, %v218
    %v221 = vmul.f32 %v89, %v218
    %v222 = vmul.f32 %v90, %v218
    %v223 = vmul.f32 %v91, %v218
    %vm224 = vcmask 326656
    %v225 = vsel %vm224, %v219, 0.0
    %226 = vadd.xlane.f32.xlu0 %v225
    %v227 = vpop.xlane.xlu0 %226
    %v228 = vsel %vm224, %v220, 0.0
    %229 = vadd.xlane.f32.xlu0 %v228
    %v230 = vpop.xlane.xlu0 %229
    %v231 = vsel %vm224, %v221, 0.0
    %232 = vadd.xlane.f32.xlu0 %v231
    %v233 = vpop.xlane.xlu0 %232
    %v234 = vsel %vm224, %v222, 0.0
    %235 = vadd.xlane.f32.xlu0 %v234
    %v236 = vpop.xlane.xlu0 %235
    %v237 = vsel %vm224, %v223, 0.0
    %238 = vadd.xlane.f32.xlu0 %v237
    %v239 = vpop.xlane.xlu0 %238
    %v241 = vsel %vm224, %v219, 0
    %v244 = vsel %vm224, %v220, 0
    %v247 = vsel %vm224, %v221, 0
    %v250 = vsel %vm224, %v222, 0
    %v253 = vsel %vm224, %v223, 0
    %255 = vmatprep.subr.mxu0 0.0
    %256 = vmatpush1.msra.mxu0 %v82
    %257 = vmatprep.subr.mxu0 0.0
    %258 = vmatpush1.msra.mxu0 %v83
    %259 = vmatprep.subr.mxu0 0.0
    %260 = vmatpush1.msra.mxu0 %v84
    %261 = vmatprep.subr.mxu0 0.0
    %262 = vmatpush1.msra.mxu0 %v85
    %263 = vmatprep.subr.mxu0 0.0
    %264 = vmatpush1.msra.mxu0 %v86
    %265 = vmatprep.subr.mxu0 0.0
    %266 = vmatpush1.msra.mxu0 0.0
    %267 = vmatprep.subr.mxu0 0.0
    %268 = vmatpush1.msra.mxu0 0.0
    %269 = vmatprep.subr.mxu0 0.0
    %270 = vmatpush1.msra.mxu0 0.0
    %271 = vmatprep.subr.mxu0 0.0
    %272 = vmatpush1.msra.mxu0 0.0
    %273 = vmatprep.subr.mxu0 0.0
    %274 = vmatpush1.msra.mxu0 0.0
    %275 = vmatprep.subr.mxu0 0.0
    %276 = vmatpush1.msra.mxu0 0.0
    %277 = vmatprep.subr.mxu0 0.0
    %278 = vmatpush1.msra.mxu0 0.0
    %279 = vmatprep.subr.mxu0 0.0
    %280 = vmatpush1.msra.mxu0 0.0
    %281 = vmatprep.subr.mxu0 0.0
    %282 = vmatpush1.msra.mxu0 0.0
    %283 = vmatprep.subr.mxu0 0.0
    %284 = vmatpush1.msra.mxu0 0.0
    %285 = vmatprep.subr.mxu0 0.0
    %286 = vmatpush1.msra.mxu0 0.0
    %287 = vmatprep.subr.mxu0 0.0
    %288 = vmatpush1.msra.mxu0 0.0
    %289 = vmatprep.subr.mxu0 0.0
    %290 = vmatpush1.msra.mxu0 0.0
    %291 = vmatprep.subr.mxu0 0.0
    %292 = vmatpush1.msra.mxu0 0.0
    %293 = vmatprep.subr.mxu0 0.0
    %294 = vmatpush1.msra.mxu0 0.0
    %295 = vmatprep.subr.mxu0 0.0
    %296 = vmatpush1.msra.mxu0 0.0
    %297 = vmatprep.subr.mxu0 0.0
    %298 = vmatpush1.msra.mxu0 0.0
    %299 = vmatprep.subr.mxu0 0.0
    %300 = vmatpush1.msra.mxu0 0.0
    %301 = vmatprep.subr.mxu0 0.0
    %302 = vmatpush1.msra.mxu0 0.0
    %303 = vmatprep.subr.mxu0 0.0
    %304 = vmatpush1.msra.mxu0 0.0
    %305 = vmatprep.subr.mxu0 0.0
    %306 = vmatpush1.msra.mxu0 0.0
    %307 = vmatprep.subr.mxu0 0.0
    %308 = vmatpush1.msra.mxu0 0.0
    %309 = vmatprep.subr.mxu0 0.0
    %310 = vmatpush1.msra.mxu0 0.0
    %311 = vmatprep.subr.mxu0 0.0
    %312 = vmatpush1.msra.mxu0 0.0
    %313 = vmatprep.subr.mxu0 0.0
    %314 = vmatpush1.msra.mxu0 0.0
    %315 = vmatprep.subr.mxu0 0.0
    %316 = vmatpush1.msra.mxu0 0.0
    %317 = vmatprep.subr.mxu0 0.0
    %318 = vmatpush1.msra.mxu0 0.0
    %319 = vmatprep.mubr.f32.mxu0 0.0
    %320 = vmatmul.mubr.f32.gmra.mrb[0].mxu0 %v241
    %v321 = vpop.f32.mrb[0].mxu0
    %v322 = vadd.f32 0.0, %v321
    %v323 = vpop.f32.mrb[0].mxu0
    %324 = vmatprep.mubr.f32.mxu0 0.0
    %325 = vmatmul.mubr.f32.gmra.mrb[0].mxu0 %v244
    %v326 = vpop.f32.mrb[0].mxu0
    %v327 = vadd.f32 0.0, %v326
    %v328 = vpop.f32.mrb[0].mxu0
    %329 = vmatprep.mubr.f32.mxu0 0.0
    %330 = vmatmul.mubr.f32.gmra.mrb[0].mxu0 %v247
    %v331 = vpop.f32.mrb[0].mxu0
    %v332 = vadd.f32 0.0, %v331
    %v333 = vpop.f32.mrb[0].mxu0
    %334 = vmatprep.mubr.f32.mxu0 0.0
    %335 = vmatmul.mubr.f32.gmra.mrb[0].mxu0 %v250
    %v336 = vpop.f32.mrb[0].mxu0
    %v337 = vadd.f32 0.0, %v336
    %v338 = vpop.f32.mrb[0].mxu0
    %339 = vmatprep.mubr.f32.mxu0 0.0
    %340 = vmatmul.mubr.f32.gmra.mrb[0].mxu0 %v253
    %v341 = vpop.f32.mrb[0].mxu0
    %v342 = vadd.f32 0.0, %v341
    %v343 = vpop.f32.mrb[0].mxu0
    %344 = vdwg.mxu0
    %v345 = vmax.f32 %v227, 1.0
    %v346 = vmax.f32 %v230, 1.0
    %v347 = vmax.f32 %v233, 1.0
    %v348 = vmax.f32 %v236, 1.0
    %v349 = vmax.f32 %v239, 1.0
    %v350 = vrcp.pop %v345
    %v351 = vmul.f32 %v322, %v350
    %v352 = vrcp.pop %v346
    %v353 = vmul.f32 %v327, %v352
    %v354 = vrcp.pop %v347
    %v355 = vmul.f32 %v332, %v354
    %v356 = vrcp.pop %v348
    %v357 = vmul.f32 %v337, %v356
    %v358 = vrcp.pop %v349
    %v359 = vmul.f32 %v342, %v358
    %v360 = vlaneseq
    %v361 = vshrl.u32 %v360, 7
    %v362 = vsub.s32 0, %v361
    %v363 = vrot.slane %v173, %v362
    %v365 = vsel %vm60, %v351, 0
    %v368 = vsel %vm60, %v353, 0
    %v371 = vsel %vm60, %v355, 0
    %v374 = vsel %vm60, %v357, 0
    %v377 = vsel %vm60, %v359, 0
    %379 = vmatprep.subr.mxu0 0.0
    %380 = vmatpush1.msra.mxu0 %v161
    %381 = vmatprep.subr.mxu0 0.0
    %382 = vmatpush1.msra.mxu0 %v162
    %383 = vmatprep.subr.mxu0 0.0
    %384 = vmatpush1.msra.mxu0 %v163
    %385 = vmatprep.subr.mxu0 0.0
    %386 = vmatpush1.msra.mxu0 %v164
    %387 = vmatprep.subr.mxu0 0.0
    %388 = vmatpush1.msra.mxu0 %v165
    %389 = vmatprep.subr.mxu0 0.0
    %390 = vmatpush1.msra.mxu0 %v166
    %391 = vmatprep.subr.mxu0 0.0
    %392 = vmatpush1.msra.mxu0 0.0
    %393 = vmatprep.subr.mxu0 0.0
    %394 = vmatpush1.msra.mxu0 0.0
    %395 = vmatprep.subr.mxu0 0.0
    %396 = vmatpush1.msra.mxu0 0.0
    %397 = vmatprep.subr.mxu0 0.0
    %398 = vmatpush1.msra.mxu0 0.0
    %399 = vmatprep.subr.mxu0 0.0
    %400 = vmatpush1.msra.mxu0 0.0
    %401 = vmatprep.subr.mxu0 0.0
    %402 = vmatpush1.msra.mxu0 0.0
    %403 = vmatprep.subr.mxu0 0.0
    %404 = vmatpush1.msra.mxu0 0.0
    %405 = vmatprep.subr.mxu0 0.0
    %406 = vmatpush1.msra.mxu0 0.0
    %407 = vmatprep.subr.mxu0 0.0
    %408 = vmatpush1.msra.mxu0 0.0
    %409 = vmatprep.subr.mxu0 0.0
    %410 = vmatpush1.msra.mxu0 0.0
    %411 = vmatprep.subr.mxu0 0.0
    %412 = vmatpush1.msra.mxu0 0.0
    %413 = vmatprep.subr.mxu0 0.0
    %414 = vmatpush1.msra.mxu0 0.0
    %415 = vmatprep.subr.mxu0 0.0
    %416 = vmatpush1.msra.mxu0 0.0
    %417 = vmatprep.subr.mxu0 0.0
    %418 = vmatpush1.msra.mxu0 0.0
    %419 = vmatprep.subr.mxu0 0.0
    %420 = vmatpush1.msra.mxu0 0.0
    %421 = vmatprep.subr.mxu0 0.0
    %422 = vmatpush1.msra.mxu0 0.0
    %423 = vmatprep.subr.mxu0 0.0
    %424 = vmatpush1.msra.mxu0 0.0
    %425 = vmatprep.subr.mxu0 0.0
    %426 = vmatpush1.msra.mxu0 0.0
    %427 = vmatprep.subr.mxu0 0.0
    %428 = vmatpush1.msra.mxu0 0.0
    %429 = vmatprep.subr.mxu0 0.0
    %430 = vmatpush1.msra.mxu0 0.0
    %431 = vmatprep.subr.mxu0 0.0
    %432 = vmatpush1.msra.mxu0 0.0
    %433 = vmatprep.subr.mxu0 0.0
    %434 = vmatpush1.msra.mxu0 0.0
    %435 = vmatprep.subr.mxu0 0.0
    %436 = vmatpush1.msra.mxu0 0.0
    %437 = vmatprep.subr.mxu0 0.0
    %438 = vmatpush1.msra.mxu0 0.0
    %439 = vmatprep.subr.mxu0 0.0
    %440 = vmatpush1.msra.mxu0 0.0
    %441 = vmatprep.subr.mxu0 0.0
    %442 = vmatpush1.msra.mxu0 0.0
    %443 = vmatprep.mubr.f32.mxu0 0.0
    %444 = vmatmul.mubr.f32.gmra.mrb[0].mxu0 %v365
    %v445 = vpop.f32.mrb[0].mxu0
    %v446 = vadd.f32 %v363, %v445
    %v447 = vpop.f32.mrb[0].mxu0
    %448 = vmatprep.mubr.f32.mxu0 0.0
    %449 = vmatmul.mubr.f32.gmra.mrb[0].mxu0 %v368
    %v450 = vpop.f32.mrb[0].mxu0
    %v451 = vadd.f32 %v363, %v450
    %v452 = vpop.f32.mrb[0].mxu0
    %453 = vmatprep.mubr.f32.mxu0 0.0
    %454 = vmatmul.mubr.f32.gmra.mrb[0].mxu0 %v371
    %v455 = vpop.f32.mrb[0].mxu0
    %v456 = vadd.f32 %v363, %v455
    %v457 = vpop.f32.mrb[0].mxu0
    %458 = vmatprep.mubr.f32.mxu0 0.0
    %459 = vmatmul.mubr.f32.gmra.mrb[0].mxu0 %v374
    %v460 = vpop.f32.mrb[0].mxu0
    %v461 = vadd.f32 %v363, %v460
    %v462 = vpop.f32.mrb[0].mxu0
    %463 = vmatprep.mubr.f32.mxu0 0.0
    %464 = vmatmul.mubr.f32.gmra.mrb[0].mxu0 %v377
    %v465 = vpop.f32.mrb[0].mxu0
    %v466 = vadd.f32 %v363, %v465
    %v467 = vpop.f32.mrb[0].mxu0
    %468 = vdwg.mxu0
    %v470 = vsel %vm60, %v82, 0
    %v473 = vsel %vm60, %v83, 0
    %v476 = vsel %vm60, %v84, 0
    %v479 = vsel %vm60, %v85, 0
    %v482 = vsel %vm60, %v86, 0
    %484 = vmatprep.subr.mxu0 0.0
    %485 = vmatpush1.msra.mxu0 %v167
    %486 = vmatprep.subr.mxu0 0.0
    %487 = vmatpush1.msra.mxu0 %v168
    %488 = vmatprep.subr.mxu0 0.0
    %489 = vmatpush1.msra.mxu0 %v169
    %490 = vmatprep.subr.mxu0 0.0
    %491 = vmatpush1.msra.mxu0 %v170
    %492 = vmatprep.subr.mxu0 0.0
    %493 = vmatpush1.msra.mxu0 %v171
    %494 = vmatprep.subr.mxu0 0.0
    %495 = vmatpush1.msra.mxu0 %v172
    %496 = vmatprep.subr.mxu0 0.0
    %497 = vmatpush1.msra.mxu0 0.0
    %498 = vmatprep.subr.mxu0 0.0
    %499 = vmatpush1.msra.mxu0 0.0
    %500 = vmatprep.subr.mxu0 0.0
    %501 = vmatpush1.msra.mxu0 0.0
    %502 = vmatprep.subr.mxu0 0.0
    %503 = vmatpush1.msra.mxu0 0.0
    %504 = vmatprep.subr.mxu0 0.0
    %505 = vmatpush1.msra.mxu0 0.0
    %506 = vmatprep.subr.mxu0 0.0
    %507 = vmatpush1.msra.mxu0 0.0
    %508 = vmatprep.subr.mxu0 0.0
    %509 = vmatpush1.msra.mxu0 0.0
    %510 = vmatprep.subr.mxu0 0.0
    %511 = vmatpush1.msra.mxu0 0.0
    %512 = vmatprep.subr.mxu0 0.0
    %513 = vmatpush1.msra.mxu0 0.0
    %514 = vmatprep.subr.mxu0 0.0
    %515 = vmatpush1.msra.mxu0 0.0
    %516 = vmatprep.subr.mxu0 0.0
    %517 = vmatpush1.msra.mxu0 0.0
    %518 = vmatprep.subr.mxu0 0.0
    %519 = vmatpush1.msra.mxu0 0.0
    %520 = vmatprep.subr.mxu0 0.0
    %521 = vmatpush1.msra.mxu0 0.0
    %522 = vmatprep.subr.mxu0 0.0
    %523 = vmatpush1.msra.mxu0 0.0
    %524 = vmatprep.subr.mxu0 0.0
    %525 = vmatpush1.msra.mxu0 0.0
    %526 = vmatprep.subr.mxu0 0.0
    %527 = vmatpush1.msra.mxu0 0.0
    %528 = vmatprep.subr.mxu0 0.0
    %529 = vmatpush1.msra.mxu0 0.0
    %530 = vmatprep.subr.mxu0 0.0
    %531 = vmatpush1.msra.mxu0 0.0
    %532 = vmatprep.subr.mxu0 0.0
    %533 = vmatpush1.msra.mxu0 0.0
    %534 = vmatprep.subr.mxu0 0.0
    %535 = vmatpush1.msra.mxu0 0.0
    %536 = vmatprep.subr.mxu0 0.0
    %537 = vmatpush1.msra.mxu0 0.0
    %538 = vmatprep.subr.mxu0 0.0
    %539 = vmatpush1.msra.mxu0 0.0
    %540 = vmatprep.subr.mxu0 0.0
    %541 = vmatpush1.msra.mxu0 0.0
    %542 = vmatprep.subr.mxu0 0.0
    %543 = vmatpush1.msra.mxu0 0.0
    %544 = vmatprep.subr.mxu0 0.0
    %545 = vmatpush1.msra.mxu0 0.0
    %546 = vmatprep.subr.mxu0 0.0
    %547 = vmatpush1.msra.mxu0 0.0
    %548 = vmatprep.mubr.f32.mxu0 0.0
    %549 = vmatmul.mubr.f32.gmra.mrb[0].mxu0 %v470
    %v550 = vpop.f32.mrb[0].mxu0
    %v551 = vadd.f32 0.0, %v550
    %v552 = vpop.f32.mrb[0].mxu0
    %553 = vmatprep.mubr.f32.mxu0 0.0
    %554 = vmatmul.mubr.f32.gmra.mrb[0].mxu0 %v473
    %v555 = vpop.f32.mrb[0].mxu0
    %v556 = vadd.f32 0.0, %v555
    %v557 = vpop.f32.mrb[0].mxu0
    %558 = vmatprep.mubr.f32.mxu0 0.0
    %559 = vmatmul.mubr.f32.gmra.mrb[0].mxu0 %v476
    %v560 = vpop.f32.mrb[0].mxu0
    %v561 = vadd.f32 0.0, %v560
    %v562 = vpop.f32.mrb[0].mxu0
    %563 = vmatprep.mubr.f32.mxu0 0.0
    %564 = vmatmul.mubr.f32.gmra.mrb[0].mxu0 %v479
    %v565 = vpop.f32.mrb[0].mxu0
    %v566 = vadd.f32 0.0, %v565
    %v567 = vpop.f32.mrb[0].mxu0
    %568 = vmatprep.mubr.f32.mxu0 0.0
    %569 = vmatmul.mubr.f32.gmra.mrb[0].mxu0 %v482
    %v570 = vpop.f32.mrb[0].mxu0
    %v571 = vadd.f32 0.0, %v570
    %v572 = vpop.f32.mrb[0].mxu0
    %573 = vdwg.mxu0
    %v574 = vadd.f32 %v446, %v551
    %v575 = vadd.f32 %v451, %v556
    %v576 = vadd.f32 %v456, %v561
    %v577 = vadd.f32 %v461, %v566
    %v578 = vadd.f32 %v466, %v571
    %v579 = vmax.f32 %v574, 0.0
    %v580 = vmax.f32 %v575, 0.0
    %v581 = vmax.f32 %v576, 0.0
    %v582 = vmax.f32 %v577, 0.0
    %v583 = vmax.f32 %v578, 0.0
    %584 = vmatprep.subr.mxu0 0.0
    %585 = vmatpush1.msra.mxu0 %v579
    %586 = vmatprep.subr.mxu0 0.0
    %587 = vmatpush1.msra.mxu0 %v580
    %588 = vmatprep.subr.mxu0 0.0
    %589 = vmatpush1.msra.mxu0 %v581
    %590 = vmatprep.subr.mxu0 0.0
    %591 = vmatpush1.msra.mxu0 %v582
    %592 = vmatprep.subr.mxu0 0.0
    %593 = vmatpush1.msra.mxu0 %v583
    %594 = vmatprep.subr.mxu0 0.0
    %595 = vmatpush1.msra.mxu0 0.0
    %596 = vmatprep.subr.mxu0 0.0
    %597 = vmatpush1.msra.mxu0 0.0
    %598 = vmatprep.subr.mxu0 0.0
    %599 = vmatpush1.msra.mxu0 0.0
    %600 = vmatprep.subr.mxu0 0.0
    %601 = vmatpush1.msra.mxu0 0.0
    %602 = vmatprep.subr.mxu0 0.0
    %603 = vmatpush1.msra.mxu0 0.0
    %604 = vmatprep.subr.mxu0 0.0
    %605 = vmatpush1.msra.mxu0 0.0
    %606 = vmatprep.subr.mxu0 0.0
    %607 = vmatpush1.msra.mxu0 0.0
    %608 = vmatprep.subr.mxu0 0.0
    %609 = vmatpush1.msra.mxu0 0.0
    %610 = vmatprep.subr.mxu0 0.0
    %611 = vmatpush1.msra.mxu0 0.0
    %612 = vmatprep.subr.mxu0 0.0
    %613 = vmatpush1.msra.mxu0 0.0
    %614 = vmatprep.subr.mxu0 0.0
    %615 = vmatpush1.msra.mxu0 0.0
    %616 = vmatprep.subr.mxu0 0.0
    %617 = vmatpush1.msra.mxu0 0.0
    %618 = vmatprep.subr.mxu0 0.0
    %619 = vmatpush1.msra.mxu0 0.0
    %620 = vmatprep.subr.mxu0 0.0
    %621 = vmatpush1.msra.mxu0 0.0
    %622 = vmatprep.subr.mxu0 0.0
    %623 = vmatpush1.msra.mxu0 0.0
    %624 = vmatprep.subr.mxu0 0.0
    %625 = vmatpush1.msra.mxu0 0.0
    %626 = vmatprep.subr.mxu0 0.0
    %627 = vmatpush1.msra.mxu0 0.0
    %628 = vmatprep.subr.mxu0 0.0
    %629 = vmatpush1.msra.mxu0 0.0
    %630 = vmatprep.subr.mxu0 0.0
    %631 = vmatpush1.msra.mxu0 0.0
    %632 = vmatprep.subr.mxu0 0.0
    %633 = vmatpush1.msra.mxu0 0.0
    %634 = vmatprep.subr.mxu0 0.0
    %635 = vmatpush1.msra.mxu0 0.0
    %636 = vmatprep.subr.mxu0 0.0
    %637 = vmatpush1.msra.mxu0 0.0
    %638 = vmatprep.subr.mxu0 0.0
    %639 = vmatpush1.msra.mxu0 0.0
    %640 = vmatprep.subr.mxu0 0.0
    %641 = vmatpush1.msra.mxu0 0.0
    %642 = vmatprep.subr.mxu0 0.0
    %643 = vmatpush1.msra.mxu0 0.0
    %644 = vmatprep.subr.mxu0 0.0
    %645 = vmatpush1.msra.mxu0 0.0
    %646 = vmatprep.subr.mxu0 0.0
    %647 = vmatpush1.msra.mxu0 0.0
    %648 = vmatprep.mubr.f32.mxu0 0.0
    %649 = vmatmul.mubr.f32.gmra.mrb[0].mxu0 %v241
    %v650 = vpop.f32.mrb[0].mxu0
    %v651 = vadd.f32 0.0, %v650
    %v652 = vpop.f32.mrb[0].mxu0
    %653 = vmatprep.mubr.f32.mxu0 0.0
    %654 = vmatmul.mubr.f32.gmra.mrb[0].mxu0 %v244
    %v655 = vpop.f32.mrb[0].mxu0
    %v656 = vadd.f32 0.0, %v655
    %v657 = vpop.f32.mrb[0].mxu0
    %658 = vmatprep.mubr.f32.mxu0 0.0
    %659 = vmatmul.mubr.f32.gmra.mrb[0].mxu0 %v247
    %v660 = vpop.f32.mrb[0].mxu0
    %v661 = vadd.f32 0.0, %v660
    %v662 = vpop.f32.mrb[0].mxu0
    %663 = vmatprep.mubr.f32.mxu0 0.0
    %664 = vmatmul.mubr.f32.gmra.mrb[0].mxu0 %v250
    %v665 = vpop.f32.mrb[0].mxu0
    %v666 = vadd.f32 0.0, %v665
    %v667 = vpop.f32.mrb[0].mxu0
    %668 = vmatprep.mubr.f32.mxu0 0.0
    %669 = vmatmul.mubr.f32.gmra.mrb[0].mxu0 %v253
    %v670 = vpop.f32.mrb[0].mxu0
    %v671 = vadd.f32 0.0, %v670
    %v672 = vpop.f32.mrb[0].mxu0
    %673 = vdwg.mxu0
    %v674 = vlaneseq
    %v675 = vshrl.u32 %v674, 7
    %v676 = vsub.s32 0, %v675
    %v677 = vrot.slane %v182, %v676
    %vm678 = vcmask 261120
    %v680 = vsel %vm678, %v651, 0
    %v683 = vsel %vm678, %v656, 0
    %v686 = vsel %vm678, %v661, 0
    %v689 = vsel %vm678, %v666, 0
    %v692 = vsel %vm678, %v671, 0
    %694 = vmatprep.subr.mxu0 0.0
    %695 = vmatpush1.msra.mxu0 %v174
    %696 = vmatprep.subr.mxu0 0.0
    %697 = vmatpush1.msra.mxu0 %v175
    %698 = vmatprep.subr.mxu0 0.0
    %699 = vmatpush1.msra.mxu0 %v176
    %700 = vmatprep.subr.mxu0 0.0
    %701 = vmatpush1.msra.mxu0 %v177
    %702 = vmatprep.subr.mxu0 0.0
    %703 = vmatpush1.msra.mxu0 0.0
    %704 = vmatprep.subr.mxu0 0.0
    %705 = vmatpush1.msra.mxu0 0.0
    %706 = vmatprep.subr.mxu0 0.0
    %707 = vmatpush1.msra.mxu0 0.0
    %708 = vmatprep.subr.mxu0 0.0
    %709 = vmatpush1.msra.mxu0 0.0
    %710 = vmatprep.subr.mxu0 0.0
    %711 = vmatpush1.msra.mxu0 0.0
    %712 = vmatprep.subr.mxu0 0.0
    %713 = vmatpush1.msra.mxu0 0.0
    %714 = vmatprep.subr.mxu0 0.0
    %715 = vmatpush1.msra.mxu0 0.0
    %716 = vmatprep.subr.mxu0 0.0
    %717 = vmatpush1.msra.mxu0 0.0
    %718 = vmatprep.subr.mxu0 0.0
    %719 = vmatpush1.msra.mxu0 0.0
    %720 = vmatprep.subr.mxu0 0.0
    %721 = vmatpush1.msra.mxu0 0.0
    %722 = vmatprep.subr.mxu0 0.0
    %723 = vmatpush1.msra.mxu0 0.0
    %724 = vmatprep.subr.mxu0 0.0
    %725 = vmatpush1.msra.mxu0 0.0
    %726 = vmatprep.subr.mxu0 0.0
    %727 = vmatpush1.msra.mxu0 0.0
    %728 = vmatprep.subr.mxu0 0.0
    %729 = vmatpush1.msra.mxu0 0.0
    %730 = vmatprep.subr.mxu0 0.0
    %731 = vmatpush1.msra.mxu0 0.0
    %732 = vmatprep.subr.mxu0 0.0
    %733 = vmatpush1.msra.mxu0 0.0
    %734 = vmatprep.subr.mxu0 0.0
    %735 = vmatpush1.msra.mxu0 0.0
    %736 = vmatprep.subr.mxu0 0.0
    %737 = vmatpush1.msra.mxu0 0.0
    %738 = vmatprep.subr.mxu0 0.0
    %739 = vmatpush1.msra.mxu0 0.0
    %740 = vmatprep.subr.mxu0 0.0
    %741 = vmatpush1.msra.mxu0 0.0
    %742 = vmatprep.subr.mxu0 0.0
    %743 = vmatpush1.msra.mxu0 0.0
    %744 = vmatprep.subr.mxu0 0.0
    %745 = vmatpush1.msra.mxu0 0.0
    %746 = vmatprep.subr.mxu0 0.0
    %747 = vmatpush1.msra.mxu0 0.0
    %748 = vmatprep.subr.mxu0 0.0
    %749 = vmatpush1.msra.mxu0 0.0
    %750 = vmatprep.subr.mxu0 0.0
    %751 = vmatpush1.msra.mxu0 0.0
    %752 = vmatprep.subr.mxu0 0.0
    %753 = vmatpush1.msra.mxu0 0.0
    %754 = vmatprep.subr.mxu0 0.0
    %755 = vmatpush1.msra.mxu0 0.0
    %756 = vmatprep.subr.mxu0 0.0
    %757 = vmatpush1.msra.mxu0 0.0
    %758 = vmatprep.mubr.f32.mxu0 0.0
    %759 = vmatmul.mubr.f32.gmra.mrb[0].mxu0 %v680
    %v760 = vpop.f32.mrb[0].mxu0
    %v761 = vadd.f32 %v677, %v760
    %v762 = vpop.f32.mrb[0].mxu0
    %763 = vmatprep.mubr.f32.mxu0 0.0
    %764 = vmatmul.mubr.f32.gmra.mrb[0].mxu0 %v683
    %v765 = vpop.f32.mrb[0].mxu0
    %v766 = vadd.f32 %v677, %v765
    %v767 = vpop.f32.mrb[0].mxu0
    %768 = vmatprep.mubr.f32.mxu0 0.0
    %769 = vmatmul.mubr.f32.gmra.mrb[0].mxu0 %v686
    %v770 = vpop.f32.mrb[0].mxu0
    %v771 = vadd.f32 %v677, %v770
    %v772 = vpop.f32.mrb[0].mxu0
    %773 = vmatprep.mubr.f32.mxu0 0.0
    %774 = vmatmul.mubr.f32.gmra.mrb[0].mxu0 %v689
    %v775 = vpop.f32.mrb[0].mxu0
    %v776 = vadd.f32 %v677, %v775
    %v777 = vpop.f32.mrb[0].mxu0
    %778 = vmatprep.mubr.f32.mxu0 0.0
    %779 = vmatmul.mubr.f32.gmra.mrb[0].mxu0 %v692
    %v780 = vpop.f32.mrb[0].mxu0
    %v781 = vadd.f32 %v677, %v780
    %v782 = vpop.f32.mrb[0].mxu0
    %783 = vdwg.mxu0
    %v785 = vsel %vm678, %v579, 0
    %v788 = vsel %vm678, %v580, 0
    %v791 = vsel %vm678, %v581, 0
    %v794 = vsel %vm678, %v582, 0
    %v797 = vsel %vm678, %v583, 0
    %799 = vmatprep.subr.mxu0 0.0
    %800 = vmatpush1.msra.mxu0 %v178
    %801 = vmatprep.subr.mxu0 0.0
    %802 = vmatpush1.msra.mxu0 %v179
    %803 = vmatprep.subr.mxu0 0.0
    %804 = vmatpush1.msra.mxu0 %v180
    %805 = vmatprep.subr.mxu0 0.0
    %806 = vmatpush1.msra.mxu0 %v181
    %807 = vmatprep.subr.mxu0 0.0
    %808 = vmatpush1.msra.mxu0 0.0
    %809 = vmatprep.subr.mxu0 0.0
    %810 = vmatpush1.msra.mxu0 0.0
    %811 = vmatprep.subr.mxu0 0.0
    %812 = vmatpush1.msra.mxu0 0.0
    %813 = vmatprep.subr.mxu0 0.0
    %814 = vmatpush1.msra.mxu0 0.0
    %815 = vmatprep.subr.mxu0 0.0
    %816 = vmatpush1.msra.mxu0 0.0
    %817 = vmatprep.subr.mxu0 0.0
    %818 = vmatpush1.msra.mxu0 0.0
    %819 = vmatprep.subr.mxu0 0.0
    %820 = vmatpush1.msra.mxu0 0.0
    %821 = vmatprep.subr.mxu0 0.0
    %822 = vmatpush1.msra.mxu0 0.0
    %823 = vmatprep.subr.mxu0 0.0
    %824 = vmatpush1.msra.mxu0 0.0
    %825 = vmatprep.subr.mxu0 0.0
    %826 = vmatpush1.msra.mxu0 0.0
    %827 = vmatprep.subr.mxu0 0.0
    %828 = vmatpush1.msra.mxu0 0.0
    %829 = vmatprep.subr.mxu0 0.0
    %830 = vmatpush1.msra.mxu0 0.0
    %831 = vmatprep.subr.mxu0 0.0
    %832 = vmatpush1.msra.mxu0 0.0
    %833 = vmatprep.subr.mxu0 0.0
    %834 = vmatpush1.msra.mxu0 0.0
    %835 = vmatprep.subr.mxu0 0.0
    %836 = vmatpush1.msra.mxu0 0.0
    %837 = vmatprep.subr.mxu0 0.0
    %838 = vmatpush1.msra.mxu0 0.0
    %839 = vmatprep.subr.mxu0 0.0
    %840 = vmatpush1.msra.mxu0 0.0
    %841 = vmatprep.subr.mxu0 0.0
    %842 = vmatpush1.msra.mxu0 0.0
    %843 = vmatprep.subr.mxu0 0.0
    %844 = vmatpush1.msra.mxu0 0.0
    %845 = vmatprep.subr.mxu0 0.0
    %846 = vmatpush1.msra.mxu0 0.0
    %847 = vmatprep.subr.mxu0 0.0
    %848 = vmatpush1.msra.mxu0 0.0
    %849 = vmatprep.subr.mxu0 0.0
    %850 = vmatpush1.msra.mxu0 0.0
    %851 = vmatprep.subr.mxu0 0.0
    %852 = vmatpush1.msra.mxu0 0.0
    %853 = vmatprep.subr.mxu0 0.0
    %854 = vmatpush1.msra.mxu0 0.0
    %855 = vmatprep.subr.mxu0 0.0
    %856 = vmatpush1.msra.mxu0 0.0
    %857 = vmatprep.subr.mxu0 0.0
    %858 = vmatpush1.msra.mxu0 0.0
    %859 = vmatprep.subr.mxu0 0.0
    %860 = vmatpush1.msra.mxu0 0.0
    %861 = vmatprep.subr.mxu0 0.0
    %862 = vmatpush1.msra.mxu0 0.0
    %863 = vmatprep.mubr.f32.mxu0 0.0
    %864 = vmatmul.mubr.f32.gmra.mrb[0].mxu0 %v785
    %v865 = vpop.f32.mrb[0].mxu0
    %v866 = vadd.f32 0.0, %v865
    %v867 = vpop.f32.mrb[0].mxu0
    %868 = vmatprep.mubr.f32.mxu0 0.0
    %869 = vmatmul.mubr.f32.gmra.mrb[0].mxu0 %v788
    %v870 = vpop.f32.mrb[0].mxu0
    %v871 = vadd.f32 0.0, %v870
    %v872 = vpop.f32.mrb[0].mxu0
    %873 = vmatprep.mubr.f32.mxu0 0.0
    %874 = vmatmul.mubr.f32.gmra.mrb[0].mxu0 %v791
    %v875 = vpop.f32.mrb[0].mxu0
    %v876 = vadd.f32 0.0, %v875
    %v877 = vpop.f32.mrb[0].mxu0
    %878 = vmatprep.mubr.f32.mxu0 0.0
    %879 = vmatmul.mubr.f32.gmra.mrb[0].mxu0 %v794
    %v880 = vpop.f32.mrb[0].mxu0
    %v881 = vadd.f32 0.0, %v880
    %v882 = vpop.f32.mrb[0].mxu0
    %883 = vmatprep.mubr.f32.mxu0 0.0
    %884 = vmatmul.mubr.f32.gmra.mrb[0].mxu0 %v797
    %v885 = vpop.f32.mrb[0].mxu0
    %v886 = vadd.f32 0.0, %v885
    %v887 = vpop.f32.mrb[0].mxu0
    %888 = vdwg.mxu0
    %v889 = vadd.f32 %v761, %v866
    %v890 = vadd.f32 %v766, %v871
    %v891 = vadd.f32 %v771, %v876
    %v892 = vadd.f32 %v776, %v881
    %v893 = vadd.f32 %v781, %v886
    %894 = vxpose.xlu0.b32.start [1/16] %v889, 128
    %895 = vxpose.xlu0.b32.cont [2/16] %v890, 128
    %896 = vxpose.xlu0.b32.cont [3/16] %v891, 128
    %897 = vxpose.xlu0.b32.cont [4/16] %v892, 128
    %898 = vxpose.xlu0.b32.cont [5/16] %v893, 128
    %899 = vxpose.xlu0.b32.cont [6/16] 0.0, 128
    %900 = vxpose.xlu0.b32.cont [7/16] 0.0, 128
    %901 = vxpose.xlu0.b32.cont [8/16] 0.0, 128
    %902 = vxpose.xlu0.b32.cont [9/16] 0.0, 128
    %903 = vxpose.xlu0.b32.cont [10/16] 0.0, 128
    %904 = vxpose.xlu0.b32.cont [11/16] 0.0, 128
    %905 = vxpose.xlu0.b32.cont [12/16] 0.0, 128
    %906 = vxpose.xlu0.b32.cont [13/16] 0.0, 128
    %907 = vxpose.xlu0.b32.cont [14/16] 0.0, 128
    %908 = vxpose.xlu0.b32.cont [15/16] 0.0, 128
    %909 = vxpose.xlu0.b32.end [16/16] 0.0, 128
    %v910 = vpop.trf.xlu0
    %v911 = vpop.trf.xlu0
    %v912 = vpop.trf.xlu0
    %v913 = vpop.trf.xlu0
    %v914 = vpop.trf.xlu0
    %v915 = vpop.trf.xlu0
    %v916 = vpop.trf.xlu0
    %v917 = vpop.trf.xlu0
    %v918 = vpop.trf.xlu0
    %v919 = vpop.trf.xlu0
    %v920 = vpop.trf.xlu0
    %v921 = vpop.trf.xlu0
    %v922 = vpop.trf.xlu0
    %v923 = vpop.trf.xlu0
    %v924 = vpop.trf.xlu0
    %v925 = vpop.trf.xlu0
    %v926 = vlaneseq
    %v927 = vshrl.u32 %v926, 7
    %v928 = vsub.s32 0, %v927
    %v929 = vrot.slane %v910, %v928
    %931 = vset.pattern.permute.xlu0 0
    %932 = vperm.xlu0 %931, %v889
    %v933 = vpop.permute.xlu0 %932
    %936 = vset.pattern.permute.xlu0 0
    %937 = vperm.xlu0 %936, %v890
    %v938 = vpop.permute.xlu0 %937
    %941 = vset.pattern.permute.xlu0 0
    %942 = vperm.xlu0 %941, %v891
    %v943 = vpop.permute.xlu0 %942
    %946 = vset.pattern.permute.xlu0 0
    %947 = vperm.xlu0 %946, %v892
    %v948 = vpop.permute.xlu0 %947
    %951 = vset.pattern.permute.xlu0 0
    %952 = vperm.xlu0 %951, %v893
    %v953 = vpop.permute.xlu0 %952
    %vm955 = vcmp.gt.f32.partialorder %v929, %v933
    %vm956 = vcmp.gt.f32.partialorder %v929, %v938
    %vm957 = vcmp.gt.f32.partialorder %v929, %v943
    %vm958 = vcmp.gt.f32.partialorder %v929, %v948
    %vm959 = vcmp.gt.f32.partialorder %v929, %v953
    %vm960 = vcmp.eq.f32.partialorder %v929, %v933
    %vm961 = vcmp.eq.f32.partialorder %v929, %v938
    %vm962 = vcmp.eq.f32.partialorder %v929, %v943
    %vm963 = vcmp.eq.f32.partialorder %v929, %v948
    %vm964 = vcmp.eq.f32.partialorder %v929, %v953
    %vm965 = vcmp.lt.s32.totalorder %v79, %v93
    %vm966 = vcmp.lt.s32.totalorder %v79, %v94
    %vm967 = vcmp.lt.s32.totalorder %v79, %v95
    %vm968 = vcmp.lt.s32.totalorder %v79, %v96
    %vm969 = vcmp.lt.s32.totalorder %v79, %v97
    %vm970 = vmand %vm960, %vm965
    %vm971 = vmand %vm961, %vm966
    %vm972 = vmand %vm962, %vm967
    %vm973 = vmand %vm963, %vm968
    %vm974 = vmand %vm964, %vm969
    %vm975 = vmor %vm955, %vm970
    %vm976 = vmor %vm956, %vm971
    %vm977 = vmor %vm957, %vm972
    %vm978 = vmor %vm958, %vm973
    %vm979 = vmor %vm959, %vm974
    %vm980 = vcmp.gt.f32.partialorder %v156, 0.5
    %vm981 = vcmp.gt.f32.partialorder %v157, 0.5
    %vm982 = vcmp.gt.f32.partialorder %v158, 0.5
    %vm983 = vcmp.gt.f32.partialorder %v159, 0.5
    %vm984 = vcmp.gt.f32.partialorder %v160, 0.5
    %vm985 = vcmp.gt.f32.partialorder %v199, 0.5
    %v986 = vsel %vm985, 1, 0
    %v987 = vlaneseq
    %v988 = vshrl.u32 %v987, 7
    %v989 = vsub.s32 0, %v988
    %v990 = vrot.slane %v986, %v989
    %vm991 = vcmp.eq.s32.totalorder %v990, 1
    %vm992 = vmand %vm980, %vm991
    %vm993 = vmand %vm981, %vm991
    %vm994 = vmand %vm982, %vm991
    %vm995 = vmand %vm983, %vm991
    %vm996 = vmand %vm984, %vm991
    %vm997 = vmand %vm975, %vm992
    %vm998 = vmand %vm976, %vm993
    %vm999 = vmand %vm977, %vm994
    %vm1000 = vmand %vm978, %vm995
    %vm1001 = vmand %vm979, %vm996
    %v1002 = vsel %vm997, 1.0, 0.0
    %v1003 = vsel %vm998, 1.0, 0.0
    %v1004 = vsel %vm999, 1.0, 0.0
    %v1005 = vsel %vm1000, 1.0, 0.0
    %v1006 = vsel %vm1001, 1.0, 0.0
    %v1007 = vsel %vm224, %v1002, 0.0
    %1008 = vadd.xlane.f32.xlu0 %v1007
    %v1009 = vpop.xlane.xlu0 %1008
    %v1010 = vsel %vm224, %v1003, 0.0
    %1011 = vadd.xlane.f32.xlu0 %v1010
    %v1012 = vpop.xlane.xlu0 %1011
    %v1013 = vsel %vm224, %v1004, 0.0
    %1014 = vadd.xlane.f32.xlu0 %v1013
    %v1015 = vpop.xlane.xlu0 %1014
    %v1016 = vsel %vm224, %v1005, 0.0
    %1017 = vadd.xlane.f32.xlu0 %v1016
    %v1018 = vpop.xlane.xlu0 %1017
    %v1019 = vsel %vm224, %v1006, 0.0
    %1020 = vadd.xlane.f32.xlu0 %v1019
    %v1021 = vpop.xlane.xlu0 %1020
    %vm1022 = vcmp.gt.f32.partialorder 1.0, 0.5
    %vm1023 = vcmp.lt.f32.partialorder %v1009, 4.0
    %vm1024 = vcmp.lt.f32.partialorder %v1012, 4.0
    %vm1025 = vcmp.lt.f32.partialorder %v1015, 4.0
    %vm1026 = vcmp.lt.f32.partialorder %v1018, 4.0
    %vm1027 = vcmp.lt.f32.partialorder %v1021, 4.0
    %vm1028 = vmand %vm1022, %vm1023
    %vm1029 = vmand %vm1022, %vm1024
    %vm1030 = vmand %vm1022, %vm1025
    %vm1031 = vmand %vm1022, %vm1026
    %vm1032 = vmand %vm1022, %vm1027
    %v1033 = vsel %vm1028, 1.0, 0.0
    %v1034 = vsel %vm1029, 1.0, 0.0
    %v1035 = vsel %vm1030, 1.0, 0.0
    %v1036 = vsel %vm1031, 1.0, 0.0
    %v1037 = vsel %vm1032, 1.0, 0.0
    %1038 = vxpose.xlu0.b32.start [1/16] %v1033, 128
    %1039 = vxpose.xlu0.b32.cont [2/16] %v1034, 128
    %1040 = vxpose.xlu0.b32.cont [3/16] %v1035, 128
    %1041 = vxpose.xlu0.b32.cont [4/16] %v1036, 128
    %1042 = vxpose.xlu0.b32.cont [5/16] %v1037, 128
    %1043 = vxpose.xlu0.b32.cont [6/16] 0.0, 128
    %1044 = vxpose.xlu0.b32.cont [7/16] 0.0, 128
    %1045 = vxpose.xlu0.b32.cont [8/16] 0.0, 128
    %1046 = vxpose.xlu0.b32.cont [9/16] 0.0, 128
    %1047 = vxpose.xlu0.b32.cont [10/16] 0.0, 128
    %1048 = vxpose.xlu0.b32.cont [11/16] 0.0, 128
    %1049 = vxpose.xlu0.b32.cont [12/16] 0.0, 128
    %1050 = vxpose.xlu0.b32.cont [13/16] 0.0, 128
    %1051 = vxpose.xlu0.b32.cont [14/16] 0.0, 128
    %1052 = vxpose.xlu0.b32.cont [15/16] 0.0, 128
    %1053 = vxpose.xlu0.b32.end [16/16] 0.0, 128
    %v1054 = vpop.trf.xlu0
    %v1055 = vpop.trf.xlu0
    %v1056 = vpop.trf.xlu0
    %v1057 = vpop.trf.xlu0
    %v1058 = vpop.trf.xlu0
    %v1059 = vpop.trf.xlu0
    %v1060 = vpop.trf.xlu0
    %v1061 = vpop.trf.xlu0
    %v1062 = vpop.trf.xlu0
    %v1063 = vpop.trf.xlu0
    %v1064 = vpop.trf.xlu0
    %v1065 = vpop.trf.xlu0
    %v1066 = vpop.trf.xlu0
    %v1067 = vpop.trf.xlu0
    %v1068 = vpop.trf.xlu0
    %v1069 = vpop.trf.xlu0
    %v1070 = vtanh.pop %v889
    %v1071 = vtanh.pop %v890
    %v1072 = vtanh.pop %v891
    %v1073 = vtanh.pop %v892
    %v1074 = vtanh.pop %v893
    %1076 = vset.pattern.permute.xlu0 0
    %1077 = vperm.xlu0 %1076, %v1070
    %v1078 = vpop.permute.xlu0 %1077
    %1081 = vset.pattern.permute.xlu0 0
    %1082 = vperm.xlu0 %1081, %v1071
    %v1083 = vpop.permute.xlu0 %1082
    %1086 = vset.pattern.permute.xlu0 0
    %1087 = vperm.xlu0 %1086, %v1072
    %v1088 = vpop.permute.xlu0 %1087
    %1091 = vset.pattern.permute.xlu0 0
    %1092 = vperm.xlu0 %1091, %v1073
    %v1093 = vpop.permute.xlu0 %1092
    %1096 = vset.pattern.permute.xlu0 0
    %1097 = vperm.xlu0 %1096, %v1074
    %v1098 = vpop.permute.xlu0 %1097
    %v1100 = vmul.f32 %v579, %v1078
    %v1101 = vmul.f32 %v580, %v1083
    %v1102 = vmul.f32 %v581, %v1088
    %v1103 = vmul.f32 %v582, %v1093
    %v1104 = vmul.f32 %v583, %v1098
    %v1105 = vmul.f32 %v1100, %v1033
    %v1106 = vmul.f32 %v1101, %v1034
    %v1107 = vmul.f32 %v1102, %v1035
    %v1108 = vmul.f32 %v1103, %v1036
    %v1109 = vmul.f32 %v1104, %v1037
    %v1110 = vlaneseq
    %v1111 = vshrl.u32 %v1110, 7
    %v1112 = vsub.s32 0, %v1111
    %v1113 = vrot.slane %v1054, %v1112
    %v1114 = vmul.f32 %v104, %v1113
    %vm1115 = vcmask 320512
    %v1116 = vsel %vm1115, %v1114, 0.0
    %1117 = vadd.xlane.f32.xlu0 %v1116
    %v1118 = vpop.xlane.xlu0 %1117
    %v1119 = vmax.f32 %v1118, 1.0
    %v1121 = vsel %vm224, %v1114, 0
    %1123 = vmatprep.subr.mxu0 0.0
    %1124 = vmatpush1.msra.mxu0 %v1105
    %1125 = vmatprep.subr.mxu0 0.0
    %1126 = vmatpush1.msra.mxu0 %v1106
    %1127 = vmatprep.subr.mxu0 0.0
    %1128 = vmatpush1.msra.mxu0 %v1107
    %1129 = vmatprep.subr.mxu0 0.0
    %1130 = vmatpush1.msra.mxu0 %v1108
    %1131 = vmatprep.subr.mxu0 0.0
    %1132 = vmatpush1.msra.mxu0 %v1109
    %1133 = vmatprep.subr.mxu0 0.0
    %1134 = vmatpush1.msra.mxu0 0.0
    %1135 = vmatprep.subr.mxu0 0.0
    %1136 = vmatpush1.msra.mxu0 0.0
    %1137 = vmatprep.subr.mxu0 0.0
    %1138 = vmatpush1.msra.mxu0 0.0
    %1139 = vmatprep.subr.mxu0 0.0
    %1140 = vmatpush1.msra.mxu0 0.0
    %1141 = vmatprep.subr.mxu0 0.0
    %1142 = vmatpush1.msra.mxu0 0.0
    %1143 = vmatprep.subr.mxu0 0.0
    %1144 = vmatpush1.msra.mxu0 0.0
    %1145 = vmatprep.subr.mxu0 0.0
    %1146 = vmatpush1.msra.mxu0 0.0
    %1147 = vmatprep.subr.mxu0 0.0
    %1148 = vmatpush1.msra.mxu0 0.0
    %1149 = vmatprep.subr.mxu0 0.0
    %1150 = vmatpush1.msra.mxu0 0.0
    %1151 = vmatprep.subr.mxu0 0.0
    %1152 = vmatpush1.msra.mxu0 0.0
    %1153 = vmatprep.subr.mxu0 0.0
    %1154 = vmatpush1.msra.mxu0 0.0
    %1155 = vmatprep.subr.mxu0 0.0
    %1156 = vmatpush1.msra.mxu0 0.0
    %1157 = vmatprep.subr.mxu0 0.0
    %1158 = vmatpush1.msra.mxu0 0.0
    %1159 = vmatprep.subr.mxu0 0.0
    %1160 = vmatpush1.msra.mxu0 0.0
    %1161 = vmatprep.subr.mxu0 0.0
    %1162 = vmatpush1.msra.mxu0 0.0
    %1163 = vmatprep.subr.mxu0 0.0
    %1164 = vmatpush1.msra.mxu0 0.0
    %1165 = vmatprep.subr.mxu0 0.0
    %1166 = vmatpush1.msra.mxu0 0.0
    %1167 = vmatprep.subr.mxu0 0.0
    %1168 = vmatpush1.msra.mxu0 0.0
    %1169 = vmatprep.subr.mxu0 0.0
    %1170 = vmatpush1.msra.mxu0 0.0
    %1171 = vmatprep.subr.mxu0 0.0
    %1172 = vmatpush1.msra.mxu0 0.0
    %1173 = vmatprep.subr.mxu0 0.0
    %1174 = vmatpush1.msra.mxu0 0.0
    %1175 = vmatprep.subr.mxu0 0.0
    %1176 = vmatpush1.msra.mxu0 0.0
    %1177 = vmatprep.subr.mxu0 0.0
    %1178 = vmatpush1.msra.mxu0 0.0
    %1179 = vmatprep.subr.mxu0 0.0
    %1180 = vmatpush1.msra.mxu0 0.0
    %1181 = vmatprep.subr.mxu0 0.0
    %1182 = vmatpush1.msra.mxu0 0.0
    %1183 = vmatprep.subr.mxu0 0.0
    %1184 = vmatpush1.msra.mxu0 0.0
    %1185 = vmatprep.subr.mxu0 0.0
    %1186 = vmatpush1.msra.mxu0 0.0
    %1187 = vmatprep.mubr.f32.mxu0 0.0
    %1188 = vmatmul.mubr.f32.gmra.mrb[0].mxu0 %v1121
    %v1189 = vpop.f32.mrb[0].mxu0
    %v1190 = vadd.f32 0.0, %v1189
    %v1191 = vpop.f32.mrb[0].mxu0
    %1192 = vdwg.mxu0
    %v1193 = vrcp.pop %v1119
    %v1194 = vmul.f32 %v1190, %v1193
    %vm1195 = vcmp.gt.f32.partialorder %v1033, 0.5
    %vm1196 = vcmp.gt.f32.partialorder %v1034, 0.5
    %vm1197 = vcmp.gt.f32.partialorder %v1035, 0.5
    %vm1198 = vcmp.gt.f32.partialorder %v1036, 0.5
    %vm1199 = vcmp.gt.f32.partialorder %v1037, 0.5
    %vm1200 = vmand %vm115, %vm1195
    %vm1201 = vmand %vm116, %vm1196
    %vm1202 = vmand %vm117, %vm1197
    %vm1203 = vmand %vm118, %vm1198
    %vm1204 = vmand %vm119, %vm1199
    %v1205 = vsel %vm1200, 1, 0
    %v1206 = vsel %vm1201, 1, 0
    %v1207 = vsel %vm1202, 1, 0
    %v1208 = vsel %vm1203, 1, 0
    %v1209 = vsel %vm1204, 1, 0
    %vm1210 = vcmp.eq.s32.totalorder %v1205, 1
    %vm1211 = vcmp.eq.s32.totalorder %v1206, 1
    %vm1212 = vcmp.eq.s32.totalorder %v1207, 1
    %vm1213 = vcmp.eq.s32.totalorder %v1208, 1
    %vm1214 = vcmp.eq.s32.totalorder %v1209, 1
    %v1215 = vsel %vm1210, %v1105, -1e+30
    %v1216 = vsel %vm1211, %v1106, -1e+30
    %v1217 = vsel %vm1212, %v1107, -1e+30
    %v1218 = vsel %vm1213, %v1108, -1e+30
    %v1219 = vsel %vm1214, %v1109, -1e+30
    %v1220 = vsel %vm678, %v1215, -inf
    %v1221 = vsel %vm678, %v1216, -inf
    %v1222 = vsel %vm678, %v1217, -inf
    %v1223 = vsel %vm678, %v1218, -inf
    %v1224 = vsel %vm678, %v1219, -inf
    %v1225 = vmax.f32 %v1220, %v1224
    %v1226 = vmax.f32 %v1225, %v1221
    %v1227 = vmax.f32 %v1222, %v1223
    %v1228 = vmax.f32 %v1226, %v1227
    %v1229 = vrot.slane %v1228, 4
    %v1230 = vmax.f32 %v1228, %v1229
    %v1231 = vrot.slane %v1230, 2
    %v1232 = vmax.f32 %v1230, %v1231
    %v1233 = vrot.slane %v1232, 1
    %v1234 = vmax.f32 %v1232, %v1233
    %vm1235 = vcmp.eq.s32.totalorder %v93, 0
    %v1236 = vsel %vm1235, %v1234, 0.0
    %vm1237 = vmand %vm143, %vm1195
    %vm1238 = vmand %vm144, %vm1196
    %vm1239 = vmand %vm145, %vm1197
    %vm1240 = vmand %vm146, %vm1198
    %vm1241 = vmand %vm147, %vm1199
    %v1242 = vsel %vm1237, 1, 0
    %v1243 = vsel %vm1238, 1, 0
    %v1244 = vsel %vm1239, 1, 0
    %v1245 = vsel %vm1240, 1, 0
    %v1246 = vsel %vm1241, 1, 0
    %vm1247 = vcmp.eq.s32.totalorder %v1242, 1
    %vm1248 = vcmp.eq.s32.totalorder %v1243, 1
    %vm1249 = vcmp.eq.s32.totalorder %v1244, 1
    %vm1250 = vcmp.eq.s32.totalorder %v1245, 1
    %vm1251 = vcmp.eq.s32.totalorder %v1246, 1
    %v1252 = vsel %vm1247, %v1105, -1e+30
    %v1253 = vsel %vm1248, %v1106, -1e+30
    %v1254 = vsel %vm1249, %v1107, -1e+30
    %v1255 = vsel %vm1250, %v1108, -1e+30
    %v1256 = vsel %vm1251, %v1109, -1e+30
    %v1257 = vsel %vm678, %v1252, -inf
    %v1258 = vsel %vm678, %v1253, -inf
    %v1259 = vsel %vm678, %v1254, -inf
    %v1260 = vsel %vm678, %v1255, -inf
    %v1261 = vsel %vm678, %v1256, -inf
    %v1262 = vmax.f32 %v1257, %v1261
    %v1263 = vmax.f32 %v1262, %v1258
    %v1264 = vmax.f32 %v1259, %v1260
    %v1265 = vmax.f32 %v1263, %v1264
    %v1266 = vrot.slane %v1265, 4
    %v1267 = vmax.f32 %v1265, %v1266
    %v1268 = vrot.slane %v1267, 2
    %v1269 = vmax.f32 %v1267, %v1268
    %v1270 = vrot.slane %v1269, 1
    %v1271 = vmax.f32 %v1269, %v1270
    %vm1272 = vcmp.eq.s32.totalorder %v93, 1
    %v1273 = vsel %vm1272, %v1271, %v1236
    %v1274 = vadd.f32 %v1273, 0.0
    %v1275 = vadd.f32 %v1194, 0.0
    %v1276 = vld [vmem:[#allocation6 + $0xb0] sm:$0xff]
    %v1277 = vld [vmem:[#allocation6 + $0xb8] sm:$0xff]
    %v1278 = vld [vmem:[#allocation6 + $0xc0] sm:$0xff]
    %v1279 = vld [vmem:[#allocation6 + $0xc8] sm:$0xff]
    %v1280 = vld [vmem:[#allocation6 + $0xd0] sm:$0xff]
    %v1281 = vld [vmem:[#allocation6 + $0xd8] sm:$0xff]
    %v1282 = vld [vmem:[#allocation6 + $0xe0] sm:$0xff]
    %v1283 = vld [vmem:[#allocation6 + $0xe8] sm:$0xff]
    %v1284 = vld [vmem:[#allocation6 + $0xf0] sm:$0x1]
    %v1285 = vld [vmem:[#allocation6 + $0xf8] sm:$0xff]
    %v1286 = vld [vmem:[#allocation6 + $0x100] sm:$0xff]
    %v1287 = vld [vmem:[#allocation6 + $0x108] sm:$0xff]
    %v1288 = vld [vmem:[#allocation6 + $0x110] sm:$0xff]
    %v1289 = vld [vmem:[#allocation6 + $0x118] sm:$0xff]
    %v1290 = vld [vmem:[#allocation6 + $0x120] sm:$0xff]
    %v1291 = vld [vmem:[#allocation6 + $0x128] sm:$0xff]
    %v1292 = vld [vmem:[#allocation6 + $0x130] sm:$0xff]
    %v1293 = vld [vmem:[#allocation6 + $0x138] sm:$0x1]
    %v1294 = vmul.f32 %v87, %v1113
    %v1295 = vmul.f32 %v88, %v1113
    %v1296 = vmul.f32 %v89, %v1113
    %v1297 = vmul.f32 %v90, %v1113
    %v1298 = vmul.f32 %v91, %v1113
    %v1299 = vsel %vm224, %v1294, 0.0
    %1300 = vadd.xlane.f32.xlu0 %v1299
    %v1301 = vpop.xlane.xlu0 %1300
    %v1302 = vsel %vm224, %v1295, 0.0
    %1303 = vadd.xlane.f32.xlu0 %v1302
    %v1304 = vpop.xlane.xlu0 %1303
    %v1305 = vsel %vm224, %v1296, 0.0
    %1306 = vadd.xlane.f32.xlu0 %v1305
    %v1307 = vpop.xlane.xlu0 %1306
    %v1308 = vsel %vm224, %v1297, 0.0
    %1309 = vadd.xlane.f32.xlu0 %v1308
    %v1310 = vpop.xlane.xlu0 %1309
    %v1311 = vsel %vm224, %v1298, 0.0
    %1312 = vadd.xlane.f32.xlu0 %v1311
    %v1313 = vpop.xlane.xlu0 %1312
    %v1315 = vsel %vm224, %v1294, 0
    %v1318 = vsel %vm224, %v1295, 0
    %v1321 = vsel %vm224, %v1296, 0
    %v1324 = vsel %vm224, %v1297, 0
    %v1327 = vsel %vm224, %v1298, 0
    %1329 = vmatprep.subr.mxu0 0.0
    %1330 = vmatpush1.msra.mxu0 %v1105
    %1331 = vmatprep.subr.mxu0 0.0
    %1332 = vmatpush1.msra.mxu0 %v1106
    %1333 = vmatprep.subr.mxu0 0.0
    %1334 = vmatpush1.msra.mxu0 %v1107
    %1335 = vmatprep.subr.mxu0 0.0
    %1336 = vmatpush1.msra.mxu0 %v1108
    %1337 = vmatprep.subr.mxu0 0.0
    %1338 = vmatpush1.msra.mxu0 %v1109
    %1339 = vmatprep.subr.mxu0 0.0
    %1340 = vmatpush1.msra.mxu0 0.0
    %1341 = vmatprep.subr.mxu0 0.0
    %1342 = vmatpush1.msra.mxu0 0.0
    %1343 = vmatprep.subr.mxu0 0.0
    %1344 = vmatpush1.msra.mxu0 0.0
    %1345 = vmatprep.subr.mxu0 0.0
    %1346 = vmatpush1.msra.mxu0 0.0
    %1347 = vmatprep.subr.mxu0 0.0
    %1348 = vmatpush1.msra.mxu0 0.0
    %1349 = vmatprep.subr.mxu0 0.0
    %1350 = vmatpush1.msra.mxu0 0.0
    %1351 = vmatprep.subr.mxu0 0.0
    %1352 = vmatpush1.msra.mxu0 0.0
    %1353 = vmatprep.subr.mxu0 0.0
    %1354 = vmatpush1.msra.mxu0 0.0
    %1355 = vmatprep.subr.mxu0 0.0
    %1356 = vmatpush1.msra.mxu0 0.0
    %1357 = vmatprep.subr.mxu0 0.0
    %1358 = vmatpush1.msra.mxu0 0.0
    %1359 = vmatprep.subr.mxu0 0.0
    %1360 = vmatpush1.msra.mxu0 0.0
    %1361 = vmatprep.subr.mxu0 0.0
    %1362 = vmatpush1.msra.mxu0 0.0
    %1363 = vmatprep.subr.mxu0 0.0
    %1364 = vmatpush1.msra.mxu0 0.0
    %1365 = vmatprep.subr.mxu0 0.0
    %1366 = vmatpush1.msra.mxu0 0.0
    %1367 = vmatprep.subr.mxu0 0.0
    %1368 = vmatpush1.msra.mxu0 0.0
    %1369 = vmatprep.subr.mxu0 0.0
    %1370 = vmatpush1.msra.mxu0 0.0
    %1371 = vmatprep.subr.mxu0 0.0
    %1372 = vmatpush1.msra.mxu0 0.0
    %1373 = vmatprep.subr.mxu0 0.0
    %1374 = vmatpush1.msra.mxu0 0.0
    %1375 = vmatprep.subr.mxu0 0.0
    %1376 = vmatpush1.msra.mxu0 0.0
    %1377 = vmatprep.subr.mxu0 0.0
    %1378 = vmatpush1.msra.mxu0 0.0
    %1379 = vmatprep.subr.mxu0 0.0
    %1380 = vmatpush1.msra.mxu0 0.0
    %1381 = vmatprep.subr.mxu0 0.0
    %1382 = vmatpush1.msra.mxu0 0.0
    %1383 = vmatprep.subr.mxu0 0.0
    %1384 = vmatpush1.msra.mxu0 0.0
    %1385 = vmatprep.subr.mxu0 0.0
    %1386 = vmatpush1.msra.mxu0 0.0
    %1387 = vmatprep.subr.mxu0 0.0
    %1388 = vmatpush1.msra.mxu0 0.0
    %1389 = vmatprep.subr.mxu0 0.0
    %1390 = vmatpush1.msra.mxu0 0.0
    %1391 = vmatprep.subr.mxu0 0.0
    %1392 = vmatpush1.msra.mxu0 0.0
    %1393 = vmatprep.mubr.f32.mxu0 0.0
    %1394 = vmatmul.mubr.f32.gmra.mrb[0].mxu0 %v1315
    %v1395 = vpop.f32.mrb[0].mxu0
    %v1396 = vadd.f32 0.0, %v1395
    %v1397 = vpop.f32.mrb[0].mxu0
    %1398 = vmatprep.mubr.f32.mxu0 0.0
    %1399 = vmatmul.mubr.f32.gmra.mrb[0].mxu0 %v1318
    %v1400 = vpop.f32.mrb[0].mxu0
    %v1401 = vadd.f32 0.0, %v1400
    %v1402 = vpop.f32.mrb[0].mxu0
    %1403 = vmatprep.mubr.f32.mxu0 0.0
    %1404 = vmatmul.mubr.f32.gmra.mrb[0].mxu0 %v1321
    %v1405 = vpop.f32.mrb[0].mxu0
    %v1406 = vadd.f32 0.0, %v1405
    %v1407 = vpop.f32.mrb[0].mxu0
    %1408 = vmatprep.mubr.f32.mxu0 0.0
    %1409 = vmatmul.mubr.f32.gmra.mrb[0].mxu0 %v1324
    %v1410 = vpop.f32.mrb[0].mxu0
    %v1411 = vadd.f32 0.0, %v1410
    %v1412 = vpop.f32.mrb[0].mxu0
    %1413 = vmatprep.mubr.f32.mxu0 0.0
    %1414 = vmatmul.mubr.f32.gmra.mrb[0].mxu0 %v1327
    %v1415 = vpop.f32.mrb[0].mxu0
    %v1416 = vadd.f32 0.0, %v1415
    %v1417 = vpop.f32.mrb[0].mxu0
    %1418 = vdwg.mxu0
    %v1419 = vmax.f32 %v1301, 1.0
    %v1420 = vmax.f32 %v1304, 1.0
    %v1421 = vmax.f32 %v1307, 1.0
    %v1422 = vmax.f32 %v1310, 1.0
    %v1423 = vmax.f32 %v1313, 1.0
    %v1424 = vrcp.pop %v1419
    %v1425 = vmul.f32 %v1396, %v1424
    %v1426 = vrcp.pop %v1420
    %v1427 = vmul.f32 %v1401, %v1426
    %v1428 = vrcp.pop %v1421
    %v1429 = vmul.f32 %v1406, %v1428
    %v1430 = vrcp.pop %v1422
    %v1431 = vmul.f32 %v1411, %v1430
    %v1432 = vrcp.pop %v1423
    %v1433 = vmul.f32 %v1416, %v1432
    %v1434 = vlaneseq
    %v1435 = vshrl.u32 %v1434, 7
    %v1436 = vsub.s32 0, %v1435
    %v1437 = vrot.slane %v1284, %v1436
    %v1439 = vsel %vm678, %v1425, 0
    %v1442 = vsel %vm678, %v1427, 0
    %v1445 = vsel %vm678, %v1429, 0
    %v1448 = vsel %vm678, %v1431, 0
    %v1451 = vsel %vm678, %v1433, 0
    %1453 = vmatprep.subr.mxu0 0.0
    %1454 = vmatpush1.msra.mxu0 %v1276
    %1455 = vmatprep.subr.mxu0 0.0
    %1456 = vmatpush1.msra.mxu0 %v1277
    %1457 = vmatprep.subr.mxu0 0.0
    %1458 = vmatpush1.msra.mxu0 %v1278
    %1459 = vmatprep.subr.mxu0 0.0
    %1460 = vmatpush1.msra.mxu0 %v1279
    %1461 = vmatprep.subr.mxu0 0.0
    %1462 = vmatpush1.msra.mxu0 0.0
    %1463 = vmatprep.subr.mxu0 0.0
    %1464 = vmatpush1.msra.mxu0 0.0
    %1465 = vmatprep.subr.mxu0 0.0
    %1466 = vmatpush1.msra.mxu0 0.0
    %1467 = vmatprep.subr.mxu0 0.0
    %1468 = vmatpush1.msra.mxu0 0.0
    %1469 = vmatprep.subr.mxu0 0.0
    %1470 = vmatpush1.msra.mxu0 0.0
    %1471 = vmatprep.subr.mxu0 0.0
    %1472 = vmatpush1.msra.mxu0 0.0
    %1473 = vmatprep.subr.mxu0 0.0
    %1474 = vmatpush1.msra.mxu0 0.0
    %1475 = vmatprep.subr.mxu0 0.0
    %1476 = vmatpush1.msra.mxu0 0.0
    %1477 = vmatprep.subr.mxu0 0.0
    %1478 = vmatpush1.msra.mxu0 0.0
    %1479 = vmatprep.subr.mxu0 0.0
    %1480 = vmatpush1.msra.mxu0 0.0
    %1481 = vmatprep.subr.mxu0 0.0
    %1482 = vmatpush1.msra.mxu0 0.0
    %1483 = vmatprep.subr.mxu0 0.0
    %1484 = vmatpush1.msra.mxu0 0.0
    %1485 = vmatprep.subr.mxu0 0.0
    %1486 = vmatpush1.msra.mxu0 0.0
    %1487 = vmatprep.subr.mxu0 0.0
    %1488 = vmatpush1.msra.mxu0 0.0
    %1489 = vmatprep.subr.mxu0 0.0
    %1490 = vmatpush1.msra.mxu0 0.0
    %1491 = vmatprep.subr.mxu0 0.0
    %1492 = vmatpush1.msra.mxu0 0.0
    %1493 = vmatprep.subr.mxu0 0.0
    %1494 = vmatpush1.msra.mxu0 0.0
    %1495 = vmatprep.subr.mxu0 0.0
    %1496 = vmatpush1.msra.mxu0 0.0
    %1497 = vmatprep.subr.mxu0 0.0
    %1498 = vmatpush1.msra.mxu0 0.0
    %1499 = vmatprep.subr.mxu0 0.0
    %1500 = vmatpush1.msra.mxu0 0.0
    %1501 = vmatprep.subr.mxu0 0.0
    %1502 = vmatpush1.msra.mxu0 0.0
    %1503 = vmatprep.subr.mxu0 0.0
    %1504 = vmatpush1.msra.mxu0 0.0
    %1505 = vmatprep.subr.mxu0 0.0
    %1506 = vmatpush1.msra.mxu0 0.0
    %1507 = vmatprep.subr.mxu0 0.0
    %1508 = vmatpush1.msra.mxu0 0.0
    %1509 = vmatprep.subr.mxu0 0.0
    %1510 = vmatpush1.msra.mxu0 0.0
    %1511 = vmatprep.subr.mxu0 0.0
    %1512 = vmatpush1.msra.mxu0 0.0
    %1513 = vmatprep.subr.mxu0 0.0
    %1514 = vmatpush1.msra.mxu0 0.0
    %1515 = vmatprep.subr.mxu0 0.0
    %1516 = vmatpush1.msra.mxu0 0.0
    %1517 = vmatprep.mubr.f32.mxu0 0.0
    %1518 = vmatmul.mubr.f32.gmra.mrb[0].mxu0 %v1439
    %v1519 = vpop.f32.mrb[0].mxu0
    %v1520 = vadd.f32 %v1437, %v1519
    %v1521 = vpop.f32.mrb[0].mxu0
    %1522 = vmatprep.mubr.f32.mxu0 0.0
    %1523 = vmatmul.mubr.f32.gmra.mrb[0].mxu0 %v1442
    %v1524 = vpop.f32.mrb[0].mxu0
    %v1525 = vadd.f32 %v1437, %v1524
    %v1526 = vpop.f32.mrb[0].mxu0
    %1527 = vmatprep.mubr.f32.mxu0 0.0
    %1528 = vmatmul.mubr.f32.gmra.mrb[0].mxu0 %v1445
    %v1529 = vpop.f32.mrb[0].mxu0
    %v1530 = vadd.f32 %v1437, %v1529
    %v1531 = vpop.f32.mrb[0].mxu0
    %1532 = vmatprep.mubr.f32.mxu0 0.0
    %1533 = vmatmul.mubr.f32.gmra.mrb[0].mxu0 %v1448
    %v1534 = vpop.f32.mrb[0].mxu0
    %v1535 = vadd.f32 %v1437, %v1534
    %v1536 = vpop.f32.mrb[0].mxu0
    %1537 = vmatprep.mubr.f32.mxu0 0.0
    %1538 = vmatmul.mubr.f32.gmra.mrb[0].mxu0 %v1451
    %v1539 = vpop.f32.mrb[0].mxu0
    %v1540 = vadd.f32 %v1437, %v1539
    %v1541 = vpop.f32.mrb[0].mxu0
    %1542 = vdwg.mxu0
    %v1544 = vsel %vm678, %v1105, 0
    %v1547 = vsel %vm678, %v1106, 0
    %v1550 = vsel %vm678, %v1107, 0
    %v1553 = vsel %vm678, %v1108, 0
    %v1556 = vsel %vm678, %v1109, 0
    %1558 = vmatprep.subr.mxu0 0.0
    %1559 = vmatpush1.msra.mxu0 %v1280
    %1560 = vmatprep.subr.mxu0 0.0
    %1561 = vmatpush1.msra.mxu0 %v1281
    %1562 = vmatprep.subr.mxu0 0.0
    %1563 = vmatpush1.msra.mxu0 %v1282
    %1564 = vmatprep.subr.mxu0 0.0
    %1565 = vmatpush1.msra.mxu0 %v1283
    %1566 = vmatprep.subr.mxu0 0.0
    %1567 = vmatpush1.msra.mxu0 0.0
    %1568 = vmatprep.subr.mxu0 0.0
    %1569 = vmatpush1.msra.mxu0 0.0
    %1570 = vmatprep.subr.mxu0 0.0
    %1571 = vmatpush1.msra.mxu0 0.0
    %1572 = vmatprep.subr.mxu0 0.0
    %1573 = vmatpush1.msra.mxu0 0.0
    %1574 = vmatprep.subr.mxu0 0.0
    %1575 = vmatpush1.msra.mxu0 0.0
    %1576 = vmatprep.subr.mxu0 0.0
    %1577 = vmatpush1.msra.mxu0 0.0
    %1578 = vmatprep.subr.mxu0 0.0
    %1579 = vmatpush1.msra.mxu0 0.0
    %1580 = vmatprep.subr.mxu0 0.0
    %1581 = vmatpush1.msra.mxu0 0.0
    %1582 = vmatprep.subr.mxu0 0.0
    %1583 = vmatpush1.msra.mxu0 0.0
    %1584 = vmatprep.subr.mxu0 0.0
    %1585 = vmatpush1.msra.mxu0 0.0
    %1586 = vmatprep.subr.mxu0 0.0
    %1587 = vmatpush1.msra.mxu0 0.0
    %1588 = vmatprep.subr.mxu0 0.0
    %1589 = vmatpush1.msra.mxu0 0.0
    %1590 = vmatprep.subr.mxu0 0.0
    %1591 = vmatpush1.msra.mxu0 0.0
    %1592 = vmatprep.subr.mxu0 0.0
    %1593 = vmatpush1.msra.mxu0 0.0
    %1594 = vmatprep.subr.mxu0 0.0
    %1595 = vmatpush1.msra.mxu0 0.0
    %1596 = vmatprep.subr.mxu0 0.0
    %1597 = vmatpush1.msra.mxu0 0.0
    %1598 = vmatprep.subr.mxu0 0.0
    %1599 = vmatpush1.msra.mxu0 0.0
    %1600 = vmatprep.subr.mxu0 0.0
    %1601 = vmatpush1.msra.mxu0 0.0
    %1602 = vmatprep.subr.mxu0 0.0
    %1603 = vmatpush1.msra.mxu0 0.0
    %1604 = vmatprep.subr.mxu0 0.0
    %1605 = vmatpush1.msra.mxu0 0.0
    %1606 = vmatprep.subr.mxu0 0.0
    %1607 = vmatpush1.msra.mxu0 0.0
    %1608 = vmatprep.subr.mxu0 0.0
    %1609 = vmatpush1.msra.mxu0 0.0
    %1610 = vmatprep.subr.mxu0 0.0
    %1611 = vmatpush1.msra.mxu0 0.0
    %1612 = vmatprep.subr.mxu0 0.0
    %1613 = vmatpush1.msra.mxu0 0.0
    %1614 = vmatprep.subr.mxu0 0.0
    %1615 = vmatpush1.msra.mxu0 0.0
    %1616 = vmatprep.subr.mxu0 0.0
    %1617 = vmatpush1.msra.mxu0 0.0
    %1618 = vmatprep.subr.mxu0 0.0
    %1619 = vmatpush1.msra.mxu0 0.0
    %1620 = vmatprep.subr.mxu0 0.0
    %1621 = vmatpush1.msra.mxu0 0.0
    %1622 = vmatprep.mubr.f32.mxu0 0.0
    %1623 = vmatmul.mubr.f32.gmra.mrb[0].mxu0 %v1544
    %v1624 = vpop.f32.mrb[0].mxu0
    %v1625 = vadd.f32 0.0, %v1624
    %v1626 = vpop.f32.mrb[0].mxu0
    %1627 = vmatprep.mubr.f32.mxu0 0.0
    %1628 = vmatmul.mubr.f32.gmra.mrb[0].mxu0 %v1547
    %v1629 = vpop.f32.mrb[0].mxu0
    %v1630 = vadd.f32 0.0, %v1629
    %v1631 = vpop.f32.mrb[0].mxu0
    %1632 = vmatprep.mubr.f32.mxu0 0.0
    %1633 = vmatmul.mubr.f32.gmra.mrb[0].mxu0 %v1550
    %v1634 = vpop.f32.mrb[0].mxu0
    %v1635 = vadd.f32 0.0, %v1634
    %v1636 = vpop.f32.mrb[0].mxu0
    %1637 = vmatprep.mubr.f32.mxu0 0.0
    %1638 = vmatmul.mubr.f32.gmra.mrb[0].mxu0 %v1553
    %v1639 = vpop.f32.mrb[0].mxu0
    %v1640 = vadd.f32 0.0, %v1639
    %v1641 = vpop.f32.mrb[0].mxu0
    %1642 = vmatprep.mubr.f32.mxu0 0.0
    %1643 = vmatmul.mubr.f32.gmra.mrb[0].mxu0 %v1556
    %v1644 = vpop.f32.mrb[0].mxu0
    %v1645 = vadd.f32 0.0, %v1644
    %v1646 = vpop.f32.mrb[0].mxu0
    %1647 = vdwg.mxu0
    %v1648 = vadd.f32 %v1520, %v1625
    %v1649 = vadd.f32 %v1525, %v1630
    %v1650 = vadd.f32 %v1530, %v1635
    %v1651 = vadd.f32 %v1535, %v1640
    %v1652 = vadd.f32 %v1540, %v1645
    %v1653 = vmax.f32 %v1648, 0.0
    %v1654 = vmax.f32 %v1649, 0.0
    %v1655 = vmax.f32 %v1650, 0.0
    %v1656 = vmax.f32 %v1651, 0.0
    %v1657 = vmax.f32 %v1652, 0.0
    %1658 = vmatprep.subr.mxu0 0.0
    %1659 = vmatpush1.msra.mxu0 %v1653
    %1660 = vmatprep.subr.mxu0 0.0
    %1661 = vmatpush1.msra.mxu0 %v1654
    %1662 = vmatprep.subr.mxu0 0.0
    %1663 = vmatpush1.msra.mxu0 %v1655
    %1664 = vmatprep.subr.mxu0 0.0
    %1665 = vmatpush1.msra.mxu0 %v1656
    %1666 = vmatprep.subr.mxu0 0.0
    %1667 = vmatpush1.msra.mxu0 %v1657
    %1668 = vmatprep.subr.mxu0 0.0
    %1669 = vmatpush1.msra.mxu0 0.0
    %1670 = vmatprep.subr.mxu0 0.0
    %1671 = vmatpush1.msra.mxu0 0.0
    %1672 = vmatprep.subr.mxu0 0.0
    %1673 = vmatpush1.msra.mxu0 0.0
    %1674 = vmatprep.subr.mxu0 0.0
    %1675 = vmatpush1.msra.mxu0 0.0
    %1676 = vmatprep.subr.mxu0 0.0
    %1677 = vmatpush1.msra.mxu0 0.0
    %1678 = vmatprep.subr.mxu0 0.0
    %1679 = vmatpush1.msra.mxu0 0.0
    %1680 = vmatprep.subr.mxu0 0.0
    %1681 = vmatpush1.msra.mxu0 0.0
    %1682 = vmatprep.subr.mxu0 0.0
    %1683 = vmatpush1.msra.mxu0 0.0
    %1684 = vmatprep.subr.mxu0 0.0
    %1685 = vmatpush1.msra.mxu0 0.0
    %1686 = vmatprep.subr.mxu0 0.0
    %1687 = vmatpush1.msra.mxu0 0.0
    %1688 = vmatprep.subr.mxu0 0.0
    %1689 = vmatpush1.msra.mxu0 0.0
    %1690 = vmatprep.subr.mxu0 0.0
    %1691 = vmatpush1.msra.mxu0 0.0
    %1692 = vmatprep.subr.mxu0 0.0
    %1693 = vmatpush1.msra.mxu0 0.0
    %1694 = vmatprep.subr.mxu0 0.0
    %1695 = vmatpush1.msra.mxu0 0.0
    %1696 = vmatprep.subr.mxu0 0.0
    %1697 = vmatpush1.msra.mxu0 0.0
    %1698 = vmatprep.subr.mxu0 0.0
    %1699 = vmatpush1.msra.mxu0 0.0
    %1700 = vmatprep.subr.mxu0 0.0
    %1701 = vmatpush1.msra.mxu0 0.0
    %1702 = vmatprep.subr.mxu0 0.0
    %1703 = vmatpush1.msra.mxu0 0.0
    %1704 = vmatprep.subr.mxu0 0.0
    %1705 = vmatpush1.msra.mxu0 0.0
    %1706 = vmatprep.subr.mxu0 0.0
    %1707 = vmatpush1.msra.mxu0 0.0
    %1708 = vmatprep.subr.mxu0 0.0
    %1709 = vmatpush1.msra.mxu0 0.0
    %1710 = vmatprep.subr.mxu0 0.0
    %1711 = vmatpush1.msra.mxu0 0.0
    %1712 = vmatprep.subr.mxu0 0.0
    %1713 = vmatpush1.msra.mxu0 0.0
    %1714 = vmatprep.subr.mxu0 0.0
    %1715 = vmatpush1.msra.mxu0 0.0
    %1716 = vmatprep.subr.mxu0 0.0
    %1717 = vmatpush1.msra.mxu0 0.0
    %1718 = vmatprep.subr.mxu0 0.0
    %1719 = vmatpush1.msra.mxu0 0.0
    %1720 = vmatprep.subr.mxu0 0.0
    %1721 = vmatpush1.msra.mxu0 0.0
    %1722 = vmatprep.mubr.f32.mxu0 0.0
    %1723 = vmatmul.mubr.f32.gmra.mrb[0].mxu0 %v1315
    %v1724 = vpop.f32.mrb[0].mxu0
    %v1725 = vadd.f32 0.0, %v1724
    %v1726 = vpop.f32.mrb[0].mxu0
    %1727 = vmatprep.mubr.f32.mxu0 0.0
    %1728 = vmatmul.mubr.f32.gmra.mrb[0].mxu0 %v1318
    %v1729 = vpop.f32.mrb[0].mxu0
    %v1730 = vadd.f32 0.0, %v1729
    %v1731 = vpop.f32.mrb[0].mxu0
    %1732 = vmatprep.mubr.f32.mxu0 0.0
    %1733 = vmatmul.mubr.f32.gmra.mrb[0].mxu0 %v1321
    %v1734 = vpop.f32.mrb[0].mxu0
    %v1735 = vadd.f32 0.0, %v1734
    %v1736 = vpop.f32.mrb[0].mxu0
    %1737 = vmatprep.mubr.f32.mxu0 0.0
    %1738 = vmatmul.mubr.f32.gmra.mrb[0].mxu0 %v1324
    %v1739 = vpop.f32.mrb[0].mxu0
    %v1740 = vadd.f32 0.0, %v1739
    %v1741 = vpop.f32.mrb[0].mxu0
    %1742 = vmatprep.mubr.f32.mxu0 0.0
    %1743 = vmatmul.mubr.f32.gmra.mrb[0].mxu0 %v1327
    %v1744 = vpop.f32.mrb[0].mxu0
    %v1745 = vadd.f32 0.0, %v1744
    %v1746 = vpop.f32.mrb[0].mxu0
    %1747 = vdwg.mxu0
    %v1748 = vlaneseq
    %v1749 = vshrl.u32 %v1748, 7
    %v1750 = vsub.s32 0, %v1749
    %v1751 = vrot.slane %v1293, %v1750
    %v1753 = vsel %vm678, %v1725, 0
    %v1756 = vsel %vm678, %v1730, 0
    %v1759 = vsel %vm678, %v1735, 0
    %v1762 = vsel %vm678, %v1740, 0
    %v1765 = vsel %vm678, %v1745, 0
    %1767 = vmatprep.subr.mxu0 0.0
    %1768 = vmatpush1.msra.mxu0 %v1285
    %1769 = vmatprep.subr.mxu0 0.0
    %1770 = vmatpush1.msra.mxu0 %v1286
    %1771 = vmatprep.subr.mxu0 0.0
    %1772 = vmatpush1.msra.mxu0 %v1287
    %1773 = vmatprep.subr.mxu0 0.0
    %1774 = vmatpush1.msra.mxu0 %v1288
    %1775 = vmatprep.subr.mxu0 0.0
    %1776 = vmatpush1.msra.mxu0 0.0
    %1777 = vmatprep.subr.mxu0 0.0
    %1778 = vmatpush1.msra.mxu0 0.0
    %1779 = vmatprep.subr.mxu0 0.0
    %1780 = vmatpush1.msra.mxu0 0.0
    %1781 = vmatprep.subr.mxu0 0.0
    %1782 = vmatpush1.msra.mxu0 0.0
    %1783 = vmatprep.subr.mxu0 0.0
    %1784 = vmatpush1.msra.mxu0 0.0
    %1785 = vmatprep.subr.mxu0 0.0
    %1786 = vmatpush1.msra.mxu0 0.0
    %1787 = vmatprep.subr.mxu0 0.0
    %1788 = vmatpush1.msra.mxu0 0.0
    %1789 = vmatprep.subr.mxu0 0.0
    %1790 = vmatpush1.msra.mxu0 0.0
    %1791 = vmatprep.subr.mxu0 0.0
    %1792 = vmatpush1.msra.mxu0 0.0
    %1793 = vmatprep.subr.mxu0 0.0
    %1794 = vmatpush1.msra.mxu0 0.0
    %1795 = vmatprep.subr.mxu0 0.0
    %1796 = vmatpush1.msra.mxu0 0.0
    %1797 = vmatprep.subr.mxu0 0.0
    %1798 = vmatpush1.msra.mxu0 0.0
    %1799 = vmatprep.subr.mxu0 0.0
    %1800 = vmatpush1.msra.mxu0 0.0
    %1801 = vmatprep.subr.mxu0 0.0
    %1802 = vmatpush1.msra.mxu0 0.0
    %1803 = vmatprep.subr.mxu0 0.0
    %1804 = vmatpush1.msra.mxu0 0.0
    %1805 = vmatprep.subr.mxu0 0.0
    %1806 = vmatpush1.msra.mxu0 0.0
    %1807 = vmatprep.subr.mxu0 0.0
    %1808 = vmatpush1.msra.mxu0 0.0
    %1809 = vmatprep.subr.mxu0 0.0
    %1810 = vmatpush1.msra.mxu0 0.0
    %1811 = vmatprep.subr.mxu0 0.0
    %1812 = vmatpush1.msra.mxu0 0.0
    %1813 = vmatprep.subr.mxu0 0.0
    %1814 = vmatpush1.msra.mxu0 0.0
    %1815 = vmatprep.subr.mxu0 0.0
    %1816 = vmatpush1.msra.mxu0 0.0
    %1817 = vmatprep.subr.mxu0 0.0
    %1818 = vmatpush1.msra.mxu0 0.0
    %1819 = vmatprep.subr.mxu0 0.0
    %1820 = vmatpush1.msra.mxu0 0.0
    %1821 = vmatprep.subr.mxu0 0.0
    %1822 = vmatpush1.msra.mxu0 0.0
    %1823 = vmatprep.subr.mxu0 0.0
    %1824 = vmatpush1.msra.mxu0 0.0
    %1825 = vmatprep.subr.mxu0 0.0
    %1826 = vmatpush1.msra.mxu0 0.0
    %1827 = vmatprep.subr.mxu0 0.0
    %1828 = vmatpush1.msra.mxu0 0.0
    %1829 = vmatprep.subr.mxu0 0.0
    %1830 = vmatpush1.msra.mxu0 0.0
    %1831 = vmatprep.mubr.f32.mxu0 0.0
    %1832 = vmatmul.mubr.f32.gmra.mrb[0].mxu0 %v1753
    %v1833 = vpop.f32.mrb[0].mxu0
    %v1834 = vadd.f32 %v1751, %v1833
    %v1835 = vpop.f32.mrb[0].mxu0
    %1836 = vmatprep.mubr.f32.mxu0 0.0
    %1837 = vmatmul.mubr.f32.gmra.mrb[0].mxu0 %v1756
    %v1838 = vpop.f32.mrb[0].mxu0
    %v1839 = vadd.f32 %v1751, %v1838
    %v1840 = vpop.f32.mrb[0].mxu0
    %1841 = vmatprep.mubr.f32.mxu0 0.0
    %1842 = vmatmul.mubr.f32.gmra.mrb[0].mxu0 %v1759
    %v1843 = vpop.f32.mrb[0].mxu0
    %v1844 = vadd.f32 %v1751, %v1843
    %v1845 = vpop.f32.mrb[0].mxu0
    %1846 = vmatprep.mubr.f32.mxu0 0.0
    %1847 = vmatmul.mubr.f32.gmra.mrb[0].mxu0 %v1762
    %v1848 = vpop.f32.mrb[0].mxu0
    %v1849 = vadd.f32 %v1751, %v1848
    %v1850 = vpop.f32.mrb[0].mxu0
    %1851 = vmatprep.mubr.f32.mxu0 0.0
    %1852 = vmatmul.mubr.f32.gmra.mrb[0].mxu0 %v1765
    %v1853 = vpop.f32.mrb[0].mxu0
    %v1854 = vadd.f32 %v1751, %v1853
    %v1855 = vpop.f32.mrb[0].mxu0
    %1856 = vdwg.mxu0
    %v1858 = vsel %vm678, %v1653, 0
    %v1861 = vsel %vm678, %v1654, 0
    %v1864 = vsel %vm678, %v1655, 0
    %v1867 = vsel %vm678, %v1656, 0
    %v1870 = vsel %vm678, %v1657, 0
    %1872 = vmatprep.subr.mxu0 0.0
    %1873 = vmatpush1.msra.mxu0 %v1289
    %1874 = vmatprep.subr.mxu0 0.0
    %1875 = vmatpush1.msra.mxu0 %v1290
    %1876 = vmatprep.subr.mxu0 0.0
    %1877 = vmatpush1.msra.mxu0 %v1291
    %1878 = vmatprep.subr.mxu0 0.0
    %1879 = vmatpush1.msra.mxu0 %v1292
    %1880 = vmatprep.subr.mxu0 0.0
    %1881 = vmatpush1.msra.mxu0 0.0
    %1882 = vmatprep.subr.mxu0 0.0
    %1883 = vmatpush1.msra.mxu0 0.0
    %1884 = vmatprep.subr.mxu0 0.0
    %1885 = vmatpush1.msra.mxu0 0.0
    %1886 = vmatprep.subr.mxu0 0.0
    %1887 = vmatpush1.msra.mxu0 0.0
    %1888 = vmatprep.subr.mxu0 0.0
    %1889 = vmatpush1.msra.mxu0 0.0
    %1890 = vmatprep.subr.mxu0 0.0
    %1891 = vmatpush1.msra.mxu0 0.0
    %1892 = vmatprep.subr.mxu0 0.0
    %1893 = vmatpush1.msra.mxu0 0.0
    %1894 = vmatprep.subr.mxu0 0.0
    %1895 = vmatpush1.msra.mxu0 0.0
    %1896 = vmatprep.subr.mxu0 0.0
    %1897 = vmatpush1.msra.mxu0 0.0
    %1898 = vmatprep.subr.mxu0 0.0
    %1899 = vmatpush1.msra.mxu0 0.0
    %1900 = vmatprep.subr.mxu0 0.0
    %1901 = vmatpush1.msra.mxu0 0.0
    %1902 = vmatprep.subr.mxu0 0.0
    %1903 = vmatpush1.msra.mxu0 0.0
    %1904 = vmatprep.subr.mxu0 0.0
    %1905 = vmatpush1.msra.mxu0 0.0
    %1906 = vmatprep.subr.mxu0 0.0
    %1907 = vmatpush1.msra.mxu0 0.0
    %1908 = vmatprep.subr.mxu0 0.0
    %1909 = vmatpush1.msra.mxu0 0.0
    %1910 = vmatprep.subr.mxu0 0.0
    %1911 = vmatpush1.msra.mxu0 0.0
    %1912 = vmatprep.subr.mxu0 0.0
    %1913 = vmatpush1.msra.mxu0 0.0
    %1914 = vmatprep.subr.mxu0 0.0
    %1915 = vmatpush1.msra.mxu0 0.0
    %1916 = vmatprep.subr.mxu0 0.0
    %1917 = vmatpush1.msra.mxu0 0.0
    %1918 = vmatprep.subr.mxu0 0.0
    %1919 = vmatpush1.msra.mxu0 0.0
    %1920 = vmatprep.subr.mxu0 0.0
    %1921 = vmatpush1.msra.mxu0 0.0
    %1922 = vmatprep.subr.mxu0 0.0
    %1923 = vmatpush1.msra.mxu0 0.0
    %1924 = vmatprep.subr.mxu0 0.0
    %1925 = vmatpush1.msra.mxu0 0.0
    %1926 = vmatprep.subr.mxu0 0.0
    %1927 = vmatpush1.msra.mxu0 0.0
    %1928 = vmatprep.subr.mxu0 0.0
    %1929 = vmatpush1.msra.mxu0 0.0
    %1930 = vmatprep.subr.mxu0 0.0
    %1931 = vmatpush1.msra.mxu0 0.0
    %1932 = vmatprep.subr.mxu0 0.0
    %1933 = vmatpush1.msra.mxu0 0.0
    %1934 = vmatprep.subr.mxu0 0.0
    %1935 = vmatpush1.msra.mxu0 0.0
    %1936 = vmatprep.mubr.f32.mxu0 0.0
    %1937 = vmatmul.mubr.f32.gmra.mrb[0].mxu0 %v1858
    %v1938 = vpop.f32.mrb[0].mxu0
    %v1939 = vadd.f32 0.0, %v1938
    %v1940 = vpop.f32.mrb[0].mxu0
    %1941 = vmatprep.mubr.f32.mxu0 0.0
    %1942 = vmatmul.mubr.f32.gmra.mrb[0].mxu0 %v1861
    %v1943 = vpop.f32.mrb[0].mxu0
    %v1944 = vadd.f32 0.0, %v1943
    %v1945 = vpop.f32.mrb[0].mxu0
    %1946 = vmatprep.mubr.f32.mxu0 0.0
    %1947 = vmatmul.mubr.f32.gmra.mrb[0].mxu0 %v1864
    %v1948 = vpop.f32.mrb[0].mxu0
    %v1949 = vadd.f32 0.0, %v1948
    %v1950 = vpop.f32.mrb[0].mxu0
    %1951 = vmatprep.mubr.f32.mxu0 0.0
    %1952 = vmatmul.mubr.f32.gmra.mrb[0].mxu0 %v1867
    %v1953 = vpop.f32.mrb[0].mxu0
    %v1954 = vadd.f32 0.0, %v1953
    %v1955 = vpop.f32.mrb[0].mxu0
    %1956 = vmatprep.mubr.f32.mxu0 0.0
    %1957 = vmatmul.mubr.f32.gmra.mrb[0].mxu0 %v1870
    %v1958 = vpop.f32.mrb[0].mxu0
    %v1959 = vadd.f32 0.0, %v1958
    %v1960 = vpop.f32.mrb[0].mxu0
    %1961 = vdwg.mxu0
    %v1962 = vadd.f32 %v1834, %v1939
    %v1963 = vadd.f32 %v1839, %v1944
    %v1964 = vadd.f32 %v1844, %v1949
    %v1965 = vadd.f32 %v1849, %v1954
    %v1966 = vadd.f32 %v1854, %v1959
    %1967 = vxpose.xlu0.b32.start [1/16] %v1962, 128
    %1968 = vxpose.xlu0.b32.cont [2/16] %v1963, 128
    %1969 = vxpose.xlu0.b32.cont [3/16] %v1964, 128
    %1970 = vxpose.xlu0.b32.cont [4/16] %v1965, 128
    %1971 = vxpose.xlu0.b32.cont [5/16] %v1966, 128
    %1972 = vxpose.xlu0.b32.cont [6/16] 0.0, 128
    %1973 = vxpose.xlu0.b32.cont [7/16] 0.0, 128
    %1974 = vxpose.xlu0.b32.cont [8/16] 0.0, 128
    %1975 = vxpose.xlu0.b32.cont [9/16] 0.0, 128
    %1976 = vxpose.xlu0.b32.cont [10/16] 0.0, 128
    %1977 = vxpose.xlu0.b32.cont [11/16] 0.0, 128
    %1978 = vxpose.xlu0.b32.cont [12/16] 0.0, 128
    %1979 = vxpose.xlu0.b32.cont [13/16] 0.0, 128
    %1980 = vxpose.xlu0.b32.cont [14/16] 0.0, 128
    %1981 = vxpose.xlu0.b32.cont [15/16] 0.0, 128
    %1982 = vxpose.xlu0.b32.end [16/16] 0.0, 128
    %v1983 = vpop.trf.xlu0
    %v1984 = vpop.trf.xlu0
    %v1985 = vpop.trf.xlu0
    %v1986 = vpop.trf.xlu0
    %v1987 = vpop.trf.xlu0
    %v1988 = vpop.trf.xlu0
    %v1989 = vpop.trf.xlu0
    %v1990 = vpop.trf.xlu0
    %v1991 = vpop.trf.xlu0
    %v1992 = vpop.trf.xlu0
    %v1993 = vpop.trf.xlu0
    %v1994 = vpop.trf.xlu0
    %v1995 = vpop.trf.xlu0
    %v1996 = vpop.trf.xlu0
    %v1997 = vpop.trf.xlu0
    %v1998 = vpop.trf.xlu0
    %v1999 = vlaneseq
    %v2000 = vshrl.u32 %v1999, 7
    %v2001 = vsub.s32 0, %v2000
    %v2002 = vrot.slane %v1983, %v2001
    %2004 = vset.pattern.permute.xlu0 0
    %2005 = vperm.xlu0 %2004, %v1962
    %v2006 = vpop.permute.xlu0 %2005
    %2009 = vset.pattern.permute.xlu0 0
    %2010 = vperm.xlu0 %2009, %v1963
    %v2011 = vpop.permute.xlu0 %2010
    %2014 = vset.pattern.permute.xlu0 0
    %2015 = vperm.xlu0 %2014, %v1964
    %v2016 = vpop.permute.xlu0 %2015
    %2019 = vset.pattern.permute.xlu0 0
    %2020 = vperm.xlu0 %2019, %v1965
    %v2021 = vpop.permute.xlu0 %2020
    %2024 = vset.pattern.permute.xlu0 0
    %2025 = vperm.xlu0 %2024, %v1966
    %v2026 = vpop.permute.xlu0 %2025
    %vm2028 = vcmp.gt.f32.partialorder %v2002, %v2006
    %vm2029 = vcmp.gt.f32.partialorder %v2002, %v2011
    %vm2030 = vcmp.gt.f32.partialorder %v2002, %v2016
    %vm2031 = vcmp.gt.f32.partialorder %v2002, %v2021
    %vm2032 = vcmp.gt.f32.partialorder %v2002, %v2026
    %vm2033 = vcmp.eq.f32.partialorder %v2002, %v2006
    %vm2034 = vcmp.eq.f32.partialorder %v2002, %v2011
    %vm2035 = vcmp.eq.f32.partialorder %v2002, %v2016
    %vm2036 = vcmp.eq.f32.partialorder %v2002, %v2021
    %vm2037 = vcmp.eq.f32.partialorder %v2002, %v2026
    %vm2038 = vmand %vm2033, %vm965
    %vm2039 = vmand %vm2034, %vm966
    %vm2040 = vmand %vm2035, %vm967
    %vm2041 = vmand %vm2036, %vm968
    %vm2042 = vmand %vm2037, %vm969
    %vm2043 = vmor %vm2028, %vm2038
    %vm2044 = vmor %vm2029, %vm2039
    %vm2045 = vmor %vm2030, %vm2040
    %vm2046 = vmor %vm2031, %vm2041
    %vm2047 = vmor %vm2032, %vm2042
    %vm2048 = vcmp.gt.f32.partialorder %v1054, 0.5
    %v2049 = vsel %vm2048, 1, 0
    %v2050 = vlaneseq
    %v2051 = vshrl.u32 %v2050, 7
    %v2052 = vsub.s32 0, %v2051
    %v2053 = vrot.slane %v2049, %v2052
    %vm2054 = vcmp.eq.s32.totalorder %v2053, 1
    %vm2055 = vmand %vm980, %vm2054
    %vm2056 = vmand %vm981, %vm2054
    %vm2057 = vmand %vm982, %vm2054
    %vm2058 = vmand %vm983, %vm2054
    %vm2059 = vmand %vm984, %vm2054
    %vm2060 = vmand %vm2043, %vm2055
    %vm2061 = vmand %vm2044, %vm2056
    %vm2062 = vmand %vm2045, %vm2057
    %vm2063 = vmand %vm2046, %vm2058
    %vm2064 = vmand %vm2047, %vm2059
    %v2065 = vsel %vm2060, 1.0, 0.0
    %v2066 = vsel %vm2061, 1.0, 0.0
    %v2067 = vsel %vm2062, 1.0, 0.0
    %v2068 = vsel %vm2063, 1.0, 0.0
    %v2069 = vsel %vm2064, 1.0, 0.0
    %v2070 = vsel %vm224, %v2065, 0.0
    %2071 = vadd.xlane.f32.xlu0 %v2070
    %v2072 = vpop.xlane.xlu0 %2071
    %v2073 = vsel %vm224, %v2066, 0.0
    %2074 = vadd.xlane.f32.xlu0 %v2073
    %v2075 = vpop.xlane.xlu0 %2074
    %v2076 = vsel %vm224, %v2067, 0.0
    %2077 = vadd.xlane.f32.xlu0 %v2076
    %v2078 = vpop.xlane.xlu0 %2077
    %v2079 = vsel %vm224, %v2068, 0.0
    %2080 = vadd.xlane.f32.xlu0 %v2079
    %v2081 = vpop.xlane.xlu0 %2080
    %v2082 = vsel %vm224, %v2069, 0.0
    %2083 = vadd.xlane.f32.xlu0 %v2082
    %v2084 = vpop.xlane.xlu0 %2083
    %vm2085 = vcmp.lt.f32.partialorder %v2072, 1.0
    %vm2086 = vcmp.lt.f32.partialorder %v2075, 1.0
    %vm2087 = vcmp.lt.f32.partialorder %v2078, 1.0
    %vm2088 = vcmp.lt.f32.partialorder %v2081, 1.0
    %vm2089 = vcmp.lt.f32.partialorder %v2084, 1.0
    %vm2090 = vmand %vm1195, %vm2085
    %vm2091 = vmand %vm1196, %vm2086
    %vm2092 = vmand %vm1197, %vm2087
    %vm2093 = vmand %vm1198, %vm2088
    %vm2094 = vmand %vm1199, %vm2089
    %v2095 = vsel %vm2090, 1.0, 0.0
    %v2096 = vsel %vm2091, 1.0, 0.0
    %v2097 = vsel %vm2092, 1.0, 0.0
    %v2098 = vsel %vm2093, 1.0, 0.0
    %v2099 = vsel %vm2094, 1.0, 0.0
    %2100 = vxpose.xlu0.b32.start [1/16] %v2095, 128
    %2101 = vxpose.xlu0.b32.cont [2/16] %v2096, 128
    %2102 = vxpose.xlu0.b32.cont [3/16] %v2097, 128
    %2103 = vxpose.xlu0.b32.cont [4/16] %v2098, 128
    %2104 = vxpose.xlu0.b32.cont [5/16] %v2099, 128
    %2105 = vxpose.xlu0.b32.cont [6/16] 0.0, 128
    %2106 = vxpose.xlu0.b32.cont [7/16] 0.0, 128
    %2107 = vxpose.xlu0.b32.cont [8/16] 0.0, 128
    %2108 = vxpose.xlu0.b32.cont [9/16] 0.0, 128
    %2109 = vxpose.xlu0.b32.cont [10/16] 0.0, 128
    %2110 = vxpose.xlu0.b32.cont [11/16] 0.0, 128
    %2111 = vxpose.xlu0.b32.cont [12/16] 0.0, 128
    %2112 = vxpose.xlu0.b32.cont [13/16] 0.0, 128
    %2113 = vxpose.xlu0.b32.cont [14/16] 0.0, 128
    %2114 = vxpose.xlu0.b32.cont [15/16] 0.0, 128
    %2115 = vxpose.xlu0.b32.end [16/16] 0.0, 128
    %v2116 = vpop.trf.xlu0
    %v2117 = vpop.trf.xlu0
    %v2118 = vpop.trf.xlu0
    %v2119 = vpop.trf.xlu0
    %v2120 = vpop.trf.xlu0
    %v2121 = vpop.trf.xlu0
    %v2122 = vpop.trf.xlu0
    %v2123 = vpop.trf.xlu0
    %v2124 = vpop.trf.xlu0
    %v2125 = vpop.trf.xlu0
    %v2126 = vpop.trf.xlu0
    %v2127 = vpop.trf.xlu0
    %v2128 = vpop.trf.xlu0
    %v2129 = vpop.trf.xlu0
    %v2130 = vpop.trf.xlu0
    %v2131 = vpop.trf.xlu0
    %v2132 = vtanh.pop %v1962
    %v2133 = vtanh.pop %v1963
    %v2134 = vtanh.pop %v1964
    %v2135 = vtanh.pop %v1965
    %v2136 = vtanh.pop %v1966
    %2138 = vset.pattern.permute.xlu0 0
    %2139 = vperm.xlu0 %2138, %v2132
    %v2140 = vpop.permute.xlu0 %2139
    %2143 = vset.pattern.permute.xlu0 0
    %2144 = vperm.xlu0 %2143, %v2133
    %v2145 = vpop.permute.xlu0 %2144
    %2148 = vset.pattern.permute.xlu0 0
    %2149 = vperm.xlu0 %2148, %v2134
    %v2150 = vpop.permute.xlu0 %2149
    %2153 = vset.pattern.permute.xlu0 0
    %2154 = vperm.xlu0 %2153, %v2135
    %v2155 = vpop.permute.xlu0 %2154
    %2158 = vset.pattern.permute.xlu0 0
    %2159 = vperm.xlu0 %2158, %v2136
    %v2160 = vpop.permute.xlu0 %2159
    %v2162 = vmul.f32 %v1653, %v2140
    %v2163 = vmul.f32 %v1654, %v2145
    %v2164 = vmul.f32 %v1655, %v2150
    %v2165 = vmul.f32 %v1656, %v2155
    %v2166 = vmul.f32 %v1657, %v2160
    %v2167 = vmul.f32 %v2162, %v2095
    %v2168 = vmul.f32 %v2163, %v2096
    %v2169 = vmul.f32 %v2164, %v2097
    %v2170 = vmul.f32 %v2165, %v2098
    %v2171 = vmul.f32 %v2166, %v2099
    %v2172 = vlaneseq
    %v2173 = vshrl.u32 %v2172, 7
    %v2174 = vsub.s32 0, %v2173
    %v2175 = vrot.slane %v2116, %v2174
    %v2176 = vmul.f32 %v104, %v2175
    %v2177 = vsel %vm1115, %v2176, 0.0
    %2178 = vadd.xlane.f32.xlu0 %v2177
    %v2179 = vpop.xlane.xlu0 %2178
    %v2180 = vmax.f32 %v2179, 1.0
    %v2182 = vsel %vm224, %v2176, 0
    %2184 = vmatprep.subr.mxu0 0.0
    %2185 = vmatpush1.msra.mxu0 %v2167
    %2186 = vmatprep.subr.mxu0 0.0
    %2187 = vmatpush1.msra.mxu0 %v2168
    %2188 = vmatprep.subr.mxu0 0.0
    %2189 = vmatpush1.msra.mxu0 %v2169
    %2190 = vmatprep.subr.mxu0 0.0
    %2191 = vmatpush1.msra.mxu0 %v2170
    %2192 = vmatprep.subr.mxu0 0.0
    %2193 = vmatpush1.msra.mxu0 %v2171
    %2194 = vmatprep.subr.mxu0 0.0
    %2195 = vmatpush1.msra.mxu0 0.0
    %2196 = vmatprep.subr.mxu0 0.0
    %2197 = vmatpush1.msra.mxu0 0.0
    %2198 = vmatprep.subr.mxu0 0.0
    %2199 = vmatpush1.msra.mxu0 0.0
    %2200 = vmatprep.subr.mxu0 0.0
    %2201 = vmatpush1.msra.mxu0 0.0
    %2202 = vmatprep.subr.mxu0 0.0
    %2203 = vmatpush1.msra.mxu0 0.0
    %2204 = vmatprep.subr.mxu0 0.0
    %2205 = vmatpush1.msra.mxu0 0.0
    %2206 = vmatprep.subr.mxu0 0.0
    %2207 = vmatpush1.msra.mxu0 0.0
    %2208 = vmatprep.subr.mxu0 0.0
    %2209 = vmatpush1.msra.mxu0 0.0
    %2210 = vmatprep.subr.mxu0 0.0
    %2211 = vmatpush1.msra.mxu0 0.0
    %2212 = vmatprep.subr.mxu0 0.0
    %2213 = vmatpush1.msra.mxu0 0.0
    %2214 = vmatprep.subr.mxu0 0.0
    %2215 = vmatpush1.msra.mxu0 0.0
    %2216 = vmatprep.subr.mxu0 0.0
    %2217 = vmatpush1.msra.mxu0 0.0
    %2218 = vmatprep.subr.mxu0 0.0
    %2219 = vmatpush1.msra.mxu0 0.0
    %2220 = vmatprep.subr.mxu0 0.0
    %2221 = vmatpush1.msra.mxu0 0.0
    %2222 = vmatprep.subr.mxu0 0.0
    %2223 = vmatpush1.msra.mxu0 0.0
    %2224 = vmatprep.subr.mxu0 0.0
    %2225 = vmatpush1.msra.mxu0 0.0
    %2226 = vmatprep.subr.mxu0 0.0
    %2227 = vmatpush1.msra.mxu0 0.0
    %2228 = vmatprep.subr.mxu0 0.0
    %2229 = vmatpush1.msra.mxu0 0.0
    %2230 = vmatprep.subr.mxu0 0.0
    %2231 = vmatpush1.msra.mxu0 0.0
    %2232 = vmatprep.subr.mxu0 0.0
    %2233 = vmatpush1.msra.mxu0 0.0
    %2234 = vmatprep.subr.mxu0 0.0
    %2235 = vmatpush1.msra.mxu0 0.0
    %2236 = vmatprep.subr.mxu0 0.0
    %2237 = vmatpush1.msra.mxu0 0.0
    %2238 = vmatprep.subr.mxu0 0.0
    %2239 = vmatpush1.msra.mxu0 0.0
    %2240 = vmatprep.subr.mxu0 0.0
    %2241 = vmatpush1.msra.mxu0 0.0
    %2242 = vmatprep.subr.mxu0 0.0
    %2243 = vmatpush1.msra.mxu0 0.0
    %2244 = vmatprep.subr.mxu0 0.0
    %2245 = vmatpush1.msra.mxu0 0.0
    %2246 = vmatprep.subr.mxu0 0.0
    %2247 = vmatpush1.msra.mxu0 0.0
    %2248 = vmatprep.mubr.f32.mxu0 0.0
    %2249 = vmatmul.mubr.f32.gmra.mrb[0].mxu0 %v2182
    %v2250 = vpop.f32.mrb[0].mxu0
    %v2251 = vadd.f32 0.0, %v2250
    %v2252 = vpop.f32.mrb[0].mxu0
    %2253 = vdwg.mxu0
    %v2254 = vrcp.pop %v2180
    %v2255 = vmul.f32 %v2251, %v2254
    %vm2256 = vcmp.gt.f32.partialorder %v2095, 0.5
    %vm2257 = vcmp.gt.f32.partialorder %v2096, 0.5
    %vm2258 = vcmp.gt.f32.partialorder %v2097, 0.5
    %vm2259 = vcmp.gt.f32.partialorder %v2098, 0.5
    %vm2260 = vcmp.gt.f32.partialorder %v2099, 0.5
    %vm2261 = vmand %vm115, %vm2256
    %vm2262 = vmand %vm116, %vm2257
    %vm2263 = vmand %vm117, %vm2258
    %vm2264 = vmand %vm118, %vm2259
    %vm2265 = vmand %vm119, %vm2260
    %v2266 = vsel %vm2261, 1, 0
    %v2267 = vsel %vm2262, 1, 0
    %v2268 = vsel %vm2263, 1, 0
    %v2269 = vsel %vm2264, 1, 0
    %v2270 = vsel %vm2265, 1, 0
    %vm2271 = vcmp.eq.s32.totalorder %v2266, 1
    %vm2272 = vcmp.eq.s32.totalorder %v2267, 1
    %vm2273 = vcmp.eq.s32.totalorder %v2268, 1
    %vm2274 = vcmp.eq.s32.totalorder %v2269, 1
    %vm2275 = vcmp.eq.s32.totalorder %v2270, 1
    %v2276 = vsel %vm2271, %v2167, -1e+30
    %v2277 = vsel %vm2272, %v2168, -1e+30
    %v2278 = vsel %vm2273, %v2169, -1e+30
    %v2279 = vsel %vm2274, %v2170, -1e+30
    %v2280 = vsel %vm2275, %v2171, -1e+30
    %v2281 = vsel %vm678, %v2276, -inf
    %v2282 = vsel %vm678, %v2277, -inf
    %v2283 = vsel %vm678, %v2278, -inf
    %v2284 = vsel %vm678, %v2279, -inf
    %v2285 = vsel %vm678, %v2280, -inf
    %v2286 = vmax.f32 %v2281, %v2285
    %v2287 = vmax.f32 %v2286, %v2282
    %v2288 = vmax.f32 %v2283, %v2284
    %v2289 = vmax.f32 %v2287, %v2288
    %v2290 = vrot.slane %v2289, 4
    %v2291 = vmax.f32 %v2289, %v2290
    %v2292 = vrot.slane %v2291, 2
    %v2293 = vmax.f32 %v2291, %v2292
    %v2294 = vrot.slane %v2293, 1
    %v2295 = vmax.f32 %v2293, %v2294
    %v2296 = vsel %vm1235, %v2295, 0.0
    %vm2297 = vmand %vm143, %vm2256
    %vm2298 = vmand %vm144, %vm2257
    %vm2299 = vmand %vm145, %vm2258
    %vm2300 = vmand %vm146, %vm2259
    %vm2301 = vmand %vm147, %vm2260
    %v2302 = vsel %vm2297, 1, 0
    %v2303 = vsel %vm2298, 1, 0
    %v2304 = vsel %vm2299, 1, 0
    %v2305 = vsel %vm2300, 1, 0
    %v2306 = vsel %vm2301, 1, 0
    %vm2307 = vcmp.eq.s32.totalorder %v2302, 1
    %vm2308 = vcmp.eq.s32.totalorder %v2303, 1
    %vm2309 = vcmp.eq.s32.totalorder %v2304, 1
    %vm2310 = vcmp.eq.s32.totalorder %v2305, 1
    %vm2311 = vcmp.eq.s32.totalorder %v2306, 1
    %v2312 = vsel %vm2307, %v2167, -1e+30
    %v2313 = vsel %vm2308, %v2168, -1e+30
    %v2314 = vsel %vm2309, %v2169, -1e+30
    %v2315 = vsel %vm2310, %v2170, -1e+30
    %v2316 = vsel %vm2311, %v2171, -1e+30
    %v2317 = vsel %vm678, %v2312, -inf
    %v2318 = vsel %vm678, %v2313, -inf
    %v2319 = vsel %vm678, %v2314, -inf
    %v2320 = vsel %vm678, %v2315, -inf
    %v2321 = vsel %vm678, %v2316, -inf
    %v2322 = vmax.f32 %v2317, %v2321
    %v2323 = vmax.f32 %v2322, %v2318
    %v2324 = vmax.f32 %v2319, %v2320
    %v2325 = vmax.f32 %v2323, %v2324
    %v2326 = vrot.slane %v2325, 4
    %v2327 = vmax.f32 %v2325, %v2326
    %v2328 = vrot.slane %v2327, 2
    %v2329 = vmax.f32 %v2327, %v2328
    %v2330 = vrot.slane %v2329, 1
    %v2331 = vmax.f32 %v2329, %v2330
    %v2332 = vsel %vm1272, %v2331, %v2296
    %v2333 = vadd.f32 %v1274, %v2332
    %v2334 = vadd.f32 %v1275, %v2255
    %v2335 = vld [vmem:[#allocation6 + $0x140] sm:$0xff]
    %v2336 = vld [vmem:[#allocation6 + $0x148] sm:$0xff]
    %v2337 = vld [vmem:[#allocation6 + $0x150] sm:$0xff]
    %v2338 = vld [vmem:[#allocation6 + $0x158] sm:$0xff]
    %v2339 = vld [vmem:[#allocation6 + $0x160] sm:$0xff]
    %v2340 = vld [vmem:[#allocation6 + $0x168] sm:$0xff]
    %v2341 = vld [vmem:[#allocation6 + $0x170] sm:$0xff]
    %v2342 = vld [vmem:[#allocation6 + $0x178] sm:$0xff]
    %v2343 = vld [vmem:[#allocation6 + $0x180] sm:$0x1]
    %v2344 = vld [vmem:[#allocation6 + $0x188] sm:$0xff]
    %v2345 = vld [vmem:[#allocation6 + $0x190] sm:$0xff]
    %v2346 = vld [vmem:[#allocation6 + $0x198] sm:$0xff]
    %v2347 = vld [vmem:[#allocation6 + $0x1a0] sm:$0xff]
    %v2348 = vld [vmem:[#allocation6 + $0x1a8] sm:$0xff]
    %v2349 = vld [vmem:[#allocation6 + $0x1b0] sm:$0xff]
    %v2350 = vld [vmem:[#allocation6 + $0x1b8] sm:$0xff]
    %v2351 = vld [vmem:[#allocation6 + $0x1c0] sm:$0xff]
    %v2352 = vld [vmem:[#allocation6 + $0x1c8] sm:$0x1]
    %v2353 = vmul.f32 %v87, %v2175
    %v2354 = vmul.f32 %v88, %v2175
    %v2355 = vmul.f32 %v89, %v2175
    %v2356 = vmul.f32 %v90, %v2175
    %v2357 = vmul.f32 %v91, %v2175
    %v2358 = vsel %vm224, %v2353, 0.0
    %2359 = vadd.xlane.f32.xlu0 %v2358
    %v2360 = vpop.xlane.xlu0 %2359
    %v2361 = vsel %vm224, %v2354, 0.0
    %2362 = vadd.xlane.f32.xlu0 %v2361
    %v2363 = vpop.xlane.xlu0 %2362
    %v2364 = vsel %vm224, %v2355, 0.0
    %2365 = vadd.xlane.f32.xlu0 %v2364
    %v2366 = vpop.xlane.xlu0 %2365
    %v2367 = vsel %vm224, %v2356, 0.0
    %2368 = vadd.xlane.f32.xlu0 %v2367
    %v2369 = vpop.xlane.xlu0 %2368
    %v2370 = vsel %vm224, %v2357, 0.0
    %2371 = vadd.xlane.f32.xlu0 %v2370
    %v2372 = vpop.xlane.xlu0 %2371
    %v2374 = vsel %vm224, %v2353, 0
    %v2377 = vsel %vm224, %v2354, 0
    %v2380 = vsel %vm224, %v2355, 0
    %v2383 = vsel %vm224, %v2356, 0
    %v2386 = vsel %vm224, %v2357, 0
    %2388 = vmatprep.subr.mxu0 0.0
    %2389 = vmatpush1.msra.mxu0 %v2167
    %2390 = vmatprep.subr.mxu0 0.0
    %2391 = vmatpush1.msra.mxu0 %v2168
    %2392 = vmatprep.subr.mxu0 0.0
    %2393 = vmatpush1.msra.mxu0 %v2169
    %2394 = vmatprep.subr.mxu0 0.0
    %2395 = vmatpush1.msra.mxu0 %v2170
    %2396 = vmatprep.subr.mxu0 0.0
    %2397 = vmatpush1.msra.mxu0 %v2171
    %2398 = vmatprep.subr.mxu0 0.0
    %2399 = vmatpush1.msra.mxu0 0.0
    %2400 = vmatprep.subr.mxu0 0.0
    %2401 = vmatpush1.msra.mxu0 0.0
    %2402 = vmatprep.subr.mxu0 0.0
    %2403 = vmatpush1.msra.mxu0 0.0
    %2404 = vmatprep.subr.mxu0 0.0
    %2405 = vmatpush1.msra.mxu0 0.0
    %2406 = vmatprep.subr.mxu0 0.0
    %2407 = vmatpush1.msra.mxu0 0.0
    %2408 = vmatprep.subr.mxu0 0.0
    %2409 = vmatpush1.msra.mxu0 0.0
    %2410 = vmatprep.subr.mxu0 0.0
    %2411 = vmatpush1.msra.mxu0 0.0
    %2412 = vmatprep.subr.mxu0 0.0
    %2413 = vmatpush1.msra.mxu0 0.0
    %2414 = vmatprep.subr.mxu0 0.0
    %2415 = vmatpush1.msra.mxu0 0.0
    %2416 = vmatprep.subr.mxu0 0.0
    %2417 = vmatpush1.msra.mxu0 0.0
    %2418 = vmatprep.subr.mxu0 0.0
    %2419 = vmatpush1.msra.mxu0 0.0
    %2420 = vmatprep.subr.mxu0 0.0
    %2421 = vmatpush1.msra.mxu0 0.0
    %2422 = vmatprep.subr.mxu0 0.0
    %2423 = vmatpush1.msra.mxu0 0.0
    %2424 = vmatprep.subr.mxu0 0.0
    %2425 = vmatpush1.msra.mxu0 0.0
    %2426 = vmatprep.subr.mxu0 0.0
    %2427 = vmatpush1.msra.mxu0 0.0
    %2428 = vmatprep.subr.mxu0 0.0
    %2429 = vmatpush1.msra.mxu0 0.0
    %2430 = vmatprep.subr.mxu0 0.0
    %2431 = vmatpush1.msra.mxu0 0.0
    %2432 = vmatprep.subr.mxu0 0.0
    %2433 = vmatpush1.msra.mxu0 0.0
    %2434 = vmatprep.subr.mxu0 0.0
    %2435 = vmatpush1.msra.mxu0 0.0
    %2436 = vmatprep.subr.mxu0 0.0
    %2437 = vmatpush1.msra.mxu0 0.0
    %2438 = vmatprep.subr.mxu0 0.0
    %2439 = vmatpush1.msra.mxu0 0.0
    %2440 = vmatprep.subr.mxu0 0.0
    %2441 = vmatpush1.msra.mxu0 0.0
    %2442 = vmatprep.subr.mxu0 0.0
    %2443 = vmatpush1.msra.mxu0 0.0
    %2444 = vmatprep.subr.mxu0 0.0
    %2445 = vmatpush1.msra.mxu0 0.0
    %2446 = vmatprep.subr.mxu0 0.0
    %2447 = vmatpush1.msra.mxu0 0.0
    %2448 = vmatprep.subr.mxu0 0.0
    %2449 = vmatpush1.msra.mxu0 0.0
    %2450 = vmatprep.subr.mxu0 0.0
    %2451 = vmatpush1.msra.mxu0 0.0
    %2452 = vmatprep.mubr.f32.mxu0 0.0
    %2453 = vmatmul.mubr.f32.gmra.mrb[0].mxu0 %v2374
    %v2454 = vpop.f32.mrb[0].mxu0
    %v2455 = vadd.f32 0.0, %v2454
    %v2456 = vpop.f32.mrb[0].mxu0
    %2457 = vmatprep.mubr.f32.mxu0 0.0
    %2458 = vmatmul.mubr.f32.gmra.mrb[0].mxu0 %v2377
    %v2459 = vpop.f32.mrb[0].mxu0
    %v2460 = vadd.f32 0.0, %v2459
    %v2461 = vpop.f32.mrb[0].mxu0
    %2462 = vmatprep.mubr.f32.mxu0 0.0
    %2463 = vmatmul.mubr.f32.gmra.mrb[0].mxu0 %v2380
    %v2464 = vpop.f32.mrb[0].mxu0
    %v2465 = vadd.f32 0.0, %v2464
    %v2466 = vpop.f32.mrb[0].mxu0
    %2467 = vmatprep.mubr.f32.mxu0 0.0
    %2468 = vmatmul.mubr.f32.gmra.mrb[0].mxu0 %v2383
    %v2469 = vpop.f32.mrb[0].mxu0
    %v2470 = vadd.f32 0.0, %v2469
    %v2471 = vpop.f32.mrb[0].mxu0
    %2472 = vmatprep.mubr.f32.mxu0 0.0
    %2473 = vmatmul.mubr.f32.gmra.mrb[0].mxu0 %v2386
    %v2474 = vpop.f32.mrb[0].mxu0
    %v2475 = vadd.f32 0.0, %v2474
    %v2476 = vpop.f32.mrb[0].mxu0
    %2477 = vdwg.mxu0
    %v2478 = vmax.f32 %v2360, 1.0
    %v2479 = vmax.f32 %v2363, 1.0
    %v2480 = vmax.f32 %v2366, 1.0
    %v2481 = vmax.f32 %v2369, 1.0
    %v2482 = vmax.f32 %v2372, 1.0
    %v2483 = vrcp.pop %v2478
    %v2484 = vmul.f32 %v2455, %v2483
    %v2485 = vrcp.pop %v2479
    %v2486 = vmul.f32 %v2460, %v2485
    %v2487 = vrcp.pop %v2480
    %v2488 = vmul.f32 %v2465, %v2487
    %v2489 = vrcp.pop %v2481
    %v2490 = vmul.f32 %v2470, %v2489
    %v2491 = vrcp.pop %v2482
    %v2492 = vmul.f32 %v2475, %v2491
    %v2493 = vlaneseq
    %v2494 = vshrl.u32 %v2493, 7
    %v2495 = vsub.s32 0, %v2494
    %v2496 = vrot.slane %v2343, %v2495
    %v2498 = vsel %vm678, %v2484, 0
    %v2501 = vsel %vm678, %v2486, 0
    %v2504 = vsel %vm678, %v2488, 0
    %v2507 = vsel %vm678, %v2490, 0
    %v2510 = vsel %vm678, %v2492, 0
    %2512 = vmatprep.subr.mxu0 0.0
    %2513 = vmatpush1.msra.mxu0 %v2335
    %2514 = vmatprep.subr.mxu0 0.0
    %2515 = vmatpush1.msra.mxu0 %v2336
    %2516 = vmatprep.subr.mxu0 0.0
    %2517 = vmatpush1.msra.mxu0 %v2337
    %2518 = vmatprep.subr.mxu0 0.0
    %2519 = vmatpush1.msra.mxu0 %v2338
    %2520 = vmatprep.subr.mxu0 0.0
    %2521 = vmatpush1.msra.mxu0 0.0
    %2522 = vmatprep.subr.mxu0 0.0
    %2523 = vmatpush1.msra.mxu0 0.0
    %2524 = vmatprep.subr.mxu0 0.0
    %2525 = vmatpush1.msra.mxu0 0.0
    %2526 = vmatprep.subr.mxu0 0.0
    %2527 = vmatpush1.msra.mxu0 0.0
    %2528 = vmatprep.subr.mxu0 0.0
    %2529 = vmatpush1.msra.mxu0 0.0
    %2530 = vmatprep.subr.mxu0 0.0
    %2531 = vmatpush1.msra.mxu0 0.0
    %2532 = vmatprep.subr.mxu0 0.0
    %2533 = vmatpush1.msra.mxu0 0.0
    %2534 = vmatprep.subr.mxu0 0.0
    %2535 = vmatpush1.msra.mxu0 0.0
    %2536 = vmatprep.subr.mxu0 0.0
    %2537 = vmatpush1.msra.mxu0 0.0
    %2538 = vmatprep.subr.mxu0 0.0
    %2539 = vmatpush1.msra.mxu0 0.0
    %2540 = vmatprep.subr.mxu0 0.0
    %2541 = vmatpush1.msra.mxu0 0.0
    %2542 = vmatprep.subr.mxu0 0.0
    %2543 = vmatpush1.msra.mxu0 0.0
    %2544 = vmatprep.subr.mxu0 0.0
    %2545 = vmatpush1.msra.mxu0 0.0
    %2546 = vmatprep.subr.mxu0 0.0
    %2547 = vmatpush1.msra.mxu0 0.0
    %2548 = vmatprep.subr.mxu0 0.0
    %2549 = vmatpush1.msra.mxu0 0.0
    %2550 = vmatprep.subr.mxu0 0.0
    %2551 = vmatpush1.msra.mxu0 0.0
    %2552 = vmatprep.subr.mxu0 0.0
    %2553 = vmatpush1.msra.mxu0 0.0
    %2554 = vmatprep.subr.mxu0 0.0
    %2555 = vmatpush1.msra.mxu0 0.0
    %2556 = vmatprep.subr.mxu0 0.0
    %2557 = vmatpush1.msra.mxu0 0.0
    %2558 = vmatprep.subr.mxu0 0.0
    %2559 = vmatpush1.msra.mxu0 0.0
    %2560 = vmatprep.subr.mxu0 0.0
    %2561 = vmatpush1.msra.mxu0 0.0
    %2562 = vmatprep.subr.mxu0 0.0
    %2563 = vmatpush1.msra.mxu0 0.0
    %2564 = vmatprep.subr.mxu0 0.0
    %2565 = vmatpush1.msra.mxu0 0.0
    %2566 = vmatprep.subr.mxu0 0.0
    %2567 = vmatpush1.msra.mxu0 0.0
    %2568 = vmatprep.subr.mxu0 0.0
    %2569 = vmatpush1.msra.mxu0 0.0
    %2570 = vmatprep.subr.mxu0 0.0
    %2571 = vmatpush1.msra.mxu0 0.0
    %2572 = vmatprep.subr.mxu0 0.0
    %2573 = vmatpush1.msra.mxu0 0.0
    %2574 = vmatprep.subr.mxu0 0.0
    %2575 = vmatpush1.msra.mxu0 0.0
    %2576 = vmatprep.mubr.f32.mxu0 0.0
    %2577 = vmatmul.mubr.f32.gmra.mrb[0].mxu0 %v2498
    %v2578 = vpop.f32.mrb[0].mxu0
    %v2579 = vadd.f32 %v2496, %v2578
    %v2580 = vpop.f32.mrb[0].mxu0
    %2581 = vmatprep.mubr.f32.mxu0 0.0
    %2582 = vmatmul.mubr.f32.gmra.mrb[0].mxu0 %v2501
    %v2583 = vpop.f32.mrb[0].mxu0
    %v2584 = vadd.f32 %v2496, %v2583
    %v2585 = vpop.f32.mrb[0].mxu0
    %2586 = vmatprep.mubr.f32.mxu0 0.0
    %2587 = vmatmul.mubr.f32.gmra.mrb[0].mxu0 %v2504
    %v2588 = vpop.f32.mrb[0].mxu0
    %v2589 = vadd.f32 %v2496, %v2588
    %v2590 = vpop.f32.mrb[0].mxu0
    %2591 = vmatprep.mubr.f32.mxu0 0.0
    %2592 = vmatmul.mubr.f32.gmra.mrb[0].mxu0 %v2507
    %v2593 = vpop.f32.mrb[0].mxu0
    %v2594 = vadd.f32 %v2496, %v2593
    %v2595 = vpop.f32.mrb[0].mxu0
    %2596 = vmatprep.mubr.f32.mxu0 0.0
    %2597 = vmatmul.mubr.f32.gmra.mrb[0].mxu0 %v2510
    %v2598 = vpop.f32.mrb[0].mxu0
    %v2599 = vadd.f32 %v2496, %v2598
    %v2600 = vpop.f32.mrb[0].mxu0
    %2601 = vdwg.mxu0
    %v2603 = vsel %vm678, %v2167, 0
    %v2606 = vsel %vm678, %v2168, 0
    %v2609 = vsel %vm678, %v2169, 0
    %v2612 = vsel %vm678, %v2170, 0
    %v2615 = vsel %vm678, %v2171, 0
    %2617 = vmatprep.subr.mxu0 0.0
    %2618 = vmatpush1.msra.mxu0 %v2339
    %2619 = vmatprep.subr.mxu0 0.0
    %2620 = vmatpush1.msra.mxu0 %v2340
    %2621 = vmatprep.subr.mxu0 0.0
    %2622 = vmatpush1.msra.mxu0 %v2341
    %2623 = vmatprep.subr.mxu0 0.0
    %2624 = vmatpush1.msra.mxu0 %v2342
    %2625 = vmatprep.subr.mxu0 0.0
    %2626 = vmatpush1.msra.mxu0 0.0
    %2627 = vmatprep.subr.mxu0 0.0
    %2628 = vmatpush1.msra.mxu0 0.0
    %2629 = vmatprep.subr.mxu0 0.0
    %2630 = vmatpush1.msra.mxu0 0.0
    %2631 = vmatprep.subr.mxu0 0.0
    %2632 = vmatpush1.msra.mxu0 0.0
    %2633 = vmatprep.subr.mxu0 0.0
    %2634 = vmatpush1.msra.mxu0 0.0
    %2635 = vmatprep.subr.mxu0 0.0
    %2636 = vmatpush1.msra.mxu0 0.0
    %2637 = vmatprep.subr.mxu0 0.0
    %2638 = vmatpush1.msra.mxu0 0.0
    %2639 = vmatprep.subr.mxu0 0.0
    %2640 = vmatpush1.msra.mxu0 0.0
    %2641 = vmatprep.subr.mxu0 0.0
    %2642 = vmatpush1.msra.mxu0 0.0
    %2643 = vmatprep.subr.mxu0 0.0
    %2644 = vmatpush1.msra.mxu0 0.0
    %2645 = vmatprep.subr.mxu0 0.0
    %2646 = vmatpush1.msra.mxu0 0.0
    %2647 = vmatprep.subr.mxu0 0.0
    %2648 = vmatpush1.msra.mxu0 0.0
    %2649 = vmatprep.subr.mxu0 0.0
    %2650 = vmatpush1.msra.mxu0 0.0
    %2651 = vmatprep.subr.mxu0 0.0
    %2652 = vmatpush1.msra.mxu0 0.0
    %2653 = vmatprep.subr.mxu0 0.0
    %2654 = vmatpush1.msra.mxu0 0.0
    %2655 = vmatprep.subr.mxu0 0.0
    %2656 = vmatpush1.msra.mxu0 0.0
    %2657 = vmatprep.subr.mxu0 0.0
    %2658 = vmatpush1.msra.mxu0 0.0
    %2659 = vmatprep.subr.mxu0 0.0
    %2660 = vmatpush1.msra.mxu0 0.0
    %2661 = vmatprep.subr.mxu0 0.0
    %2662 = vmatpush1.msra.mxu0 0.0
    %2663 = vmatprep.subr.mxu0 0.0
    %2664 = vmatpush1.msra.mxu0 0.0
    %2665 = vmatprep.subr.mxu0 0.0
    %2666 = vmatpush1.msra.mxu0 0.0
    %2667 = vmatprep.subr.mxu0 0.0
    %2668 = vmatpush1.msra.mxu0 0.0
    %2669 = vmatprep.subr.mxu0 0.0
    %2670 = vmatpush1.msra.mxu0 0.0
    %2671 = vmatprep.subr.mxu0 0.0
    %2672 = vmatpush1.msra.mxu0 0.0
    %2673 = vmatprep.subr.mxu0 0.0
    %2674 = vmatpush1.msra.mxu0 0.0
    %2675 = vmatprep.subr.mxu0 0.0
    %2676 = vmatpush1.msra.mxu0 0.0
    %2677 = vmatprep.subr.mxu0 0.0
    %2678 = vmatpush1.msra.mxu0 0.0
    %2679 = vmatprep.subr.mxu0 0.0
    %2680 = vmatpush1.msra.mxu0 0.0
    %2681 = vmatprep.mubr.f32.mxu0 0.0
    %2682 = vmatmul.mubr.f32.gmra.mrb[0].mxu0 %v2603
    %v2683 = vpop.f32.mrb[0].mxu0
    %v2684 = vadd.f32 0.0, %v2683
    %v2685 = vpop.f32.mrb[0].mxu0
    %2686 = vmatprep.mubr.f32.mxu0 0.0
    %2687 = vmatmul.mubr.f32.gmra.mrb[0].mxu0 %v2606
    %v2688 = vpop.f32.mrb[0].mxu0
    %v2689 = vadd.f32 0.0, %v2688
    %v2690 = vpop.f32.mrb[0].mxu0
    %2691 = vmatprep.mubr.f32.mxu0 0.0
    %2692 = vmatmul.mubr.f32.gmra.mrb[0].mxu0 %v2609
    %v2693 = vpop.f32.mrb[0].mxu0
    %v2694 = vadd.f32 0.0, %v2693
    %v2695 = vpop.f32.mrb[0].mxu0
    %2696 = vmatprep.mubr.f32.mxu0 0.0
    %2697 = vmatmul.mubr.f32.gmra.mrb[0].mxu0 %v2612
    %v2698 = vpop.f32.mrb[0].mxu0
    %v2699 = vadd.f32 0.0, %v2698
    %v2700 = vpop.f32.mrb[0].mxu0
    %2701 = vmatprep.mubr.f32.mxu0 0.0
    %2702 = vmatmul.mubr.f32.gmra.mrb[0].mxu0 %v2615
    %v2703 = vpop.f32.mrb[0].mxu0
    %v2704 = vadd.f32 0.0, %v2703
    %v2705 = vpop.f32.mrb[0].mxu0
    %2706 = vdwg.mxu0
    %v2707 = vadd.f32 %v2579, %v2684
    %v2708 = vadd.f32 %v2584, %v2689
    %v2709 = vadd.f32 %v2589, %v2694
    %v2710 = vadd.f32 %v2594, %v2699
    %v2711 = vadd.f32 %v2599, %v2704
    %v2712 = vmax.f32 %v2707, 0.0
    %v2713 = vmax.f32 %v2708, 0.0
    %v2714 = vmax.f32 %v2709, 0.0
    %v2715 = vmax.f32 %v2710, 0.0
    %v2716 = vmax.f32 %v2711, 0.0
    %2717 = vmatprep.subr.mxu0 0.0
    %2718 = vmatpush1.msra.mxu0 %v2712
    %2719 = vmatprep.subr.mxu0 0.0
    %2720 = vmatpush1.msra.mxu0 %v2713
    %2721 = vmatprep.subr.mxu0 0.0
    %2722 = vmatpush1.msra.mxu0 %v2714
    %2723 = vmatprep.subr.mxu0 0.0
    %2724 = vmatpush1.msra.mxu0 %v2715
    %2725 = vmatprep.subr.mxu0 0.0
    %2726 = vmatpush1.msra.mxu0 %v2716
    %2727 = vmatprep.subr.mxu0 0.0
    %2728 = vmatpush1.msra.mxu0 0.0
    %2729 = vmatprep.subr.mxu0 0.0
    %2730 = vmatpush1.msra.mxu0 0.0
    %2731 = vmatprep.subr.mxu0 0.0
    %2732 = vmatpush1.msra.mxu0 0.0
    %2733 = vmatprep.subr.mxu0 0.0
    %2734 = vmatpush1.msra.mxu0 0.0
    %2735 = vmatprep.subr.mxu0 0.0
    %2736 = vmatpush1.msra.mxu0 0.0
    %2737 = vmatprep.subr.mxu0 0.0
    %2738 = vmatpush1.msra.mxu0 0.0
    %2739 = vmatprep.subr.mxu0 0.0
    %2740 = vmatpush1.msra.mxu0 0.0
    %2741 = vmatprep.subr.mxu0 0.0
    %2742 = vmatpush1.msra.mxu0 0.0
    %2743 = vmatprep.subr.mxu0 0.0
    %2744 = vmatpush1.msra.mxu0 0.0
    %2745 = vmatprep.subr.mxu0 0.0
    %2746 = vmatpush1.msra.mxu0 0.0
    %2747 = vmatprep.subr.mxu0 0.0
    %2748 = vmatpush1.msra.mxu0 0.0
    %2749 = vmatprep.subr.mxu0 0.0
    %2750 = vmatpush1.msra.mxu0 0.0
    %2751 = vmatprep.subr.mxu0 0.0
    %2752 = vmatpush1.msra.mxu0 0.0
    %2753 = vmatprep.subr.mxu0 0.0
    %2754 = vmatpush1.msra.mxu0 0.0
    %2755 = vmatprep.subr.mxu0 0.0
    %2756 = vmatpush1.msra.mxu0 0.0
    %2757 = vmatprep.subr.mxu0 0.0
    %2758 = vmatpush1.msra.mxu0 0.0
    %2759 = vmatprep.subr.mxu0 0.0
    %2760 = vmatpush1.msra.mxu0 0.0
    %2761 = vmatprep.subr.mxu0 0.0
    %2762 = vmatpush1.msra.mxu0 0.0
    %2763 = vmatprep.subr.mxu0 0.0
    %2764 = vmatpush1.msra.mxu0 0.0
    %2765 = vmatprep.subr.mxu0 0.0
    %2766 = vmatpush1.msra.mxu0 0.0
    %2767 = vmatprep.subr.mxu0 0.0
    %2768 = vmatpush1.msra.mxu0 0.0
    %2769 = vmatprep.subr.mxu0 0.0
    %2770 = vmatpush1.msra.mxu0 0.0
    %2771 = vmatprep.subr.mxu0 0.0
    %2772 = vmatpush1.msra.mxu0 0.0
    %2773 = vmatprep.subr.mxu0 0.0
    %2774 = vmatpush1.msra.mxu0 0.0
    %2775 = vmatprep.subr.mxu0 0.0
    %2776 = vmatpush1.msra.mxu0 0.0
    %2777 = vmatprep.subr.mxu0 0.0
    %2778 = vmatpush1.msra.mxu0 0.0
    %2779 = vmatprep.subr.mxu0 0.0
    %2780 = vmatpush1.msra.mxu0 0.0
    %2781 = vmatprep.mubr.f32.mxu0 0.0
    %2782 = vmatmul.mubr.f32.gmra.mrb[0].mxu0 %v2374
    %v2783 = vpop.f32.mrb[0].mxu0
    %v2784 = vadd.f32 0.0, %v2783
    %v2785 = vpop.f32.mrb[0].mxu0
    %2786 = vmatprep.mubr.f32.mxu0 0.0
    %2787 = vmatmul.mubr.f32.gmra.mrb[0].mxu0 %v2377
    %v2788 = vpop.f32.mrb[0].mxu0
    %v2789 = vadd.f32 0.0, %v2788
    %v2790 = vpop.f32.mrb[0].mxu0
    %2791 = vmatprep.mubr.f32.mxu0 0.0
    %2792 = vmatmul.mubr.f32.gmra.mrb[0].mxu0 %v2380
    %v2793 = vpop.f32.mrb[0].mxu0
    %v2794 = vadd.f32 0.0, %v2793
    %v2795 = vpop.f32.mrb[0].mxu0
    %2796 = vmatprep.mubr.f32.mxu0 0.0
    %2797 = vmatmul.mubr.f32.gmra.mrb[0].mxu0 %v2383
    %v2798 = vpop.f32.mrb[0].mxu0
    %v2799 = vadd.f32 0.0, %v2798
    %v2800 = vpop.f32.mrb[0].mxu0
    %2801 = vmatprep.mubr.f32.mxu0 0.0
    %2802 = vmatmul.mubr.f32.gmra.mrb[0].mxu0 %v2386
    %v2803 = vpop.f32.mrb[0].mxu0
    %v2804 = vadd.f32 0.0, %v2803
    %v2805 = vpop.f32.mrb[0].mxu0
    %2806 = vdwg.mxu0
    %v2807 = vlaneseq
    %v2808 = vshrl.u32 %v2807, 7
    %v2809 = vsub.s32 0, %v2808
    %v2810 = vrot.slane %v2352, %v2809
    %v2812 = vsel %vm678, %v2784, 0
    %v2815 = vsel %vm678, %v2789, 0
    %v2818 = vsel %vm678, %v2794, 0
    %v2821 = vsel %vm678, %v2799, 0
    %v2824 = vsel %vm678, %v2804, 0
    %2826 = vmatprep.subr.mxu0 0.0
    %2827 = vmatpush1.msra.mxu0 %v2344
    %2828 = vmatprep.subr.mxu0 0.0
    %2829 = vmatpush1.msra.mxu0 %v2345
    %2830 = vmatprep.subr.mxu0 0.0
    %2831 = vmatpush1.msra.mxu0 %v2346
    %2832 = vmatprep.subr.mxu0 0.0
    %2833 = vmatpush1.msra.mxu0 %v2347
    %2834 = vmatprep.subr.mxu0 0.0
    %2835 = vmatpush1.msra.mxu0 0.0
    %2836 = vmatprep.subr.mxu0 0.0
    %2837 = vmatpush1.msra.mxu0 0.0
    %2838 = vmatprep.subr.mxu0 0.0
    %2839 = vmatpush1.msra.mxu0 0.0
    %2840 = vmatprep.subr.mxu0 0.0
    %2841 = vmatpush1.msra.mxu0 0.0
    %2842 = vmatprep.subr.mxu0 0.0
    %2843 = vmatpush1.msra.mxu0 0.0
    %2844 = vmatprep.subr.mxu0 0.0
    %2845 = vmatpush1.msra.mxu0 0.0
    %2846 = vmatprep.subr.mxu0 0.0
    %2847 = vmatpush1.msra.mxu0 0.0
    %2848 = vmatprep.subr.mxu0 0.0
    %2849 = vmatpush1.msra.mxu0 0.0
    %2850 = vmatprep.subr.mxu0 0.0
    %2851 = vmatpush1.msra.mxu0 0.0
    %2852 = vmatprep.subr.mxu0 0.0
    %2853 = vmatpush1.msra.mxu0 0.0
    %2854 = vmatprep.subr.mxu0 0.0
    %2855 = vmatpush1.msra.mxu0 0.0
    %2856 = vmatprep.subr.mxu0 0.0
    %2857 = vmatpush1.msra.mxu0 0.0
    %2858 = vmatprep.subr.mxu0 0.0
    %2859 = vmatpush1.msra.mxu0 0.0
    %2860 = vmatprep.subr.mxu0 0.0
    %2861 = vmatpush1.msra.mxu0 0.0
    %2862 = vmatprep.subr.mxu0 0.0
    %2863 = vmatpush1.msra.mxu0 0.0
    %2864 = vmatprep.subr.mxu0 0.0
    %2865 = vmatpush1.msra.mxu0 0.0
    %2866 = vmatprep.subr.mxu0 0.0
    %2867 = vmatpush1.msra.mxu0 0.0
    %2868 = vmatprep.subr.mxu0 0.0
    %2869 = vmatpush1.msra.mxu0 0.0
    %2870 = vmatprep.subr.mxu0 0.0
    %2871 = vmatpush1.msra.mxu0 0.0
    %2872 = vmatprep.subr.mxu0 0.0
    %2873 = vmatpush1.msra.mxu0 0.0
    %2874 = vmatprep.subr.mxu0 0.0
    %2875 = vmatpush1.msra.mxu0 0.0
    %2876 = vmatprep.subr.mxu0 0.0
    %2877 = vmatpush1.msra.mxu0 0.0
    %2878 = vmatprep.subr.mxu0 0.0
    %2879 = vmatpush1.msra.mxu0 0.0
    %2880 = vmatprep.subr.mxu0 0.0
    %2881 = vmatpush1.msra.mxu0 0.0
    %2882 = vmatprep.subr.mxu0 0.0
    %2883 = vmatpush1.msra.mxu0 0.0
    %2884 = vmatprep.subr.mxu0 0.0
    %2885 = vmatpush1.msra.mxu0 0.0
    %2886 = vmatprep.subr.mxu0 0.0
    %2887 = vmatpush1.msra.mxu0 0.0
    %2888 = vmatprep.subr.mxu0 0.0
    %2889 = vmatpush1.msra.mxu0 0.0
    %2890 = vmatprep.mubr.f32.mxu0 0.0
    %2891 = vmatmul.mubr.f32.gmra.mrb[0].mxu0 %v2812
    %v2892 = vpop.f32.mrb[0].mxu0
    %v2893 = vadd.f32 %v2810, %v2892
    %v2894 = vpop.f32.mrb[0].mxu0
    %2895 = vmatprep.mubr.f32.mxu0 0.0
    %2896 = vmatmul.mubr.f32.gmra.mrb[0].mxu0 %v2815
    %v2897 = vpop.f32.mrb[0].mxu0
    %v2898 = vadd.f32 %v2810, %v2897
    %v2899 = vpop.f32.mrb[0].mxu0
    %2900 = vmatprep.mubr.f32.mxu0 0.0
    %2901 = vmatmul.mubr.f32.gmra.mrb[0].mxu0 %v2818
    %v2902 = vpop.f32.mrb[0].mxu0
    %v2903 = vadd.f32 %v2810, %v2902
    %v2904 = vpop.f32.mrb[0].mxu0
    %2905 = vmatprep.mubr.f32.mxu0 0.0
    %2906 = vmatmul.mubr.f32.gmra.mrb[0].mxu0 %v2821
    %v2907 = vpop.f32.mrb[0].mxu0
    %v2908 = vadd.f32 %v2810, %v2907
    %v2909 = vpop.f32.mrb[0].mxu0
    %2910 = vmatprep.mubr.f32.mxu0 0.0
    %2911 = vmatmul.mubr.f32.gmra.mrb[0].mxu0 %v2824
    %v2912 = vpop.f32.mrb[0].mxu0
    %v2913 = vadd.f32 %v2810, %v2912
    %v2914 = vpop.f32.mrb[0].mxu0
    %2915 = vdwg.mxu0
    %v2917 = vsel %vm678, %v2712, 0
    %v2920 = vsel %vm678, %v2713, 0
    %v2923 = vsel %vm678, %v2714, 0
    %v2926 = vsel %vm678, %v2715, 0
    %v2929 = vsel %vm678, %v2716, 0
    %2931 = vmatprep.subr.mxu0 0.0
    %2932 = vmatpush1.msra.mxu0 %v2348
    %2933 = vmatprep.subr.mxu0 0.0
    %2934 = vmatpush1.msra.mxu0 %v2349
    %2935 = vmatprep.subr.mxu0 0.0
    %2936 = vmatpush1.msra.mxu0 %v2350
    %2937 = vmatprep.subr.mxu0 0.0
    %2938 = vmatpush1.msra.mxu0 %v2351
    %2939 = vmatprep.subr.mxu0 0.0
    %2940 = vmatpush1.msra.mxu0 0.0
    %2941 = vmatprep.subr.mxu0 0.0
    %2942 = vmatpush1.msra.mxu0 0.0
    %2943 = vmatprep.subr.mxu0 0.0
    %2944 = vmatpush1.msra.mxu0 0.0
    %2945 = vmatprep.subr.mxu0 0.0
    %2946 = vmatpush1.msra.mxu0 0.0
    %2947 = vmatprep.subr.mxu0 0.0
    %2948 = vmatpush1.msra.mxu0 0.0
    %2949 = vmatprep.subr.mxu0 0.0
    %2950 = vmatpush1.msra.mxu0 0.0
    %2951 = vmatprep.subr.mxu0 0.0
    %2952 = vmatpush1.msra.mxu0 0.0
    %2953 = vmatprep.subr.mxu0 0.0
    %2954 = vmatpush1.msra.mxu0 0.0
    %2955 = vmatprep.subr.mxu0 0.0
    %2956 = vmatpush1.msra.mxu0 0.0
    %2957 = vmatprep.subr.mxu0 0.0
    %2958 = vmatpush1.msra.mxu0 0.0
    %2959 = vmatprep.subr.mxu0 0.0
    %2960 = vmatpush1.msra.mxu0 0.0
    %2961 = vmatprep.subr.mxu0 0.0
    %2962 = vmatpush1.msra.mxu0 0.0
    %2963 = vmatprep.subr.mxu0 0.0
    %2964 = vmatpush1.msra.mxu0 0.0
    %2965 = vmatprep.subr.mxu0 0.0
    %2966 = vmatpush1.msra.mxu0 0.0
    %2967 = vmatprep.subr.mxu0 0.0
    %2968 = vmatpush1.msra.mxu0 0.0
    %2969 = vmatprep.subr.mxu0 0.0
    %2970 = vmatpush1.msra.mxu0 0.0
    %2971 = vmatprep.subr.mxu0 0.0
    %2972 = vmatpush1.msra.mxu0 0.0
    %2973 = vmatprep.subr.mxu0 0.0
    %2974 = vmatpush1.msra.mxu0 0.0
    %2975 = vmatprep.subr.mxu0 0.0
    %2976 = vmatpush1.msra.mxu0 0.0
    %2977 = vmatprep.subr.mxu0 0.0
    %2978 = vmatpush1.msra.mxu0 0.0
    %2979 = vmatprep.subr.mxu0 0.0
    %2980 = vmatpush1.msra.mxu0 0.0
    %2981 = vmatprep.subr.mxu0 0.0
    %2982 = vmatpush1.msra.mxu0 0.0
    %2983 = vmatprep.subr.mxu0 0.0
    %2984 = vmatpush1.msra.mxu0 0.0
    %2985 = vmatprep.subr.mxu0 0.0
    %2986 = vmatpush1.msra.mxu0 0.0
    %2987 = vmatprep.subr.mxu0 0.0
    %2988 = vmatpush1.msra.mxu0 0.0
    %2989 = vmatprep.subr.mxu0 0.0
    %2990 = vmatpush1.msra.mxu0 0.0
    %2991 = vmatprep.subr.mxu0 0.0
    %2992 = vmatpush1.msra.mxu0 0.0
    %2993 = vmatprep.subr.mxu0 0.0
    %2994 = vmatpush1.msra.mxu0 0.0
    %2995 = vmatprep.mubr.f32.mxu0 0.0
    %2996 = vmatmul.mubr.f32.gmra.mrb[0].mxu0 %v2917
    %v2997 = vpop.f32.mrb[0].mxu0
    %v2998 = vadd.f32 0.0, %v2997
    %v2999 = vpop.f32.mrb[0].mxu0
    %3000 = vmatprep.mubr.f32.mxu0 0.0
    %3001 = vmatmul.mubr.f32.gmra.mrb[0].mxu0 %v2920
    %v3002 = vpop.f32.mrb[0].mxu0
    %v3003 = vadd.f32 0.0, %v3002
    %v3004 = vpop.f32.mrb[0].mxu0
    %3005 = vmatprep.mubr.f32.mxu0 0.0
    %3006 = vmatmul.mubr.f32.gmra.mrb[0].mxu0 %v2923
    %v3007 = vpop.f32.mrb[0].mxu0
    %v3008 = vadd.f32 0.0, %v3007
    %v3009 = vpop.f32.mrb[0].mxu0
    %3010 = vmatprep.mubr.f32.mxu0 0.0
    %3011 = vmatmul.mubr.f32.gmra.mrb[0].mxu0 %v2926
    %v3012 = vpop.f32.mrb[0].mxu0
    %v3013 = vadd.f32 0.0, %v3012
    %v3014 = vpop.f32.mrb[0].mxu0
    %3015 = vmatprep.mubr.f32.mxu0 0.0
    %3016 = vmatmul.mubr.f32.gmra.mrb[0].mxu0 %v2929
    %v3017 = vpop.f32.mrb[0].mxu0
    %v3018 = vadd.f32 0.0, %v3017
    %v3019 = vpop.f32.mrb[0].mxu0
    %3020 = vdwg.mxu0
    %v3021 = vadd.f32 %v2893, %v2998
    %v3022 = vadd.f32 %v2898, %v3003
    %v3023 = vadd.f32 %v2903, %v3008
    %v3024 = vadd.f32 %v2908, %v3013
    %v3025 = vadd.f32 %v2913, %v3018
    %3026 = vxpose.xlu0.b32.start [1/16] %v3021, 128
    %3027 = vxpose.xlu0.b32.cont [2/16] %v3022, 128
    %3028 = vxpose.xlu0.b32.cont [3/16] %v3023, 128
    %3029 = vxpose.xlu0.b32.cont [4/16] %v3024, 128
    %3030 = vxpose.xlu0.b32.cont [5/16] %v3025, 128
    %3031 = vxpose.xlu0.b32.cont [6/16] 0.0, 128
    %3032 = vxpose.xlu0.b32.cont [7/16] 0.0, 128
    %3033 = vxpose.xlu0.b32.cont [8/16] 0.0, 128
    %3034 = vxpose.xlu0.b32.cont [9/16] 0.0, 128
    %3035 = vxpose.xlu0.b32.cont [10/16] 0.0, 128
    %3036 = vxpose.xlu0.b32.cont [11/16] 0.0, 128
    %3037 = vxpose.xlu0.b32.cont [12/16] 0.0, 128
    %3038 = vxpose.xlu0.b32.cont [13/16] 0.0, 128
    %3039 = vxpose.xlu0.b32.cont [14/16] 0.0, 128
    %3040 = vxpose.xlu0.b32.cont [15/16] 0.0, 128
    %3041 = vxpose.xlu0.b32.end [16/16] 0.0, 128
    %v3042 = vpop.trf.xlu0
    %v3043 = vpop.trf.xlu0
    %v3044 = vpop.trf.xlu0
    %v3045 = vpop.trf.xlu0
    %v3046 = vpop.trf.xlu0
    %v3047 = vpop.trf.xlu0
    %v3048 = vpop.trf.xlu0
    %v3049 = vpop.trf.xlu0
    %v3050 = vpop.trf.xlu0
    %v3051 = vpop.trf.xlu0
    %v3052 = vpop.trf.xlu0
    %v3053 = vpop.trf.xlu0
    %v3054 = vpop.trf.xlu0
    %v3055 = vpop.trf.xlu0
    %v3056 = vpop.trf.xlu0
    %v3057 = vpop.trf.xlu0
    %v3058 = vlaneseq
    %v3059 = vshrl.u32 %v3058, 7
    %v3060 = vsub.s32 0, %v3059
    %v3061 = vrot.slane %v3042, %v3060
    %3063 = vset.pattern.permute.xlu0 0
    %3064 = vperm.xlu0 %3063, %v3021
    %v3065 = vpop.permute.xlu0 %3064
    %3068 = vset.pattern.permute.xlu0 0
    %3069 = vperm.xlu0 %3068, %v3022
    %v3070 = vpop.permute.xlu0 %3069
    %3073 = vset.pattern.permute.xlu0 0
    %3074 = vperm.xlu0 %3073, %v3023
    %v3075 = vpop.permute.xlu0 %3074
    %3078 = vset.pattern.permute.xlu0 0
    %3079 = vperm.xlu0 %3078, %v3024
    %v3080 = vpop.permute.xlu0 %3079
    %3083 = vset.pattern.permute.xlu0 0
    %3084 = vperm.xlu0 %3083, %v3025
    %v3085 = vpop.permute.xlu0 %3084
    %vm3087 = vcmp.gt.f32.partialorder %v3061, %v3065
    %vm3088 = vcmp.gt.f32.partialorder %v3061, %v3070
    %vm3089 = vcmp.gt.f32.partialorder %v3061, %v3075
    %vm3090 = vcmp.gt.f32.partialorder %v3061, %v3080
    %vm3091 = vcmp.gt.f32.partialorder %v3061, %v3085
    %vm3092 = vcmp.eq.f32.partialorder %v3061, %v3065
    %vm3093 = vcmp.eq.f32.partialorder %v3061, %v3070
    %vm3094 = vcmp.eq.f32.partialorder %v3061, %v3075
    %vm3095 = vcmp.eq.f32.partialorder %v3061, %v3080
    %vm3096 = vcmp.eq.f32.partialorder %v3061, %v3085
    %vm3097 = vmand %vm3092, %vm965
    %vm3098 = vmand %vm3093, %vm966
    %vm3099 = vmand %vm3094, %vm967
    %vm3100 = vmand %vm3095, %vm968
    %vm3101 = vmand %vm3096, %vm969
    %vm3102 = vmor %vm3087, %vm3097
    %vm3103 = vmor %vm3088, %vm3098
    %vm3104 = vmor %vm3089, %vm3099
    %vm3105 = vmor %vm3090, %vm3100
    %vm3106 = vmor %vm3091, %vm3101
    %vm3107 = vcmp.gt.f32.partialorder %v2116, 0.5
    %v3108 = vsel %vm3107, 1, 0
    %v3109 = vlaneseq
    %v3110 = vshrl.u32 %v3109, 7
    %v3111 = vsub.s32 0, %v3110
    %v3112 = vrot.slane %v3108, %v3111
    %vm3113 = vcmp.eq.s32.totalorder %v3112, 1
    %vm3114 = vmand %vm980, %vm3113
    %vm3115 = vmand %vm981, %vm3113
    %vm3116 = vmand %vm982, %vm3113
    %vm3117 = vmand %vm983, %vm3113
    %vm3118 = vmand %vm984, %vm3113
    %vm3119 = vmand %vm3102, %vm3114
    %vm3120 = vmand %vm3103, %vm3115
    %vm3121 = vmand %vm3104, %vm3116
    %vm3122 = vmand %vm3105, %vm3117
    %vm3123 = vmand %vm3106, %vm3118
    %v3124 = vsel %vm3119, 1.0, 0.0
    %v3125 = vsel %vm3120, 1.0, 0.0
    %v3126 = vsel %vm3121, 1.0, 0.0
    %v3127 = vsel %vm3122, 1.0, 0.0
    %v3128 = vsel %vm3123, 1.0, 0.0
    %v3129 = vsel %vm224, %v3124, 0.0
    %3130 = vadd.xlane.f32.xlu0 %v3129
    %v3131 = vpop.xlane.xlu0 %3130
    %v3132 = vsel %vm224, %v3125, 0.0
    %3133 = vadd.xlane.f32.xlu0 %v3132
    %v3134 = vpop.xlane.xlu0 %3133
    %v3135 = vsel %vm224, %v3126, 0.0
    %3136 = vadd.xlane.f32.xlu0 %v3135
    %v3137 = vpop.xlane.xlu0 %3136
    %v3138 = vsel %vm224, %v3127, 0.0
    %3139 = vadd.xlane.f32.xlu0 %v3138
    %v3140 = vpop.xlane.xlu0 %3139
    %v3141 = vsel %vm224, %v3128, 0.0
    %3142 = vadd.xlane.f32.xlu0 %v3141
    %v3143 = vpop.xlane.xlu0 %3142
    %vm3144 = vcmp.lt.f32.partialorder %v3131, 1.0
    %vm3145 = vcmp.lt.f32.partialorder %v3134, 1.0
    %vm3146 = vcmp.lt.f32.partialorder %v3137, 1.0
    %vm3147 = vcmp.lt.f32.partialorder %v3140, 1.0
    %vm3148 = vcmp.lt.f32.partialorder %v3143, 1.0
    %vm3149 = vmand %vm2256, %vm3144
    %vm3150 = vmand %vm2257, %vm3145
    %vm3151 = vmand %vm2258, %vm3146
    %vm3152 = vmand %vm2259, %vm3147
    %vm3153 = vmand %vm2260, %vm3148
    %v3154 = vsel %vm3149, 1.0, 0.0
    %v3155 = vsel %vm3150, 1.0, 0.0
    %v3156 = vsel %vm3151, 1.0, 0.0
    %v3157 = vsel %vm3152, 1.0, 0.0
    %v3158 = vsel %vm3153, 1.0, 0.0
    %3159 = vxpose.xlu0.b32.start [1/16] %v3154, 128
    %3160 = vxpose.xlu0.b32.cont [2/16] %v3155, 128
    %3161 = vxpose.xlu0.b32.cont [3/16] %v3156, 128
    %3162 = vxpose.xlu0.b32.cont [4/16] %v3157, 128
    %3163 = vxpose.xlu0.b32.cont [5/16] %v3158, 128
    %3164 = vxpose.xlu0.b32.cont [6/16] 0.0, 128
    %3165 = vxpose.xlu0.b32.cont [7/16] 0.0, 128
    %3166 = vxpose.xlu0.b32.cont [8/16] 0.0, 128
    %3167 = vxpose.xlu0.b32.cont [9/16] 0.0, 128
    %3168 = vxpose.xlu0.b32.cont [10/16] 0.0, 128
    %3169 = vxpose.xlu0.b32.cont [11/16] 0.0, 128
    %3170 = vxpose.xlu0.b32.cont [12/16] 0.0, 128
    %3171 = vxpose.xlu0.b32.cont [13/16] 0.0, 128
    %3172 = vxpose.xlu0.b32.cont [14/16] 0.0, 128
    %3173 = vxpose.xlu0.b32.cont [15/16] 0.0, 128
    %3174 = vxpose.xlu0.b32.end [16/16] 0.0, 128
    %v3175 = vpop.trf.xlu0
    %v3176 = vpop.trf.xlu0
    %v3177 = vpop.trf.xlu0
    %v3178 = vpop.trf.xlu0
    %v3179 = vpop.trf.xlu0
    %v3180 = vpop.trf.xlu0
    %v3181 = vpop.trf.xlu0
    %v3182 = vpop.trf.xlu0
    %v3183 = vpop.trf.xlu0
    %v3184 = vpop.trf.xlu0
    %v3185 = vpop.trf.xlu0
    %v3186 = vpop.trf.xlu0
    %v3187 = vpop.trf.xlu0
    %v3188 = vpop.trf.xlu0
    %v3189 = vpop.trf.xlu0
    %v3190 = vpop.trf.xlu0
    %v3191 = vtanh.pop %v3021
    %v3192 = vtanh.pop %v3022
    %v3193 = vtanh.pop %v3023
    %v3194 = vtanh.pop %v3024
    %v3195 = vtanh.pop %v3025
    %3197 = vset.pattern.permute.xlu0 0
    %3198 = vperm.xlu0 %3197, %v3191
    %v3199 = vpop.permute.xlu0 %3198
    %3202 = vset.pattern.permute.xlu0 0
    %3203 = vperm.xlu0 %3202, %v3192
    %v3204 = vpop.permute.xlu0 %3203
    %3207 = vset.pattern.permute.xlu0 0
    %3208 = vperm.xlu0 %3207, %v3193
    %v3209 = vpop.permute.xlu0 %3208
    %3212 = vset.pattern.permute.xlu0 0
    %3213 = vperm.xlu0 %3212, %v3194
    %v3214 = vpop.permute.xlu0 %3213
    %3217 = vset.pattern.permute.xlu0 0
    %3218 = vperm.xlu0 %3217, %v3195
    %v3219 = vpop.permute.xlu0 %3218
    %v3221 = vmul.f32 %v2712, %v3199
    %v3222 = vmul.f32 %v2713, %v3204
    %v3223 = vmul.f32 %v2714, %v3209
    %v3224 = vmul.f32 %v2715, %v3214
    %v3225 = vmul.f32 %v2716, %v3219
    %v3226 = vmul.f32 %v3221, %v3154
    %v3227 = vmul.f32 %v3222, %v3155
    %v3228 = vmul.f32 %v3223, %v3156
    %v3229 = vmul.f32 %v3224, %v3157
    %v3230 = vmul.f32 %v3225, %v3158
    %v3231 = vlaneseq
    %v3232 = vshrl.u32 %v3231, 7
    %v3233 = vsub.s32 0, %v3232
    %v3234 = vrot.slane %v3175, %v3233
    %v3235 = vmul.f32 %v104, %v3234
    %v3236 = vsel %vm1115, %v3235, 0.0
    %3237 = vadd.xlane.f32.xlu0 %v3236
    %v3238 = vpop.xlane.xlu0 %3237
    %v3239 = vmax.f32 %v3238, 1.0
    %v3241 = vsel %vm224, %v3235, 0
    %3243 = vmatprep.subr.mxu0 0.0
    %3244 = vmatpush1.msra.mxu0 %v3226
    %3245 = vmatprep.subr.mxu0 0.0
    %3246 = vmatpush1.msra.mxu0 %v3227
    %3247 = vmatprep.subr.mxu0 0.0
    %3248 = vmatpush1.msra.mxu0 %v3228
    %3249 = vmatprep.subr.mxu0 0.0
    %3250 = vmatpush1.msra.mxu0 %v3229
    %3251 = vmatprep.subr.mxu0 0.0
    %3252 = vmatpush1.msra.mxu0 %v3230
    %3253 = vmatprep.subr.mxu0 0.0
    %3254 = vmatpush1.msra.mxu0 0.0
    %3255 = vmatprep.subr.mxu0 0.0
    %3256 = vmatpush1.msra.mxu0 0.0
    %3257 = vmatprep.subr.mxu0 0.0
    %3258 = vmatpush1.msra.mxu0 0.0
    %3259 = vmatprep.subr.mxu0 0.0
    %3260 = vmatpush1.msra.mxu0 0.0
    %3261 = vmatprep.subr.mxu0 0.0
    %3262 = vmatpush1.msra.mxu0 0.0
    %3263 = vmatprep.subr.mxu0 0.0
    %3264 = vmatpush1.msra.mxu0 0.0
    %3265 = vmatprep.subr.mxu0 0.0
    %3266 = vmatpush1.msra.mxu0 0.0
    %3267 = vmatprep.subr.mxu0 0.0
    %3268 = vmatpush1.msra.mxu0 0.0
    %3269 = vmatprep.subr.mxu0 0.0
    %3270 = vmatpush1.msra.mxu0 0.0
    %3271 = vmatprep.subr.mxu0 0.0
    %3272 = vmatpush1.msra.mxu0 0.0
    %3273 = vmatprep.subr.mxu0 0.0
    %3274 = vmatpush1.msra.mxu0 0.0
    %3275 = vmatprep.subr.mxu0 0.0
    %3276 = vmatpush1.msra.mxu0 0.0
    %3277 = vmatprep.subr.mxu0 0.0
    %3278 = vmatpush1.msra.mxu0 0.0
    %3279 = vmatprep.subr.mxu0 0.0
    %3280 = vmatpush1.msra.mxu0 0.0
    %3281 = vmatprep.subr.mxu0 0.0
    %3282 = vmatpush1.msra.mxu0 0.0
    %3283 = vmatprep.subr.mxu0 0.0
    %3284 = vmatpush1.msra.mxu0 0.0
    %3285 = vmatprep.subr.mxu0 0.0
    %3286 = vmatpush1.msra.mxu0 0.0
    %3287 = vmatprep.subr.mxu0 0.0
    %3288 = vmatpush1.msra.mxu0 0.0
    %3289 = vmatprep.subr.mxu0 0.0
    %3290 = vmatpush1.msra.mxu0 0.0
    %3291 = vmatprep.subr.mxu0 0.0
    %3292 = vmatpush1.msra.mxu0 0.0
    %3293 = vmatprep.subr.mxu0 0.0
    %3294 = vmatpush1.msra.mxu0 0.0
    %3295 = vmatprep.subr.mxu0 0.0
    %3296 = vmatpush1.msra.mxu0 0.0
    %3297 = vmatprep.subr.mxu0 0.0
    %3298 = vmatpush1.msra.mxu0 0.0
    %3299 = vmatprep.subr.mxu0 0.0
    %3300 = vmatpush1.msra.mxu0 0.0
    %3301 = vmatprep.subr.mxu0 0.0
    %3302 = vmatpush1.msra.mxu0 0.0
    %3303 = vmatprep.subr.mxu0 0.0
    %3304 = vmatpush1.msra.mxu0 0.0
    %3305 = vmatprep.subr.mxu0 0.0
    %3306 = vmatpush1.msra.mxu0 0.0
    %3307 = vmatprep.mubr.f32.mxu0 0.0
    %3308 = vmatmul.mubr.f32.gmra.mrb[0].mxu0 %v3241
    %v3309 = vpop.f32.mrb[0].mxu0
    %v3310 = vadd.f32 0.0, %v3309
    %v3311 = vpop.f32.mrb[0].mxu0
    %3312 = vdwg.mxu0
    %v3313 = vrcp.pop %v3239
    %v3314 = vmul.f32 %v3310, %v3313
    %vm3315 = vcmp.gt.f32.partialorder %v3154, 0.5
    %vm3316 = vcmp.gt.f32.partialorder %v3155, 0.5
    %vm3317 = vcmp.gt.f32.partialorder %v3156, 0.5
    %vm3318 = vcmp.gt.f32.partialorder %v3157, 0.5
    %vm3319 = vcmp.gt.f32.partialorder %v3158, 0.5
    %vm3320 = vmand %vm115, %vm3315
    %vm3321 = vmand %vm116, %vm3316
    %vm3322 = vmand %vm117, %vm3317
    %vm3323 = vmand %vm118, %vm3318
    %vm3324 = vmand %vm119, %vm3319
    %v3325 = vsel %vm3320, 1, 0
    %v3326 = vsel %vm3321, 1, 0
    %v3327 = vsel %vm3322, 1, 0
    %v3328 = vsel %vm3323, 1, 0
    %v3329 = vsel %vm3324, 1, 0
    %vm3330 = vcmp.eq.s32.totalorder %v3325, 1
    %vm3331 = vcmp.eq.s32.totalorder %v3326, 1
    %vm3332 = vcmp.eq.s32.totalorder %v3327, 1
    %vm3333 = vcmp.eq.s32.totalorder %v3328, 1
    %vm3334 = vcmp.eq.s32.totalorder %v3329, 1
    %v3335 = vsel %vm3330, %v3226, -1e+30
    %v3336 = vsel %vm3331, %v3227, -1e+30
    %v3337 = vsel %vm3332, %v3228, -1e+30
    %v3338 = vsel %vm3333, %v3229, -1e+30
    %v3339 = vsel %vm3334, %v3230, -1e+30
    %v3340 = vsel %vm678, %v3335, -inf
    %v3341 = vsel %vm678, %v3336, -inf
    %v3342 = vsel %vm678, %v3337, -inf
    %v3343 = vsel %vm678, %v3338, -inf
    %v3344 = vsel %vm678, %v3339, -inf
    %v3345 = vmax.f32 %v3340, %v3344
    %v3346 = vmax.f32 %v3345, %v3341
    %v3347 = vmax.f32 %v3342, %v3343
    %v3348 = vmax.f32 %v3346, %v3347
    %v3349 = vrot.slane %v3348, 4
    %v3350 = vmax.f32 %v3348, %v3349
    %v3351 = vrot.slane %v3350, 2
    %v3352 = vmax.f32 %v3350, %v3351
    %v3353 = vrot.slane %v3352, 1
    %v3354 = vmax.f32 %v3352, %v3353
    %v3355 = vsel %vm1235, %v3354, 0.0
    %vm3356 = vmand %vm143, %vm3315
    %vm3357 = vmand %vm144, %vm3316
    %vm3358 = vmand %vm145, %vm3317
    %vm3359 = vmand %vm146, %vm3318
    %vm3360 = vmand %vm147, %vm3319
    %v3361 = vsel %vm3356, 1, 0
    %v3362 = vsel %vm3357, 1, 0
    %v3363 = vsel %vm3358, 1, 0
    %v3364 = vsel %vm3359, 1, 0
    %v3365 = vsel %vm3360, 1, 0
    %vm3366 = vcmp.eq.s32.totalorder %v3361, 1
    %vm3367 = vcmp.eq.s32.totalorder %v3362, 1
    %vm3368 = vcmp.eq.s32.totalorder %v3363, 1
    %vm3369 = vcmp.eq.s32.totalorder %v3364, 1
    %vm3370 = vcmp.eq.s32.totalorder %v3365, 1
    %v3371 = vsel %vm3366, %v3226, -1e+30
    %v3372 = vsel %vm3367, %v3227, -1e+30
    %v3373 = vsel %vm3368, %v3228, -1e+30
    %v3374 = vsel %vm3369, %v3229, -1e+30
    %v3375 = vsel %vm3370, %v3230, -1e+30
    %v3376 = vsel %vm678, %v3371, -inf
    %v3377 = vsel %vm678, %v3372, -inf
    %v3378 = vsel %vm678, %v3373, -inf
    %v3379 = vsel %vm678, %v3374, -inf
    %v3380 = vsel %vm678, %v3375, -inf
    %v3381 = vmax.f32 %v3376, %v3380
    %v3382 = vmax.f32 %v3381, %v3377
    %v3383 = vmax.f32 %v3378, %v3379
    %v3384 = vmax.f32 %v3382, %v3383
    %v3385 = vrot.slane %v3384, 4
    %v3386 = vmax.f32 %v3384, %v3385
    %v3387 = vrot.slane %v3386, 2
    %v3388 = vmax.f32 %v3386, %v3387
    %v3389 = vrot.slane %v3388, 1
    %v3390 = vmax.f32 %v3388, %v3389
    %v3391 = vsel %vm1272, %v3390, %v3355
    %v3392 = vadd.f32 %v2333, %v3391
    %v3393 = vadd.f32 %v2334, %v3314
    %v3394 = vld [vmem:[#allocation6 + $0x1d0] sm:$0xff]
    %v3395 = vld [vmem:[#allocation6 + $0x1d8] sm:$0xff]
    %v3396 = vld [vmem:[#allocation6 + $0x1e0] sm:$0xff]
    %v3397 = vld [vmem:[#allocation6 + $0x1e8] sm:$0xff]
    %v3398 = vld [vmem:[#allocation6 + $0x1f0] sm:$0xff]
    %v3399 = vld [vmem:[#allocation6 + $0x1f8] sm:$0xff]
    %v3400 = vld [vmem:[#allocation6 + $0x200] sm:$0xff]
    %v3401 = vld [vmem:[#allocation6 + $0x208] sm:$0xff]
    %v3403 = vsel %vm678, %v3393, 0
    %3405 = vmatprep.subr.mxu0 0.0
    %3406 = vmatpush1.msra.mxu0 %v3398
    %3407 = vmatprep.subr.mxu0 0.0
    %3408 = vmatpush1.msra.mxu0 %v3399
    %3409 = vmatprep.subr.mxu0 0.0
    %3410 = vmatpush1.msra.mxu0 %v3400
    %3411 = vmatprep.subr.mxu0 0.0
    %3412 = vmatpush1.msra.mxu0 %v3401
    %3413 = vmatprep.subr.mxu0 0.0
    %3414 = vmatpush1.msra.mxu0 0.0
    %3415 = vmatprep.subr.mxu0 0.0
    %3416 = vmatpush1.msra.mxu0 0.0
    %3417 = vmatprep.subr.mxu0 0.0
    %3418 = vmatpush1.msra.mxu0 0.0
    %3419 = vmatprep.subr.mxu0 0.0
    %3420 = vmatpush1.msra.mxu0 0.0
    %3421 = vmatprep.subr.mxu0 0.0
    %3422 = vmatpush1.msra.mxu0 0.0
    %3423 = vmatprep.subr.mxu0 0.0
    %3424 = vmatpush1.msra.mxu0 0.0
    %3425 = vmatprep.subr.mxu0 0.0
    %3426 = vmatpush1.msra.mxu0 0.0
    %3427 = vmatprep.subr.mxu0 0.0
    %3428 = vmatpush1.msra.mxu0 0.0
    %3429 = vmatprep.subr.mxu0 0.0
    %3430 = vmatpush1.msra.mxu0 0.0
    %3431 = vmatprep.subr.mxu0 0.0
    %3432 = vmatpush1.msra.mxu0 0.0
    %3433 = vmatprep.subr.mxu0 0.0
    %3434 = vmatpush1.msra.mxu0 0.0
    %3435 = vmatprep.subr.mxu0 0.0
    %3436 = vmatpush1.msra.mxu0 0.0
    %3437 = vmatprep.subr.mxu0 0.0
    %3438 = vmatpush1.msra.mxu0 0.0
    %3439 = vmatprep.subr.mxu0 0.0
    %3440 = vmatpush1.msra.mxu0 0.0
    %3441 = vmatprep.subr.mxu0 0.0
    %3442 = vmatpush1.msra.mxu0 0.0
    %3443 = vmatprep.subr.mxu0 0.0
    %3444 = vmatpush1.msra.mxu0 0.0
    %3445 = vmatprep.subr.mxu0 0.0
    %3446 = vmatpush1.msra.mxu0 0.0
    %3447 = vmatprep.subr.mxu0 0.0
    %3448 = vmatpush1.msra.mxu0 0.0
    %3449 = vmatprep.subr.mxu0 0.0
    %3450 = vmatpush1.msra.mxu0 0.0
    %3451 = vmatprep.subr.mxu0 0.0
    %3452 = vmatpush1.msra.mxu0 0.0
    %3453 = vmatprep.subr.mxu0 0.0
    %3454 = vmatpush1.msra.mxu0 0.0
    %3455 = vmatprep.subr.mxu0 0.0
    %3456 = vmatpush1.msra.mxu0 0.0
    %3457 = vmatprep.subr.mxu0 0.0
    %3458 = vmatpush1.msra.mxu0 0.0
    %3459 = vmatprep.subr.mxu0 0.0
    %3460 = vmatpush1.msra.mxu0 0.0
    %3461 = vmatprep.subr.mxu0 0.0
    %3462 = vmatpush1.msra.mxu0 0.0
    %3463 = vmatprep.subr.mxu0 0.0
    %3464 = vmatpush1.msra.mxu0 0.0
    %3465 = vmatprep.subr.mxu0 0.0
    %3466 = vmatpush1.msra.mxu0 0.0
    %3467 = vmatprep.subr.mxu0 0.0
    %3468 = vmatpush1.msra.mxu0 0.0
    %3469 = vmatprep.mubr.f32.mxu0 0.0
    %3470 = vmatmul.mubr.f32.gmra.mrb[0].mxu0 %v3403
    %v3471 = vpop.f32.mrb[0].mxu0
    %v3472 = vadd.f32 0.0, %v3471
    %v3473 = vpop.f32.mrb[0].mxu0
    %3474 = vdwg.mxu0
    %v3476 = vsel %vm678, %v3392, 0
    %3478 = vmatprep.subr.mxu0 0.0
    %3479 = vmatpush1.msra.mxu0 %v3394
    %3480 = vmatprep.subr.mxu0 0.0
    %3481 = vmatpush1.msra.mxu0 %v3395
    %3482 = vmatprep.subr.mxu0 0.0
    %3483 = vmatpush1.msra.mxu0 %v3396
    %3484 = vmatprep.subr.mxu0 0.0
    %3485 = vmatpush1.msra.mxu0 %v3397
    %3486 = vmatprep.subr.mxu0 0.0
    %3487 = vmatpush1.msra.mxu0 0.0
    %3488 = vmatprep.subr.mxu0 0.0
    %3489 = vmatpush1.msra.mxu0 0.0
    %3490 = vmatprep.subr.mxu0 0.0
    %3491 = vmatpush1.msra.mxu0 0.0
    %3492 = vmatprep.subr.mxu0 0.0
    %3493 = vmatpush1.msra.mxu0 0.0
    %3494 = vmatprep.subr.mxu0 0.0
    %3495 = vmatpush1.msra.mxu0 0.0
    %3496 = vmatprep.subr.mxu0 0.0
    %3497 = vmatpush1.msra.mxu0 0.0
    %3498 = vmatprep.subr.mxu0 0.0
    %3499 = vmatpush1.msra.mxu0 0.0
    %3500 = vmatprep.subr.mxu0 0.0
    %3501 = vmatpush1.msra.mxu0 0.0
    %3502 = vmatprep.subr.mxu0 0.0
    %3503 = vmatpush1.msra.mxu0 0.0
    %3504 = vmatprep.subr.mxu0 0.0
    %3505 = vmatpush1.msra.mxu0 0.0
    %3506 = vmatprep.subr.mxu0 0.0
    %3507 = vmatpush1.msra.mxu0 0.0
    %3508 = vmatprep.subr.mxu0 0.0
    %3509 = vmatpush1.msra.mxu0 0.0
    %3510 = vmatprep.subr.mxu0 0.0
    %3511 = vmatpush1.msra.mxu0 0.0
    %3512 = vmatprep.subr.mxu0 0.0
    %3513 = vmatpush1.msra.mxu0 0.0
    %3514 = vmatprep.subr.mxu0 0.0
    %3515 = vmatpush1.msra.mxu0 0.0
    %3516 = vmatprep.subr.mxu0 0.0
    %3517 = vmatpush1.msra.mxu0 0.0
    %3518 = vmatprep.subr.mxu0 0.0
    %3519 = vmatpush1.msra.mxu0 0.0
    %3520 = vmatprep.subr.mxu0 0.0
    %3521 = vmatpush1.msra.mxu0 0.0
    %3522 = vmatprep.subr.mxu0 0.0
    %3523 = vmatpush1.msra.mxu0 0.0
    %3524 = vmatprep.subr.mxu0 0.0
    %3525 = vmatpush1.msra.mxu0 0.0
    %3526 = vmatprep.subr.mxu0 0.0
    %3527 = vmatpush1.msra.mxu0 0.0
    %3528 = vmatprep.subr.mxu0 0.0
    %3529 = vmatpush1.msra.mxu0 0.0
    %3530 = vmatprep.subr.mxu0 0.0
    %3531 = vmatpush1.msra.mxu0 0.0
    %3532 = vmatprep.subr.mxu0 0.0
    %3533 = vmatpush1.msra.mxu0 0.0
    %3534 = vmatprep.subr.mxu0 0.0
    %3535 = vmatpush1.msra.mxu0 0.0
    %3536 = vmatprep.subr.mxu0 0.0
    %3537 = vmatpush1.msra.mxu0 0.0
    %3538 = vmatprep.subr.mxu0 0.0
    %3539 = vmatpush1.msra.mxu0 0.0
    %3540 = vmatprep.subr.mxu0 0.0
    %3541 = vmatpush1.msra.mxu0 0.0
    %3542 = vmatprep.mubr.f32.mxu0 0.0
    %3543 = vmatmul.mubr.f32.gmra.mrb[0].mxu0 %v3476
    %v3544 = vpop.f32.mrb[0].mxu0
    %v3545 = vadd.f32 %v3472, %v3544
    %v3546 = vpop.f32.mrb[0].mxu0
    %3547 = vdwg.mxu0
    %v3548 = vld [vmem:[#allocation6 + $0x210] sm:$0x1]
    %v3549 = vlaneseq
    %v3550 = vshrl.u32 %v3549, 7
    %v3551 = vsub.s32 0, %v3550
    %v3552 = vrot.slane %v3548, %v3551
    %v3553 = vadd.f32 %v3545, %v3552
    %v3554 = vmax.f32 %v3553, 0.0
    %v3555 = vld [vmem:[#allocation6 + $0x218] sm:$0xff]
    %v3556 = vld [vmem:[#allocation6 + $0x220] sm:$0xff]
    %v3557 = vld [vmem:[#allocation6 + $0x228] sm:$0xff]
    %v3558 = vld [vmem:[#allocation6 + $0x230] sm:$0xff]
    %v3559 = vld [vmem:[#allocation6 + $0x238] sm:$0x1]
    %v3560 = vlaneseq
    %v3561 = vshrl.u32 %v3560, 7
    %v3562 = vsub.s32 0, %v3561
    %v3563 = vrot.slane %v3559, %v3562
    %v3565 = vsel %vm678, %v3554, 0
    %3567 = vmatprep.subr.mxu0 0.0
    %3568 = vmatpush1.msra.mxu0 %v3555
    %3569 = vmatprep.subr.mxu0 0.0
    %3570 = vmatpush1.msra.mxu0 %v3556
    %3571 = vmatprep.subr.mxu0 0.0
    %3572 = vmatpush1.msra.mxu0 %v3557
    %3573 = vmatprep.subr.mxu0 0.0
    %3574 = vmatpush1.msra.mxu0 %v3558
    %3575 = vmatprep.subr.mxu0 0.0
    %3576 = vmatpush1.msra.mxu0 0.0
    %3577 = vmatprep.subr.mxu0 0.0
    %3578 = vmatpush1.msra.mxu0 0.0
    %3579 = vmatprep.subr.mxu0 0.0
    %3580 = vmatpush1.msra.mxu0 0.0
    %3581 = vmatprep.subr.mxu0 0.0
    %3582 = vmatpush1.msra.mxu0 0.0
    %3583 = vmatprep.subr.mxu0 0.0
    %3584 = vmatpush1.msra.mxu0 0.0
    %3585 = vmatprep.subr.mxu0 0.0
    %3586 = vmatpush1.msra.mxu0 0.0
    %3587 = vmatprep.subr.mxu0 0.0
    %3588 = vmatpush1.msra.mxu0 0.0
    %3589 = vmatprep.subr.mxu0 0.0
    %3590 = vmatpush1.msra.mxu0 0.0
    %3591 = vmatprep.subr.mxu0 0.0
    %3592 = vmatpush1.msra.mxu0 0.0
    %3593 = vmatprep.subr.mxu0 0.0
    %3594 = vmatpush1.msra.mxu0 0.0
    %3595 = vmatprep.subr.mxu0 0.0
    %3596 = vmatpush1.msra.mxu0 0.0
    %3597 = vmatprep.subr.mxu0 0.0
    %3598 = vmatpush1.msra.mxu0 0.0
    %3599 = vmatprep.subr.mxu0 0.0
    %3600 = vmatpush1.msra.mxu0 0.0
    %3601 = vmatprep.subr.mxu0 0.0
    %3602 = vmatpush1.msra.mxu0 0.0
    %3603 = vmatprep.subr.mxu0 0.0
    %3604 = vmatpush1.msra.mxu0 0.0
    %3605 = vmatprep.subr.mxu0 0.0
    %3606 = vmatpush1.msra.mxu0 0.0
    %3607 = vmatprep.subr.mxu0 0.0
    %3608 = vmatpush1.msra.mxu0 0.0
    %3609 = vmatprep.subr.mxu0 0.0
    %3610 = vmatpush1.msra.mxu0 0.0
    %3611 = vmatprep.subr.mxu0 0.0
    %3612 = vmatpush1.msra.mxu0 0.0
    %3613 = vmatprep.subr.mxu0 0.0
    %3614 = vmatpush1.msra.mxu0 0.0
    %3615 = vmatprep.subr.mxu0 0.0
    %3616 = vmatpush1.msra.mxu0 0.0
    %3617 = vmatprep.subr.mxu0 0.0
    %3618 = vmatpush1.msra.mxu0 0.0
    %3619 = vmatprep.subr.mxu0 0.0
    %3620 = vmatpush1.msra.mxu0 0.0
    %3621 = vmatprep.subr.mxu0 0.0
    %3622 = vmatpush1.msra.mxu0 0.0
    %3623 = vmatprep.subr.mxu0 0.0
    %3624 = vmatpush1.msra.mxu0 0.0
    %3625 = vmatprep.subr.mxu0 0.0
    %3626 = vmatpush1.msra.mxu0 0.0
    %3627 = vmatprep.subr.mxu0 0.0
    %3628 = vmatpush1.msra.mxu0 0.0
    %3629 = vmatprep.subr.mxu0 0.0
    %3630 = vmatpush1.msra.mxu0 0.0
    %3631 = vmatprep.mubr.f32.mxu0 0.0
    %3632 = vmatmul.mubr.f32.gmra.mrb[0].mxu0 %v3565
    %v3633 = vpop.f32.mrb[0].mxu0
    %v3634 = vadd.f32 %v3563, %v3633
    %v3635 = vpop.f32.mrb[0].mxu0
    %3636 = vdwg.mxu0
    %v3637 = vmax.f32 %v3634, 0.0
    %v3638 = vld [vmem:[#allocation6 + $0x240] sm:$0xff]
    %v3639 = vld [vmem:[#allocation6 + $0x248] sm:$0xff]
    %v3640 = vld [vmem:[#allocation6 + $0x250] sm:$0x1]
    %v3641 = vlaneseq
    %v3642 = vshrl.u32 %v3641, 7
    %v3643 = vsub.s32 0, %v3642
    %v3644 = vrot.slane %v3640, %v3643
    %vm3645 = vcmask 130048
    %v3647 = vsel %vm3645, %v3637, 0
    %3649 = vmatprep.subr.mxu0 0.0
    %3650 = vmatpush1.msra.mxu0 %v3638
    %3651 = vmatprep.subr.mxu0 0.0
    %3652 = vmatpush1.msra.mxu0 %v3639
    %3653 = vmatprep.subr.mxu0 0.0
    %3654 = vmatpush1.msra.mxu0 0.0
    %3655 = vmatprep.subr.mxu0 0.0
    %3656 = vmatpush1.msra.mxu0 0.0
    %3657 = vmatprep.subr.mxu0 0.0
    %3658 = vmatpush1.msra.mxu0 0.0
    %3659 = vmatprep.subr.mxu0 0.0
    %3660 = vmatpush1.msra.mxu0 0.0
    %3661 = vmatprep.subr.mxu0 0.0
    %3662 = vmatpush1.msra.mxu0 0.0
    %3663 = vmatprep.subr.mxu0 0.0
    %3664 = vmatpush1.msra.mxu0 0.0
    %3665 = vmatprep.subr.mxu0 0.0
    %3666 = vmatpush1.msra.mxu0 0.0
    %3667 = vmatprep.subr.mxu0 0.0
    %3668 = vmatpush1.msra.mxu0 0.0
    %3669 = vmatprep.subr.mxu0 0.0
    %3670 = vmatpush1.msra.mxu0 0.0
    %3671 = vmatprep.subr.mxu0 0.0
    %3672 = vmatpush1.msra.mxu0 0.0
    %3673 = vmatprep.subr.mxu0 0.0
    %3674 = vmatpush1.msra.mxu0 0.0
    %3675 = vmatprep.subr.mxu0 0.0
    %3676 = vmatpush1.msra.mxu0 0.0
    %3677 = vmatprep.subr.mxu0 0.0
    %3678 = vmatpush1.msra.mxu0 0.0
    %3679 = vmatprep.subr.mxu0 0.0
    %3680 = vmatpush1.msra.mxu0 0.0
    %3681 = vmatprep.subr.mxu0 0.0
    %3682 = vmatpush1.msra.mxu0 0.0
    %3683 = vmatprep.subr.mxu0 0.0
    %3684 = vmatpush1.msra.mxu0 0.0
    %3685 = vmatprep.subr.mxu0 0.0
    %3686 = vmatpush1.msra.mxu0 0.0
    %3687 = vmatprep.subr.mxu0 0.0
    %3688 = vmatpush1.msra.mxu0 0.0
    %3689 = vmatprep.subr.mxu0 0.0
    %3690 = vmatpush1.msra.mxu0 0.0
    %3691 = vmatprep.subr.mxu0 0.0
    %3692 = vmatpush1.msra.mxu0 0.0
    %3693 = vmatprep.subr.mxu0 0.0
    %3694 = vmatpush1.msra.mxu0 0.0
    %3695 = vmatprep.subr.mxu0 0.0
    %3696 = vmatpush1.msra.mxu0 0.0
    %3697 = vmatprep.subr.mxu0 0.0
    %3698 = vmatpush1.msra.mxu0 0.0
    %3699 = vmatprep.subr.mxu0 0.0
    %3700 = vmatpush1.msra.mxu0 0.0
    %3701 = vmatprep.subr.mxu0 0.0
    %3702 = vmatpush1.msra.mxu0 0.0
    %3703 = vmatprep.subr.mxu0 0.0
    %3704 = vmatpush1.msra.mxu0 0.0
    %3705 = vmatprep.subr.mxu0 0.0
    %3706 = vmatpush1.msra.mxu0 0.0
    %3707 = vmatprep.subr.mxu0 0.0
    %3708 = vmatpush1.msra.mxu0 0.0
    %3709 = vmatprep.subr.mxu0 0.0
    %3710 = vmatpush1.msra.mxu0 0.0
    %3711 = vmatprep.subr.mxu0 0.0
    %3712 = vmatpush1.msra.mxu0 0.0
    %3713 = vmatprep.mubr.f32.mxu0 0.0
    %3714 = vmatmul.mubr.f32.gmra.mrb[0].mxu0 %v3647
    %v3715 = vpop.f32.mrb[0].mxu0
    %v3716 = vadd.f32 %v3644, %v3715
    %v3717 = vpop.f32.mrb[0].mxu0
    %3718 = vdwg.mxu0
    %vm3719 = vcmask 123904
    %3720 = vst.msk [vmem:[%s3] sm:$0x3] %vm3719, %v3637
    %3722 = vrot.lane.b32.xlu0 %v3716, 16
    %v3723 = vpop.permute.xlu0 %3722
    %vm3725 = vcmask 132224
    %3726 = vst.msk [vmem:[%s3] sm:$0x3] %vm3725, %v3723
    %vm3727 = vcmask 1041544
    %3728 = vst.msk [vmem:[%s3] sm:$0x3] %vm3727, 0.0
    // Predicated region
    $region26: #{graphnet_forward.1} parent=1 // pred_check
      _
    $region27: #{graphnet_forward.1} parent=1 // pred_check_branch
      %3730 = sbr.rel (0) target = $region29
    $region28: #{graphnet_forward.1} parent=1 // pred_region
      _
    $region29: #{graphnet_forward.1} parent=1 // pred_fallthru
      _
    // Predicated region
    $region30: #{graphnet_forward.1} parent=1 // pred_check
      _
    $region31: #{graphnet_forward.1} parent=1 // pred_check_branch
      %3732 = sbr.rel (0) target = $region33
    $region32: #{graphnet_forward.1} parent=1 // pred_region
      _
    $region33: #{graphnet_forward.1} parent=1 // pred_fallthru
      _
    %3733 = vsyncpa [#allocation3], 1
    %3734 = vsyncpa [#allocation5], 1

</llo_original>
